<compile_context>
chip_gen: v6e
topology: v6e:2x2x1
jax: 0.10.0
libtpu: 0.0.40
codegen_flags: <defaults>
</compile_context>

<pallas_src>
import functools

import jax
import jax.numpy as jnp
from jax.experimental import pallas as pl
from jax.experimental.pallas import tpu as pltpu


TK_DEFAULT = 2048  # reduction-tile size; 2048 is safe on v5e/v6e/v7x (bf16 w1
                   # double-buffer = 9 MiB; per-step DMA >> 0.35us step cost).


def _round_up(x: int, m: int) -> int:
    return ((x + m - 1) // m) * m


# --------------------------------------------------------------------------
# Kernel
# --------------------------------------------------------------------------
def _mlp_kernel(x_ref, w1_ref, b1_ref, w2_ref, b2_ref, o_ref, acc_ref):
    k = pl.program_id(0)

    @pl.when(k == 0)
    def _():
        acc_ref[...] = jnp.zeros_like(acc_ref)

    # fc1 partial sum over this IN tile: (Bp, TK) @ (TK, HIDp), bf16 MXU,
    # f32 accumulation.
    acc_ref[...] += jnp.dot(
        x_ref[...].astype(jnp.bfloat16),
        w1_ref[...],
        preferred_element_type=jnp.float32,
    )

    @pl.when(k == pl.num_programs(0) - 1)
    def _():
        # bias + ReLU (f32)
        h = jnp.maximum(acc_ref[...] + b1_ref[...], 0.0)
        # fc2: (Bp, HIDp) @ (HIDp, OUTp) + bias.  w2 is tiny and resident;
        # upcast to f32 for the epilogue matmul to keep precision.
        y = jnp.dot(
            h, w2_ref[...].astype(jnp.float32),
            preferred_element_type=jnp.float32,
        )
        y = y + b2_ref[...]
        # Sigmoid
        o_ref[...] = 1.0 / (1.0 + jnp.exp(-y))


# --------------------------------------------------------------------------
# Parameter padding (do ONCE at load time, outside the forward)
# --------------------------------------------------------------------------
def pad_mlp_params(w1, b1, w2, b2, *, tk=TK_DEFAULT, weight_dtype=jnp.bfloat16):
    """Pad params to TPU-friendly shapes and cast weights to the stream dtype.

    w1: (IN, HID)   b1: (HID,)   w2: (HID, OUT)   b2: (OUT,)
    (w1/w2 are the transpose of PyTorch nn.Linear's (out, in) layout, so the
    kernel computes x @ W + b.)

    Zero-padding keeps the math exact: padded input columns multiply zero
    weight rows, padded hidden units get weight 0 / bias 0 -> relu(0) = 0 ->
    contribute nothing to fc2; padded output columns are sliced off.
    """
    IN, HID = w1.shape
    OUT = w2.shape[1]

    tk_eff = min(tk, _round_up(IN, 128))     # TK must be a multiple of 128
    tk_eff = _round_up(tk_eff, 128)
    INp = _round_up(IN, tk_eff)
    HIDp = _round_up(HID, 128)
    OUTp = _round_up(OUT, 128)

    w1_p = jnp.zeros((INp, HIDp), weight_dtype).at[:IN, :HID].set(
        w1.astype(weight_dtype))
    b1_p = jnp.zeros((1, HIDp), jnp.float32).at[0, :HID].set(b1)
    w2_p = jnp.zeros((HIDp, OUTp), weight_dtype).at[:HID, :OUT].set(
        w2.astype(weight_dtype))
    b2_p = jnp.zeros((1, OUTp), jnp.float32).at[0, :OUT].set(b2)

    return (w1_p, b1_p, w2_p, b2_p), tk_eff, OUT


def _vmem_limit_bytes(bp, tk, hidp, outp, w_bytes):
    """Per-kernel VMEM need (+ ~4 MiB headroom), clamped to chip capacity."""
    f32 = 4
    need = (
        2 * bp * tk * f32          # x tiles, double-buffered (f32)
        + 2 * tk * hidp * w_bytes  # w1 tiles, double-buffered (bf16)
        + 8 * hidp * f32           # b1, resident (sublane-padded)
        + hidp * outp * w_bytes    # w2, resident
        + 8 * outp * f32           # b2, resident
        + 2 * bp * outp * f32      # output
        + bp * hidp * f32          # f32 accumulator scratch
    )
    limit = need + (4 << 20)
    try:
        cap = int(pltpu.get_tpu_info().vmem_capacity_bytes) - (8 << 20)
    except Exception:  # pragma: no cover - conservative fallback
        cap = 56 << 20  # safe on every generation (v7x has 64 MiB/TC)
    return max(min(limit, cap), 1 << 20)


# --------------------------------------------------------------------------
# Forward
# --------------------------------------------------------------------------
@functools.partial(
    jax.jit, static_argnames=("tk", "num_out", "single_buffer_resident"))
def mlp_forward(x, w1_p, b1_p, w2_p, b2_p, *, tk, num_out,
                single_buffer_resident=True):
    """Fused MLP forward on pre-padded params.

    x: (B, IN) float32; params from pad_mlp_params().  Returns (B, num_out).
    """
    B, IN = x.shape
    INp, HIDp = w1_p.shape
    OUTp = w2_p.shape[1]
    Bp = _round_up(max(B, 1), 8)
    n_k = INp // tk
    w_bytes = jnp.dtype(w1_p.dtype).itemsize

    # Only the (small) activation is padded per call; weights were padded once.
    x_p = jnp.zeros((Bp, INp), jnp.float32).at[:B, :IN].set(x)

    # Resident (constant-index) inputs: single-buffer them to save VMEM.
    if single_buffer_resident:
        def resident(shape):
            return pl.BlockSpec(shape, lambda k: (0, 0),
                                pipeline_mode=pl.Buffered(1))
    else:
        def resident(shape):
            return pl.BlockSpec(shape, lambda k: (0, 0))

    cost = pl.CostEstimate(
        flops=2 * Bp * INp * HIDp + 2 * Bp * HIDp * OUTp,
        transcendentals=Bp * OUTp,
        bytes_accessed=(Bp * INp * 4 + INp * HIDp * w_bytes
                        + HIDp * 4 + HIDp * OUTp * w_bytes + OUTp * 4
                        + Bp * OUTp * 4),
    )

    out_p = pl.pallas_call(
        _mlp_kernel,
        out_shape=jax.ShapeDtypeStruct((Bp, OUTp), jnp.float32),
        grid_spec=pltpu.PrefetchScalarGridSpec(
            num_scalar_prefetch=0,
            grid=(n_k,),
            in_specs=[
                pl.BlockSpec((Bp, tk), lambda k: (0, k)),    # x tile (streamed)
                pl.BlockSpec((tk, HIDp), lambda k: (k, 0)),  # w1 tile (streamed)
                resident((1, HIDp)),                          # b1 (resident)
                resident((HIDp, OUTp)),                       # w2 (resident)
                resident((1, OUTp)),                          # b2 (resident)
            ],
            out_specs=pl.BlockSpec((Bp, OUTp), lambda k: (0, 0)),
            scratch_shapes=[pltpu.VMEM((Bp, HIDp), jnp.float32)],
        ),
        compiler_params=pltpu.CompilerParams(
            dimension_semantics=("arbitrary",),  # reduction axis (accumulator)
            vmem_limit_bytes=_vmem_limit_bytes(Bp, tk, HIDp, OUTp, w_bytes),
        ),
        cost_estimate=cost,
    )(x_p, w1_p, b1_p, w2_p, b2_p)

    return out_p[:B, :num_out]


# --------------------------------------------------------------------------
# Reference / init helpers
# --------------------------------------------------------------------------
def init_linear_params(key, in_features, out_features):
    """Deterministic init mimicking torch.nn.Linear (uniform +-1/sqrt(fan_in))."""
    kw, kb = jax.random.split(key)
    bound = 1.0 / (in_features ** 0.5)
    w = jax.random.uniform(
        kw, (in_features, out_features), jnp.float32, -bound, bound)
    b = jax.random.uniform(kb, (out_features,), jnp.float32, -bound, bound)
    return w, b


def reference_mlp(x, w1, b1, w2, b2, weight_dtype=jnp.float32):
    """Pure-JAX reference; weight_dtype=bf16 matches the kernel's stream dtype."""
    h = jnp.dot(x.astype(weight_dtype), w1.astype(weight_dtype),
                preferred_element_type=jnp.float32) + b1
    h = jnp.maximum(h, 0.0)
    y = jnp.dot(h, w2.astype(weight_dtype).astype(jnp.float32),
                preferred_element_type=jnp.float32) + b2
    return jax.nn.sigmoid(y)


if __name__ == "__main__":
    # Original module: IN = 85 * 8400 = 714000, HID = 1029, OUT = 2.
    # TODO(synk): IN shrunk to 512 for a runnable self-contained demo (the full
    # ~1.5 GB bf16 fc1 weight is what the K-tiled streaming structure is for);
    # the hidden (1029) and output (2) widths and the op sequence match exactly.
    IN_FEATURES = 512
    HIDDEN = 1029
    OUT_FEATURES = 2
    BATCH = 2
    TK_DEMO = 256  # small tile so the demo exercises the multi-step reduction

    key = jax.random.PRNGKey(0)
    kx, k1, k2 = jax.random.split(key, 3)

    x = jax.random.normal(kx, (BATCH, IN_FEATURES), jnp.float32)
    w1, b1 = init_linear_params(k1, IN_FEATURES, HIDDEN)
    w2, b2 = init_linear_params(k2, HIDDEN, OUT_FEATURES)

    # Pad + cast weights ONCE, outside the forward.
    (w1_p, b1_p, w2_p, b2_p), tk, n_out = pad_mlp_params(
        w1, b1, w2, b2, tk=TK_DEMO)

    try:
        out = mlp_forward(x, w1_p, b1_p, w2_p, b2_p, tk=tk, num_out=n_out,
                          single_buffer_resident=True)
        out = jax.block_until_ready(out)
    except Exception:
        # Fallback if this JAX build does not accept pipeline_mode=Buffered(1).
        out = mlp_forward(x, w1_p, b1_p, w2_p, b2_p, tk=tk, num_out=n_out,
                          single_buffer_resident=False)
        out = jax.block_until_ready(out)

    ref_bf16 = reference_mlp(x, w1, b1, w2, b2, weight_dtype=jnp.bfloat16)
    ref_f32 = reference_mlp(x, w1, b1, w2, b2, weight_dtype=jnp.float32)

    assert out.shape == (BATCH, OUT_FEATURES), out.shape
    # Matched-precision check (same bf16 weight stream as the kernel).
    assert jnp.allclose(out, ref_bf16, atol=1e-4, rtol=1e-4), (out, ref_bf16)
    # Loose sanity check against the full-f32 reference.
    assert jnp.allclose(out, ref_f32, atol=1e-2, rtol=1e-2), (out, ref_f32)

    print("KERNEL_OK")
</pallas_src>

<mosaic_0001>
module attributes {stable_mosaic.version = 11 : i64} {
  func.func @_mlp_kernel(%arg0: i32, %arg1: memref<8x256xf32, #tpu.memory_space<vmem>>, %arg2: memref<256x1152xbf16, #tpu.memory_space<vmem>>, %arg3: memref<1x1152xf32, #tpu.memory_space<vmem>>, %arg4: memref<1152x128xbf16, #tpu.memory_space<vmem>>, %arg5: memref<1x128xf32, #tpu.memory_space<vmem>>, %arg6: memref<8x128xf32, #tpu.memory_space<vmem>>, %arg7: memref<8x1152xf32, #tpu.memory_space<vmem>>) attributes {dimension_semantics = [#tpu.dimension_semantics<arbitrary>], iteration_bounds = array<i64: 2>, scalar_prefetch = 0 : i64, scratch_operands = 1 : i64, tpu.core_type = #tpu.core_type<tc>, window_params = [{transform_indices = @transform_0, window_bounds = array<i64: 8, 256>}, {transform_indices = @transform_1, window_bounds = array<i64: 256, 1152>}, {pipeline_mode = #tpu.pipeline_mode<synchronous>, transform_indices = @transform_2, window_bounds = array<i64: 1, 1152>}, {pipeline_mode = #tpu.pipeline_mode<synchronous>, transform_indices = @transform_3, window_bounds = array<i64: 1152, 128>}, {pipeline_mode = #tpu.pipeline_mode<synchronous>, transform_indices = @transform_4, window_bounds = array<i64: 1, 128>}, {pipeline_mode = #tpu.pipeline_mode<synchronous>, transform_indices = @transform_5, window_bounds = array<i64: 8, 128>}]} {
    %c0_i32 = arith.constant 0 : i32
    %0 = arith.cmpi eq, %arg0, %c0_i32 : i32
    %1 = arith.extui %0 : i1 to i32
    %c0_i32_0 = arith.constant 0 : i32
    %2 = arith.cmpi ne, %1, %c0_i32_0 : i32
    scf.if %2 {
      %cst_9 = arith.constant 0.000000e+00 : f32
      %13 = vector.broadcast %cst_9 : f32 to vector<8x1152xf32>
      %c0_10 = arith.constant 0 : index
      %c0_11 = arith.constant 0 : index
      %14 = vector.load %arg7[%c0_10, %c0_11] : memref<8x1152xf32, #tpu.memory_space<vmem>>, vector<8x1152xf32>
      tpu.vector_store %arg7[%c0_10, %c0_11], %13 {strides = array<i32>} : memref<8x1152xf32, #tpu.memory_space<vmem>>, vector<8x1152xf32>,
    } else {
    }
    %c0 = arith.constant 0 : index
    %c0_1 = arith.constant 0 : index
    %3 = vector.load %arg7[%c0, %c0_1] : memref<8x1152xf32, #tpu.memory_space<vmem>>, vector<8x1152xf32>
    %c0_2 = arith.constant 0 : index
    %c0_3 = arith.constant 0 : index
    %4 = vector.load %arg1[%c0_2, %c0_3] : memref<8x256xf32, #tpu.memory_space<vmem>>, vector<8x256xf32>
    %5 = arith.truncf %4 : vector<8x256xf32> to vector<8x256xbf16>
    %c0_4 = arith.constant 0 : index
    %c0_5 = arith.constant 0 : index
    %6 = vector.load %arg2[%c0_4, %c0_5] : memref<256x1152xbf16, #tpu.memory_space<vmem>>, vector<256x1152xbf16>
    %cst = arith.constant dense<0.000000e+00> : vector<8x1152xf32>
    %7 = tpu.matmul %5, %6, %cst {dimension_numbers = #tpu.dot_dimension_numbers<[1], [0], [0], [1], [0, 0, 1, 1], [], []>} : vector<8x256xbf16>, vector<256x1152xbf16>, vector<8x1152xf32> -> vector<8x1152xf32>
    %8 = arith.addf %3, %7 : vector<8x1152xf32>
    %c0_6 = arith.constant 0 : index
    %c0_7 = arith.constant 0 : index
    %9 = vector.load %arg7[%c0_6, %c0_7] : memref<8x1152xf32, #tpu.memory_space<vmem>>, vector<8x1152xf32>
    tpu.vector_store %arg7[%c0_6, %c0_7], %8 {strides = array<i32>} : memref<8x1152xf32, #tpu.memory_space<vmem>>, vector<8x1152xf32>,
    %c1_i32 = arith.constant 1 : i32
    %10 = arith.cmpi eq, %arg0, %c1_i32 : i32
    %11 = arith.extui %10 : i1 to i32
    %c0_i32_8 = arith.constant 0 : i32
    %12 = arith.cmpi ne, %11, %c0_i32_8 : i32
    scf.if %12 {
      %c0_9 = arith.constant 0 : index
      %c0_10 = arith.constant 0 : index
      %13 = vector.load %arg7[%c0_9, %c0_10] : memref<8x1152xf32, #tpu.memory_space<vmem>>, vector<8x1152xf32>
      %c0_11 = arith.constant 0 : index
      %c0_12 = arith.constant 0 : index
      %14 = vector.load %arg3[%c0_11, %c0_12] : memref<1x1152xf32, #tpu.memory_space<vmem>>, vector<1x1152xf32>
      %15 = vector.broadcast %14 : vector<1x1152xf32> to vector<8x1152xf32>
      %16 = arith.addf %13, %15 : vector<8x1152xf32>
      %cst_13 = arith.constant 0.000000e+00 : f32
      %17 = vector.broadcast %cst_13 : f32 to vector<8x1152xf32>
      %18 = arith.maximumf %16, %17 : vector<8x1152xf32>
      %c0_14 = arith.constant 0 : index
      %c0_15 = arith.constant 0 : index
      %19 = vector.load %arg4[%c0_14, %c0_15] : memref<1152x128xbf16, #tpu.memory_space<vmem>>, vector<1152x128xbf16>
      %20 = arith.extf %19 : vector<1152x128xbf16> to vector<1152x128xf32>
      %cst_16 = arith.constant dense<0.000000e+00> : vector<8x128xf32>
      %21 = tpu.matmul %18, %20, %cst_16 {dimension_numbers = #tpu.dot_dimension_numbers<[1], [0], [0], [1], [0, 0, 1, 1], [], []>} : vector<8x1152xf32>, vector<1152x128xf32>, vector<8x128xf32> -> vector<8x128xf32>
      %c0_17 = arith.constant 0 : index
      %c0_18 = arith.constant 0 : index
      %22 = vector.load %arg5[%c0_17, %c0_18] : memref<1x128xf32, #tpu.memory_space<vmem>>, vector<1x128xf32>
      %23 = vector.broadcast %22 : vector<1x128xf32> to vector<8x128xf32>
      %24 = arith.addf %21, %23 : vector<8x128xf32>
      %cst_19 = arith.constant 0.000000e+00 : f32
      %25 = vector.broadcast %cst_19 : f32 to vector<8x128xf32>
      %26 = arith.subf %25, %24 : vector<8x128xf32>
      %27 = math.exp %26 : vector<8x128xf32>
      %cst_20 = arith.constant 1.000000e+00 : f32
      %28 = vector.broadcast %cst_20 : f32 to vector<8x128xf32>
      %29 = arith.addf %28, %27 : vector<8x128xf32>
      %cst_21 = arith.constant 1.000000e+00 : f32
      %30 = vector.broadcast %cst_21 : f32 to vector<8x128xf32>
      %31 = arith.divf %30, %29 : vector<8x128xf32>
      %c0_22 = arith.constant 0 : index
      %c0_23 = arith.constant 0 : index
      %32 = vector.load %arg6[%c0_22, %c0_23] : memref<8x128xf32, #tpu.memory_space<vmem>>, vector<8x128xf32>
      tpu.vector_store %arg6[%c0_22, %c0_23], %31 {strides = array<i32>} : memref<8x128xf32, #tpu.memory_space<vmem>>, vector<8x128xf32>,
    } else {
    }
    return
  }
  func.func @transform_0(%arg0: i32) -> (i32, i32) {
    %c0_i32 = arith.constant 0 : i32
    %c0_i32_0 = arith.constant 0 : i32
    return %c0_i32, %arg0 : i32, i32
  }
  func.func @transform_1(%arg0: i32) -> (i32, i32) {
    %c0_i32 = arith.constant 0 : i32
    %c0_i32_0 = arith.constant 0 : i32
    return %arg0, %c0_i32 : i32, i32
  }
  func.func @transform_2(%arg0: i32) -> (i32, i32) {
    %c0_i32 = arith.constant 0 : i32
    %c0_i32_0 = arith.constant 0 : i32
    %c0_i32_1 = arith.constant 0 : i32
    return %c0_i32, %c0_i32_0 : i32, i32
  }
  func.func @transform_3(%arg0: i32) -> (i32, i32) {
    %c0_i32 = arith.constant 0 : i32
    %c0_i32_0 = arith.constant 0 : i32
    %c0_i32_1 = arith.constant 0 : i32
    return %c0_i32, %c0_i32_0 : i32, i32
  }
  func.func @transform_4(%arg0: i32) -> (i32, i32) {
    %c0_i32 = arith.constant 0 : i32
    %c0_i32_0 = arith.constant 0 : i32
    %c0_i32_1 = arith.constant 0 : i32
    return %c0_i32, %c0_i32_0 : i32, i32
  }
  func.func @transform_5(%arg0: i32) -> (i32, i32) {
    %c0_i32 = arith.constant 0 : i32
    %c0_i32_0 = arith.constant 0 : i32
    %c0_i32_1 = arith.constant 0 : i32
    return %c0_i32, %c0_i32_0 : i32, i32
  }
}

module attributes {stable_mosaic.version = 11 : i64} {
  func.func @_mlp_kernel(%arg0: i32, %arg1: memref<8x256xf32, #tpu.memory_space<vmem>>, %arg2: memref<256x1152xbf16, #tpu.memory_space<vmem>>, %arg3: memref<1x1152xf32, #tpu.memory_space<vmem>>, %arg4: memref<1152x128xbf16, #tpu.memory_space<vmem>>, %arg5: memref<1x128xf32, #tpu.memory_space<vmem>>, %arg6: memref<8x128xf32, #tpu.memory_space<vmem>>, %arg7: memref<8x1152xf32, #tpu.memory_space<vmem>>) attributes {dimension_semantics = [#tpu.dimension_semantics<arbitrary>], iteration_bounds = array<i64: 2>, scalar_prefetch = 0 : i64, scratch_operands = 1 : i64, tpu.core_type = #tpu.core_type<tc>, window_params = [{transform_indices = @transform_0, window_bounds = array<i64: 8, 256>}, {transform_indices = @transform_1, window_bounds = array<i64: 256, 1152>}, {pipeline_mode = #tpu.pipeline_mode<synchronous>, transform_indices = @transform_2, window_bounds = array<i64: 1, 1152>}, {pipeline_mode = #tpu.pipeline_mode<synchronous>, transform_indices = @transform_3, window_bounds = array<i64: 1152, 128>}, {pipeline_mode = #tpu.pipeline_mode<synchronous>, transform_indices = @transform_4, window_bounds = array<i64: 1, 128>}, {pipeline_mode = #tpu.pipeline_mode<synchronous>, transform_indices = @transform_5, window_bounds = array<i64: 8, 128>}]} {
    %c0_i32 = arith.constant 0 : i32
    %0 = arith.cmpi eq, %arg0, %c0_i32 : i32
    %1 = arith.extui %0 : i1 to i32
    %c0_i32_0 = arith.constant 0 : i32
    %2 = arith.cmpi ne, %1, %c0_i32_0 : i32
    scf.if %2 {
      %cst_9 = arith.constant 0.000000e+00 : f32
      %13 = vector.broadcast %cst_9 : f32 to vector<8x1152xf32>
      %c0_10 = arith.constant 0 : index
      %c0_11 = arith.constant 0 : index
      %14 = vector.load %arg7[%c0_10, %c0_11] : memref<8x1152xf32, #tpu.memory_space<vmem>>, vector<8x1152xf32>
      tpu.vector_store %arg7[%c0_10, %c0_11], %13 {strides = array<i32>} : memref<8x1152xf32, #tpu.memory_space<vmem>>, vector<8x1152xf32>,
    } else {
    }
    %c0 = arith.constant 0 : index
    %c0_1 = arith.constant 0 : index
    %3 = vector.load %arg7[%c0, %c0_1] : memref<8x1152xf32, #tpu.memory_space<vmem>>, vector<8x1152xf32>
    %c0_2 = arith.constant 0 : index
    %c0_3 = arith.constant 0 : index
    %4 = vector.load %arg1[%c0_2, %c0_3] : memref<8x256xf32, #tpu.memory_space<vmem>>, vector<8x256xf32>
    %5 = arith.truncf %4 : vector<8x256xf32> to vector<8x256xbf16>
    %c0_4 = arith.constant 0 : index
    %c0_5 = arith.constant 0 : index
    %6 = vector.load %arg2[%c0_4, %c0_5] : memref<256x1152xbf16, #tpu.memory_space<vmem>>, vector<256x1152xbf16>
    %cst = arith.constant dense<0.000000e+00> : vector<8x1152xf32>
    %7 = tpu.matmul %5, %6, %cst {dimension_numbers = #tpu.dot_dimension_numbers<[1], [0], [0], [1], [0, 0, 1, 1], [], []>} : vector<8x256xbf16>, vector<256x1152xbf16>, vector<8x1152xf32> -> vector<8x1152xf32>
    %8 = arith.addf %3, %7 : vector<8x1152xf32>
    %c0_6 = arith.constant 0 : index
    %c0_7 = arith.constant 0 : index
    %9 = vector.load %arg7[%c0_6, %c0_7] : memref<8x1152xf32, #tpu.memory_space<vmem>>, vector<8x1152xf32>
    tpu.vector_store %arg7[%c0_6, %c0_7], %8 {strides = array<i32>} : memref<8x1152xf32, #tpu.memory_space<vmem>>, vector<8x1152xf32>,
    %c1_i32 = arith.constant 1 : i32
    %10 = arith.cmpi eq, %arg0, %c1_i32 : i32
    %11 = arith.extui %10 : i1 to i32
    %c0_i32_8 = arith.constant 0 : i32
    %12 = arith.cmpi ne, %11, %c0_i32_8 : i32
    scf.if %12 {
      %c0_9 = arith.constant 0 : index
      %c0_10 = arith.constant 0 : index
      %13 = vector.load %arg7[%c0_9, %c0_10] : memref<8x1152xf32, #tpu.memory_space<vmem>>, vector<8x1152xf32>
      %c0_11 = arith.constant 0 : index
      %c0_12 = arith.constant 0 : index
      %14 = vector.load %arg3[%c0_11, %c0_12] : memref<1x1152xf32, #tpu.memory_space<vmem>>, vector<1x1152xf32>
      %15 = vector.broadcast %14 : vector<1x1152xf32> to vector<8x1152xf32>
      %16 = arith.addf %13, %15 : vector<8x1152xf32>
      %cst_13 = arith.constant 0.000000e+00 : f32
      %17 = vector.broadcast %cst_13 : f32 to vector<8x1152xf32>
      %18 = arith.maximumf %16, %17 : vector<8x1152xf32>
      %c0_14 = arith.constant 0 : index
      %c0_15 = arith.constant 0 : index
      %19 = vector.load %arg4[%c0_14, %c0_15] : memref<1152x128xbf16, #tpu.memory_space<vmem>>, vector<1152x128xbf16>
      %20 = arith.extf %19 : vector<1152x128xbf16> to vector<1152x128xf32>
      %cst_16 = arith.constant dense<0.000000e+00> : vector<8x128xf32>
      %21 = tpu.matmul %18, %20, %cst_16 {dimension_numbers = #tpu.dot_dimension_numbers<[1], [0], [0], [1], [0, 0, 1, 1], [], []>} : vector<8x1152xf32>, vector<1152x128xf32>, vector<8x128xf32> -> vector<8x128xf32>
      %c0_17 = arith.constant 0 : index
      %c0_18 = arith.constant 0 : index
      %22 = vector.load %arg5[%c0_17, %c0_18] : memref<1x128xf32, #tpu.memory_space<vmem>>, vector<1x128xf32>
      %23 = vector.broadcast %22 : vector<1x128xf32> to vector<8x128xf32>
      %24 = arith.addf %21, %23 : vector<8x128xf32>
      %cst_19 = arith.constant 0.000000e+00 : f32
      %25 = vector.broadcast %cst_19 : f32 to vector<8x128xf32>
      %26 = arith.subf %25, %24 : vector<8x128xf32>
      %27 = math.exp %26 : vector<8x128xf32>
      %cst_20 = arith.constant 1.000000e+00 : f32
      %28 = vector.broadcast %cst_20 : f32 to vector<8x128xf32>
      %29 = arith.addf %28, %27 : vector<8x128xf32>
      %cst_21 = arith.constant 1.000000e+00 : f32
      %30 = vector.broadcast %cst_21 : f32 to vector<8x128xf32>
      %31 = arith.divf %30, %29 : vector<8x128xf32>
      %c0_22 = arith.constant 0 : index
      %c0_23 = arith.constant 0 : index
      %32 = vector.load %arg6[%c0_22, %c0_23] : memref<8x128xf32, #tpu.memory_space<vmem>>, vector<8x128xf32>
      tpu.vector_store %arg6[%c0_22, %c0_23], %31 {strides = array<i32>} : memref<8x128xf32, #tpu.memory_space<vmem>>, vector<8x128xf32>,
    } else {
    }
    return
  }
  func.func @transform_0(%arg0: i32) -> (i32, i32) {
    %c0_i32 = arith.constant 0 : i32
    %c0_i32_0 = arith.constant 0 : i32
    return %c0_i32, %arg0 : i32, i32
  }
  func.func @transform_1(%arg0: i32) -> (i32, i32) {
    %c0_i32 = arith.constant 0 : i32
    %c0_i32_0 = arith.constant 0 : i32
    return %arg0, %c0_i32 : i32, i32
  }
  func.func @transform_2(%arg0: i32) -> (i32, i32) {
    %c0_i32 = arith.constant 0 : i32
    %c0_i32_0 = arith.constant 0 : i32
    %c0_i32_1 = arith.constant 0 : i32
    return %c0_i32, %c0_i32_0 : i32, i32
  }
  func.func @transform_3(%arg0: i32) -> (i32, i32) {
    %c0_i32 = arith.constant 0 : i32
    %c0_i32_0 = arith.constant 0 : i32
    %c0_i32_1 = arith.constant 0 : i32
    return %c0_i32, %c0_i32_0 : i32, i32
  }
  func.func @transform_4(%arg0: i32) -> (i32, i32) {
    %c0_i32 = arith.constant 0 : i32
    %c0_i32_0 = arith.constant 0 : i32
    %c0_i32_1 = arith.constant 0 : i32
    return %c0_i32, %c0_i32_0 : i32, i32
  }
  func.func @transform_5(%arg0: i32) -> (i32, i32) {
    %c0_i32 = arith.constant 0 : i32
    %c0_i32_0 = arith.constant 0 : i32
    %c0_i32_1 = arith.constant 0 : i32
    return %c0_i32, %c0_i32_0 : i32, i32
  }
}

</mosaic_0001>

<llo_original>
// kernel: mlp_forward.1
$region0: #{mlp_forward.1}
  #allocation0 [shape = 'u32[]', space=smem, size = 0x4, offset = 0x4, fixed_abs, tag = 'smem constant byte address 0x4 - core index']
  #allocation1 [shape = 'u32[144,128]{1,0:T(1,128)}', space=vmem, size = 0x12000, scoped, tag = 'internal scratch']
  #allocation2 [shape = 'f32[8,1152]{1,0:T(8,128)}', space=vmem, size = 0x9000, scoped, tag = 'scratch operand']
  %s0 = inlined_call_operand.vmem [shape: f32[8,512], index: 0, kind: input, shape index: {}]
  %s1 = inlined_call_operand.hbm [shape: bf16[512,1152], index: 1, kind: input, shape index: {}]
  %s2 = inlined_call_operand.hbm [shape: f32[1,1152], index: 2, kind: input, shape index: {}]
  %s3 = inlined_call_operand.hbm [shape: bf16[1152,128], index: 3, kind: input, shape index: {}]
  %s4 = inlined_call_operand.hbm [shape: f32[1,128], index: 4, kind: input, shape index: {}]
  %s5 = inlined_call_operand.vmem [shape: f32[8,128], index: 5, kind: output, shape index: {}]
  %s6 = sld [smem:[#allocation0]]
  $region77: #{mlp_forward.1} parent=0
    _
  %s8 = ssub.s32 1, %s6
  %s9 = scalar_select 0, %s8, %s6
  $region1: #{mlp_forward.1} parent=0
    #allocation3 [shape = 'u8[1179648]{0}', space=vmem, size = 0x120000, scoped, tag = 'input window, operand 1']
    #allocation4 [shape = 's32[2]{0}', space=sflag, size = 0x8, scoped, tag = 'scoped memory for mlp_forward.1']
    #allocation5 [shape = 'u8[4608]{0}', space=vmem, size = 0x1400, scoped, tag = 'input window, operand 2, single buffered']
    #allocation6 [shape = 's32[1]{0}', space=sflag, size = 0x4, scoped, tag = 'scoped memory for mlp_forward.1']
    #allocation7 [shape = 'u8[294912]{0}', space=vmem, size = 0x48000, scoped, tag = 'input window, operand 3, single buffered']
    #allocation8 [shape = 'u8[512]{0}', space=vmem, size = 0x400, scoped, tag = 'input window, operand 4, single buffered']
    #allocation9 [shape = 's32[1]{0}', space=sflag, size = 0x4, scoped, tag = 'scoped memory for mlp_forward.1']
    %10 = vsyncpa [#allocation4], 0
    %s11 = scalar_lea.sflag [#allocation4], 1
    %12 = vsyncpa %s11, 0
    %13 = vsyncpa [#allocation6], 0
    %14 = vsyncpa [#allocation9], 0
    loop: start=0, step=1, limit=4
    $region2: #{mlp_forward.1} parent=1 // loop_pre_header
      _
    $region3: #{mlp_forward.1} parent=1 // loop_header
      %s16 = sphi 0, %s20
      %p17 = scmp.ge.s32.totalorder %s16, 4
      %s26 = sphi 0, %s28
      %s29 = sphi 0, %s26
      %s30 = sphi 0, %s29
      %s46 = sphi 0, %s30
      %s52 = sphi 0, %s54
      %s55 = sphi 0, %s52
      %s56 = sphi 0, %s55
      %s72 = sphi 0, %s56
      %s76 = sphi 0, %s76
      %s78 = sphi 0, %s76
      %s79 = sphi 0, %s78
      %s93 = sphi 0, %s79
      %s97 = sphi 0, %s97
      %s99 = sphi 0, %s97
      %s100 = sphi 0, %s99
      %s114 = sphi 0, %s100
      %s118 = sphi 0, %s118
      %s120 = sphi 0, %s118
      %s121 = sphi 0, %s120
      %s135 = sphi 0, %s121
      %s139 = sphi 0, %s139
      %s141 = sphi 0, %s139
      %s142 = sphi 0, %s141
      %s156 = sphi 0, %s142
    $region4: #{mlp_forward.1} parent=1 // loop_header_branch
      %19 = sbr.rel (%p17) target = $region8
    $region5: #{mlp_forward.1} parent=1 // loop_body
      %s21 = ssub.s32 %s16, 1
      %s22 = ssub.s32 %s16, 2
      %s23 = sadd.s32 %s16, 1
      %s24 = ssub.s32 %s16, %s23
      %p25 = scmp.eq.s32.totalorder %s24, 0
      %s27 = sadd.s32 %s26, 1
      %s28 = scalar_select %p25, %s26, %s27
      %p31 = pneg %p25
      %p32 = scmp.eq.s32.totalorder %s16, 1
      %p33 = por %p31, %p32
      %p34 = scmp.ne.s32.totalorder %s26, %s29
      %p35 = scmp.eq.s32.totalorder %s16, 0
      %p36 = por %p34, %p35
      %p37 = scmp.ne.s32.totalorder %s26, %s29
      %p38 = scmp.eq.s32.totalorder %s21, 1
      %p39 = por %p37, %p38
      %p40 = scmp.ne.s32.totalorder %s29, %s30
      %p41 = scmp.eq.s32.totalorder %s21, 0
      %p42 = por %p40, %p41
      %p43 = scmp.ne.s32.totalorder %s29, %s30
      %p44 = scmp.eq.s32.totalorder %s22, 1
      %p45 = por %p43, %p44
      %p47 = scmp.ne.s32.totalorder %s30, %s46
      %p48 = scmp.eq.s32.totalorder %s22, 0
      %p49 = por %p47, %p48
      %s50 = ssub.s32 %s16, %s23
      %p51 = scmp.eq.s32.totalorder %s50, 0
      %s53 = sadd.s32 %s52, 1
      %s54 = scalar_select %p51, %s52, %s53
      %p57 = pneg %p51
      %p58 = scmp.eq.s32.totalorder %s16, 1
      %p59 = por %p57, %p58
      %p60 = scmp.ne.s32.totalorder %s52, %s55
      %p61 = scmp.eq.s32.totalorder %s16, 0
      %p62 = por %p60, %p61
      %p63 = scmp.ne.s32.totalorder %s52, %s55
      %p64 = scmp.eq.s32.totalorder %s21, 1
      %p65 = por %p63, %p64
      %p66 = scmp.ne.s32.totalorder %s55, %s56
      %p67 = scmp.eq.s32.totalorder %s21, 0
      %p68 = por %p66, %p67
      %p69 = scmp.ne.s32.totalorder %s55, %s56
      %p70 = scmp.eq.s32.totalorder %s22, 1
      %p71 = por %p69, %p70
      %p73 = scmp.ne.s32.totalorder %s56, %s72
      %p74 = scmp.eq.s32.totalorder %s22, 0
      %p75 = por %p73, %p74
      %s77 = sadd.s32 %s76, 1
      %p80 = scmp.eq.s32.totalorder %s16, 1
      %p81 = scmp.ne.s32.totalorder %s76, %s78
      %p82 = scmp.eq.s32.totalorder %s16, 0
      %p83 = por %p81, %p82
      %p84 = scmp.ne.s32.totalorder %s76, %s78
      %p85 = scmp.eq.s32.totalorder %s21, 1
      %p86 = por %p84, %p85
      %p87 = scmp.ne.s32.totalorder %s78, %s79
      %p88 = scmp.eq.s32.totalorder %s21, 0
      %p89 = por %p87, %p88
      %p90 = scmp.ne.s32.totalorder %s78, %s79
      %p91 = scmp.eq.s32.totalorder %s22, 1
      %p92 = por %p90, %p91
      %p94 = scmp.ne.s32.totalorder %s79, %s93
      %p95 = scmp.eq.s32.totalorder %s22, 0
      %p96 = por %p94, %p95
      %s98 = sadd.s32 %s97, 1
      %p101 = scmp.eq.s32.totalorder %s16, 1
      %p102 = scmp.ne.s32.totalorder %s97, %s99
      %p103 = scmp.eq.s32.totalorder %s16, 0
      %p104 = por %p102, %p103
      %p105 = scmp.ne.s32.totalorder %s97, %s99
      %p106 = scmp.eq.s32.totalorder %s21, 1
      %p107 = por %p105, %p106
      %p108 = scmp.ne.s32.totalorder %s99, %s100
      %p109 = scmp.eq.s32.totalorder %s21, 0
      %p110 = por %p108, %p109
      %p111 = scmp.ne.s32.totalorder %s99, %s100
      %p112 = scmp.eq.s32.totalorder %s22, 1
      %p113 = por %p111, %p112
      %p115 = scmp.ne.s32.totalorder %s100, %s114
      %p116 = scmp.eq.s32.totalorder %s22, 0
      %p117 = por %p115, %p116
      %s119 = sadd.s32 %s118, 1
      %p122 = scmp.eq.s32.totalorder %s16, 1
      %p123 = scmp.ne.s32.totalorder %s118, %s120
      %p124 = scmp.eq.s32.totalorder %s16, 0
      %p125 = por %p123, %p124
      %p126 = scmp.ne.s32.totalorder %s118, %s120
      %p127 = scmp.eq.s32.totalorder %s21, 1
      %p128 = por %p126, %p127
      %p129 = scmp.ne.s32.totalorder %s120, %s121
      %p130 = scmp.eq.s32.totalorder %s21, 0
      %p131 = por %p129, %p130
      %p132 = scmp.ne.s32.totalorder %s120, %s121
      %p133 = scmp.eq.s32.totalorder %s22, 1
      %p134 = por %p132, %p133
      %p136 = scmp.ne.s32.totalorder %s121, %s135
      %p137 = scmp.eq.s32.totalorder %s22, 0
      %p138 = por %p136, %p137
      %s140 = sadd.s32 %s139, 1
      %p143 = scmp.eq.s32.totalorder %s16, 1
      %p144 = scmp.ne.s32.totalorder %s139, %s141
      %p145 = scmp.eq.s32.totalorder %s16, 0
      %p146 = por %p144, %p145
      %p147 = scmp.ne.s32.totalorder %s139, %s141
      %p148 = scmp.eq.s32.totalorder %s21, 1
      %p149 = por %p147, %p148
      %p150 = scmp.ne.s32.totalorder %s141, %s142
      %p151 = scmp.eq.s32.totalorder %s21, 0
      %p152 = por %p150, %p151
      %p153 = scmp.ne.s32.totalorder %s141, %s142
      %p154 = scmp.eq.s32.totalorder %s22, 1
      %p155 = por %p153, %p154
      %p157 = scmp.ne.s32.totalorder %s142, %s156
      %p158 = scmp.eq.s32.totalorder %s22, 0
      %p159 = por %p157, %p158
      %p160 = scmp.le.s32.totalorder 1, %s16
      %p161 = scmp.lt.s32.totalorder %s16, 3
      %p162 = pnand %p160, %p161
      %p163 = pneg %p162
      // Predicated region
      $region9: #{mlp_forward.1} parent=5 // pred_check
        _
      $region10: #{mlp_forward.1} parent=5 // pred_check_branch
        %165 = sbr.rel (%p162) target = $region12
      $region11: #{mlp_forward.1} parent=5 // pred_region
        %s166 = ssub.s32 %s16, 1
        // Predicated region
        $region13: #{mlp_forward.1} parent=11 // pred_check
          %p167 = pneg %p89
        $region14: #{mlp_forward.1} parent=11 // pred_check_branch
          %169 = sbr.rel (%p167) target = $region16
        $region15: #{mlp_forward.1} parent=11 // pred_region
          %s171 = ssub.s32 144, 144
          %172 = vsyncadd [#allocation6], %s171
          %s174 = sshll.u32 [#allocation5], 4
          %s175 = int_to_ptr.vmem [resolvable:$true] %s174
          %177 = dma.hbm_to_vmem [thread:$0]  %s2, 144, %s175, [#allocation6]
        $region16: #{mlp_forward.1} parent=11 // pred_fallthru
          _
        // Predicated region
        $region17: #{mlp_forward.1} parent=11 // pred_check
          %p178 = pneg %p110
        $region18: #{mlp_forward.1} parent=11 // pred_check_branch
          %180 = sbr.rel (%p178) target = $region20
        $region19: #{mlp_forward.1} parent=11 // pred_region
          %s182 = ssub.s32 9216, 9216
          %183 = vsyncadd [#allocation6], %s182
          %s184 = sshll.u32 [#allocation7], 4
          %s185 = int_to_ptr.vmem [resolvable:$true] %s184
          %190 = dma.hbm_to_vmem [thread:$0]  %s3, 9216, %s185, [#allocation6], 64, 64, 4
        $region20: #{mlp_forward.1} parent=11 // pred_fallthru
          _
        // Predicated region
        $region21: #{mlp_forward.1} parent=11 // pred_check
          %p191 = pneg %p131
        $region22: #{mlp_forward.1} parent=11 // pred_check_branch
          %193 = sbr.rel (%p191) target = $region24
        $region23: #{mlp_forward.1} parent=11 // pred_region
          %s195 = ssub.s32 16, 16
          %196 = vsyncadd [#allocation9], %s195
          %s198 = sshll.u32 [#allocation8], 4
          %s199 = int_to_ptr.vmem [resolvable:$true] %s198
          %201 = dma.hbm_to_vmem [thread:$0]  %s4, 16, %s199, [#allocation9]
        $region24: #{mlp_forward.1} parent=11 // pred_fallthru
          _
      $region12: #{mlp_forward.1} parent=5 // pred_fallthru
        _
      %p202 = scmp.lt.s32.totalorder %s16, 2
      // Predicated region
      $region25: #{mlp_forward.1} parent=5 // pred_check
        %p203 = pneg %p202
      $region26: #{mlp_forward.1} parent=5 // pred_check_branch
        %205 = sbr.rel (%p203) target = $region28
      $region27: #{mlp_forward.1} parent=5 // pred_region
        // Predicated region
        $region29: #{mlp_forward.1} parent=27 // pred_check
          %p206 = pneg %p36
        $region30: #{mlp_forward.1} parent=27 // pred_check_branch
          %208 = sbr.rel (%p206) target = $region32
        $region31: #{mlp_forward.1} parent=27 // pred_region
          %s209 = smul.u32 2, %s16
          %p210 = scmp.lt.s32.totalorder %s209, 3
          %s211 = scalar_select %p210, %s209, 3
          %s212 = smul.addr %s211, 8
          %s213 = scalar_lea.vmem %s0, %s212
          %s214 = smul.u32 2, %s16
        $region32: #{mlp_forward.1} parent=27 // pred_fallthru
          _
        // Predicated region
        $region33: #{mlp_forward.1} parent=27 // pred_check
          %p215 = pneg %p62
        $region34: #{mlp_forward.1} parent=27 // pred_check_branch
          %217 = sbr.rel (%p215) target = $region36
        $region35: #{mlp_forward.1} parent=27 // pred_region
          %s218 = sand.u32 %s52, 1
          %s219 = scalar_lea.sflag [#allocation4], %s218
          %s220 = sand.u32 %s52, 1
          %s221 = smul.addr %s220, 1152
          %s222 = scalar_lea.vmem [#allocation3], %s221
          %s223 = smul.u32 32, %s16
          %s225 = ssub.s32 18432, 18432
          %226 = vsyncadd %s219, %s225
          %s227 = smul.addr %s223, 9
          %s228 = smul.addr %s227, 64
          %s229 = scalar_lea.hbm %s1, %s228
          %s230 = sshll.u32 %s222, 4
          %s231 = int_to_ptr.vmem [resolvable:$true] %s230
          %236 = dma.hbm_to_vmem [thread:$0]  %s229, 18432, %s231, %s219, 576, 576, 36
        $region36: #{mlp_forward.1} parent=27 // pred_fallthru
          _
      $region28: #{mlp_forward.1} parent=5 // pred_fallthru
        _
      %p237 = scmp.le.s32.totalorder 1, %s16
      %p238 = scmp.lt.s32.totalorder %s16, 3
      %p239 = pnand %p237, %p238
      %p240 = pneg %p239
      // Predicated region
      $region37: #{mlp_forward.1} parent=5 // pred_check
        _
      $region38: #{mlp_forward.1} parent=5 // pred_check_branch
        %242 = sbr.rel (%p239) target = $region40
      $region39: #{mlp_forward.1} parent=5 // pred_region
        %s243 = ssub.s32 %s16, 1
        %s244 = sand.u32 %s55, 1
        %s245 = scalar_lea.sflag [#allocation4], %s244
        %s246 = sand.u32 %s55, 1
        %s247 = smul.addr %s246, 1152
        %s248 = scalar_lea.vmem [#allocation3], %s247
        // Predicated region
        $region41: #{mlp_forward.1} parent=39 // pred_check
          %p249 = pneg %p68
        $region42: #{mlp_forward.1} parent=39 // pred_check_branch
          %251 = sbr.rel (%p249) target = $region44
        $region43: #{mlp_forward.1} parent=39 // pred_region
          %252 = dma.done %s245, 18432
        $region44: #{mlp_forward.1} parent=39 // pred_fallthru
          _
        // Predicated region
        $region45: #{mlp_forward.1} parent=39 // pred_check
          %p253 = pneg %p89
        $region46: #{mlp_forward.1} parent=39 // pred_check_branch
          %255 = sbr.rel (%p253) target = $region48
        $region47: #{mlp_forward.1} parent=39 // pred_region
          %256 = dma.done [#allocation6], 144
        $region48: #{mlp_forward.1} parent=39 // pred_fallthru
          _
        // Predicated region
        $region49: #{mlp_forward.1} parent=39 // pred_check
          %p257 = pneg %p110
        $region50: #{mlp_forward.1} parent=39 // pred_check_branch
          %259 = sbr.rel (%p257) target = $region52
        $region51: #{mlp_forward.1} parent=39 // pred_region
          %260 = dma.done [#allocation6], 9216
        $region52: #{mlp_forward.1} parent=39 // pred_fallthru
          _
        // Predicated region
        $region53: #{mlp_forward.1} parent=39 // pred_check
          %p261 = pneg %p131
        $region54: #{mlp_forward.1} parent=39 // pred_check_branch
          %263 = sbr.rel (%p261) target = $region56
        $region55: #{mlp_forward.1} parent=39 // pred_region
          %264 = dma.done [#allocation9], 16
        $region56: #{mlp_forward.1} parent=39 // pred_fallthru
          _
        %s265 = smul.u32 2, %s21
        %p266 = scmp.lt.s32.totalorder %s265, 3
        %s267 = scalar_select %p266, %s265, 3
        %s268 = smul.addr %s267, 8
        %s269 = scalar_lea.vmem %s0, %s268
        %p270 = pneg %p42
        %p271 = pneg %p39
        %s272 = sand.u32 %s55, 1
        %s273 = scalar_lea.sflag [#allocation4], %s272
        %s274 = sand.u32 %s55, 1
        %s275 = smul.addr %s274, 1152
        %s276 = scalar_lea.vmem [#allocation3], %s275
        %p277 = pneg %p68
        %p278 = pneg %p65
        %p279 = pneg %p89
        %p280 = pneg %p86
        %p281 = pneg %p110
        %p282 = pneg %p107
        %p283 = pneg %p131
        %p284 = pneg %p128
        %p285 = pneg %p152
        %p286 = pneg %p149
        %s287 = smul.u32 2, %s21
        %p288 = scmp.lt.s32.totalorder %s287, 3
        %s289 = scalar_select %p288, %s287, 3
        %s290 = smul.addr %s289, 8
        %s291 = scalar_lea.vmem %s0, %s290
        %s292 = smul.u32 2, %s21
        %s293 = smul.u32 32, %s21
        %p295 = scmp.eq.s32.totalorder %s21, 0
        // Predicated region
        $region57: #{mlp_forward.1} parent=39 // pred_check
          %p296 = pneg %p295
        $region58: #{mlp_forward.1} parent=39 // pred_check_branch
          %298 = sbr.rel (%p296) target = $region60
        $region59: #{mlp_forward.1} parent=39 // pred_region
          %299 = vst [vmem:[#allocation2] sm:$0xff] 0.0
          %300 = vst [vmem:[#allocation2 + $0x8] sm:$0xff] 0.0
          %301 = vst [vmem:[#allocation2 + $0x10] sm:$0xff] 0.0
          %302 = vst [vmem:[#allocation2 + $0x18] sm:$0xff] 0.0
          %303 = vst [vmem:[#allocation2 + $0x20] sm:$0xff] 0.0
          %304 = vst [vmem:[#allocation2 + $0x28] sm:$0xff] 0.0
          %305 = vst [vmem:[#allocation2 + $0x30] sm:$0xff] 0.0
          %306 = vst [vmem:[#allocation2 + $0x38] sm:$0xff] 0.0
          %307 = vst [vmem:[#allocation2 + $0x40] sm:$0xff] 0.0
        $region60: #{mlp_forward.1} parent=39 // pred_fallthru
          _
        %v308 = vld [vmem:[#allocation2] sm:$0xff]
        %v309 = vld [vmem:[#allocation2 + $0x8] sm:$0xff]
        %v310 = vld [vmem:[#allocation2 + $0x10] sm:$0xff]
        %v311 = vld [vmem:[#allocation2 + $0x18] sm:$0xff]
        %v312 = vld [vmem:[#allocation2 + $0x20] sm:$0xff]
        %v313 = vld [vmem:[#allocation2 + $0x28] sm:$0xff]
        %v314 = vld [vmem:[#allocation2 + $0x30] sm:$0xff]
        %v315 = vld [vmem:[#allocation2 + $0x38] sm:$0xff]
        %v316 = vld [vmem:[#allocation2 + $0x40] sm:$0xff]
        %v317 = vld [vmem:[%s291] sm:$0xff]
        %v318 = vld [vmem:[%s291 + $0x8] sm:$0xff]
        %v319 = vpack.c.bf16 %v317, %v317
        %v320 = vpack.c.bf16 %v318, %v318
        %v321 = vld [vmem:[%s248] sm:$0xff]
        %v322 = vld [vmem:[%s248 + $0x8] sm:$0xff]
        %v323 = vld [vmem:[%s248 + $0x10] sm:$0xff]
        %v324 = vld [vmem:[%s248 + $0x18] sm:$0xff]
        %v325 = vld [vmem:[%s248 + $0x20] sm:$0xf]
        %v326 = vld [vmem:[%s248 + $0x24] sm:$0xff]
        %v327 = vld [vmem:[%s248 + $0x2c] sm:$0xff]
        %v328 = vld [vmem:[%s248 + $0x34] sm:$0xff]
        %v329 = vld [vmem:[%s248 + $0x3c] sm:$0xff]
        %v330 = vld [vmem:[%s248 + $0x44] sm:$0xf]
        %v331 = vld [vmem:[%s248 + $0x48] sm:$0xff]
        %v332 = vld [vmem:[%s248 + $0x50] sm:$0xff]
        %v333 = vld [vmem:[%s248 + $0x58] sm:$0xff]
        %v334 = vld [vmem:[%s248 + $0x60] sm:$0xff]
        %v335 = vld [vmem:[%s248 + $0x68] sm:$0xf]
        %v336 = vld [vmem:[%s248 + $0x6c] sm:$0xff]
        %v337 = vld [vmem:[%s248 + $0x74] sm:$0xff]
        %v338 = vld [vmem:[%s248 + $0x7c] sm:$0xff]
        %v339 = vld [vmem:[%s248 + $0x84] sm:$0xff]
        %v340 = vld [vmem:[%s248 + $0x8c] sm:$0xf]
        %v341 = vld [vmem:[%s248 + $0x90] sm:$0xff]
        %v342 = vld [vmem:[%s248 + $0x98] sm:$0xff]
        %v343 = vld [vmem:[%s248 + $0xa0] sm:$0xff]
        %v344 = vld [vmem:[%s248 + $0xa8] sm:$0xff]
        %v345 = vld [vmem:[%s248 + $0xb0] sm:$0xf]
        %v346 = vld [vmem:[%s248 + $0xb4] sm:$0xff]
        %v347 = vld [vmem:[%s248 + $0xbc] sm:$0xff]
        %v348 = vld [vmem:[%s248 + $0xc4] sm:$0xff]
        %v349 = vld [vmem:[%s248 + $0xcc] sm:$0xff]
        %v350 = vld [vmem:[%s248 + $0xd4] sm:$0xf]
        %v351 = vld [vmem:[%s248 + $0xd8] sm:$0xff]
        %v352 = vld [vmem:[%s248 + $0xe0] sm:$0xff]
        %v353 = vld [vmem:[%s248 + $0xe8] sm:$0xff]
        %v354 = vld [vmem:[%s248 + $0xf0] sm:$0xff]
        %v355 = vld [vmem:[%s248 + $0xf8] sm:$0xf]
        %v356 = vld [vmem:[%s248 + $0xfc] sm:$0xff]
        %v357 = vld [vmem:[%s248 + $0x104] sm:$0xff]
        %v358 = vld [vmem:[%s248 + $0x10c] sm:$0xff]
        %v359 = vld [vmem:[%s248 + $0x114] sm:$0xff]
        %v360 = vld [vmem:[%s248 + $0x11c] sm:$0xf]
        %v361 = vld [vmem:[%s248 + $0x120] sm:$0xff]
        %v362 = vld [vmem:[%s248 + $0x128] sm:$0xff]
        %v363 = vld [vmem:[%s248 + $0x130] sm:$0xff]
        %v364 = vld [vmem:[%s248 + $0x138] sm:$0xff]
        %v365 = vld [vmem:[%s248 + $0x140] sm:$0xf]
        %v366 = vld [vmem:[%s248 + $0x144] sm:$0xff]
        %v367 = vld [vmem:[%s248 + $0x14c] sm:$0xff]
        %v368 = vld [vmem:[%s248 + $0x154] sm:$0xff]
        %v369 = vld [vmem:[%s248 + $0x15c] sm:$0xff]
        %v370 = vld [vmem:[%s248 + $0x164] sm:$0xf]
        %v371 = vld [vmem:[%s248 + $0x168] sm:$0xff]
        %v372 = vld [vmem:[%s248 + $0x170] sm:$0xff]
        %v373 = vld [vmem:[%s248 + $0x178] sm:$0xff]
        %v374 = vld [vmem:[%s248 + $0x180] sm:$0xff]
        %v375 = vld [vmem:[%s248 + $0x188] sm:$0xf]
        %v376 = vld [vmem:[%s248 + $0x18c] sm:$0xff]
        %v377 = vld [vmem:[%s248 + $0x194] sm:$0xff]
        %v378 = vld [vmem:[%s248 + $0x19c] sm:$0xff]
        %v379 = vld [vmem:[%s248 + $0x1a4] sm:$0xff]
        %v380 = vld [vmem:[%s248 + $0x1ac] sm:$0xf]
        %v381 = vld [vmem:[%s248 + $0x1b0] sm:$0xff]
        %v382 = vld [vmem:[%s248 + $0x1b8] sm:$0xff]
        %v383 = vld [vmem:[%s248 + $0x1c0] sm:$0xff]
        %v384 = vld [vmem:[%s248 + $0x1c8] sm:$0xff]
        %v385 = vld [vmem:[%s248 + $0x1d0] sm:$0xf]
        %v386 = vld [vmem:[%s248 + $0x1d4] sm:$0xff]
        %v387 = vld [vmem:[%s248 + $0x1dc] sm:$0xff]
        %v388 = vld [vmem:[%s248 + $0x1e4] sm:$0xff]
        %v389 = vld [vmem:[%s248 + $0x1ec] sm:$0xff]
        %v390 = vld [vmem:[%s248 + $0x1f4] sm:$0xf]
        %v391 = vld [vmem:[%s248 + $0x1f8] sm:$0xff]
        %v392 = vld [vmem:[%s248 + $0x200] sm:$0xff]
        %v393 = vld [vmem:[%s248 + $0x208] sm:$0xff]
        %v394 = vld [vmem:[%s248 + $0x210] sm:$0xff]
        %v395 = vld [vmem:[%s248 + $0x218] sm:$0xf]
        %v396 = vld [vmem:[%s248 + $0x21c] sm:$0xff]
        %v397 = vld [vmem:[%s248 + $0x224] sm:$0xff]
        %v398 = vld [vmem:[%s248 + $0x22c] sm:$0xff]
        %v399 = vld [vmem:[%s248 + $0x234] sm:$0xff]
        %v400 = vld [vmem:[%s248 + $0x23c] sm:$0xf]
        %v401 = vld [vmem:[%s248 + $0x240] sm:$0xff]
        %v402 = vld [vmem:[%s248 + $0x248] sm:$0xff]
        %v403 = vld [vmem:[%s248 + $0x250] sm:$0xff]
        %v404 = vld [vmem:[%s248 + $0x258] sm:$0xff]
        %v405 = vld [vmem:[%s248 + $0x260] sm:$0xf]
        %v406 = vld [vmem:[%s248 + $0x264] sm:$0xff]
        %v407 = vld [vmem:[%s248 + $0x26c] sm:$0xff]
        %v408 = vld [vmem:[%s248 + $0x274] sm:$0xff]
        %v409 = vld [vmem:[%s248 + $0x27c] sm:$0xff]
        %v410 = vld [vmem:[%s248 + $0x284] sm:$0xf]
        %v411 = vld [vmem:[%s248 + $0x288] sm:$0xff]
        %v412 = vld [vmem:[%s248 + $0x290] sm:$0xff]
        %v413 = vld [vmem:[%s248 + $0x298] sm:$0xff]
        %v414 = vld [vmem:[%s248 + $0x2a0] sm:$0xff]
        %v415 = vld [vmem:[%s248 + $0x2a8] sm:$0xf]
        %v416 = vld [vmem:[%s248 + $0x2ac] sm:$0xff]
        %v417 = vld [vmem:[%s248 + $0x2b4] sm:$0xff]
        %v418 = vld [vmem:[%s248 + $0x2bc] sm:$0xff]
        %v419 = vld [vmem:[%s248 + $0x2c4] sm:$0xff]
        %v420 = vld [vmem:[%s248 + $0x2cc] sm:$0xf]
        %v421 = vld [vmem:[%s248 + $0x2d0] sm:$0xff]
        %v422 = vld [vmem:[%s248 + $0x2d8] sm:$0xff]
        %v423 = vld [vmem:[%s248 + $0x2e0] sm:$0xff]
        %v424 = vld [vmem:[%s248 + $0x2e8] sm:$0xff]
        %v425 = vld [vmem:[%s248 + $0x2f0] sm:$0xf]
        %v426 = vld [vmem:[%s248 + $0x2f4] sm:$0xff]
        %v427 = vld [vmem:[%s248 + $0x2fc] sm:$0xff]
        %v428 = vld [vmem:[%s248 + $0x304] sm:$0xff]
        %v429 = vld [vmem:[%s248 + $0x30c] sm:$0xff]
        %v430 = vld [vmem:[%s248 + $0x314] sm:$0xf]
        %v431 = vld [vmem:[%s248 + $0x318] sm:$0xff]
        %v432 = vld [vmem:[%s248 + $0x320] sm:$0xff]
        %v433 = vld [vmem:[%s248 + $0x328] sm:$0xff]
        %v434 = vld [vmem:[%s248 + $0x330] sm:$0xff]
        %v435 = vld [vmem:[%s248 + $0x338] sm:$0xf]
        %v436 = vld [vmem:[%s248 + $0x33c] sm:$0xff]
        %v437 = vld [vmem:[%s248 + $0x344] sm:$0xff]
        %v438 = vld [vmem:[%s248 + $0x34c] sm:$0xff]
        %v439 = vld [vmem:[%s248 + $0x354] sm:$0xff]
        %v440 = vld [vmem:[%s248 + $0x35c] sm:$0xf]
        %v441 = vld [vmem:[%s248 + $0x360] sm:$0xff]
        %v442 = vld [vmem:[%s248 + $0x368] sm:$0xff]
        %v443 = vld [vmem:[%s248 + $0x370] sm:$0xff]
        %v444 = vld [vmem:[%s248 + $0x378] sm:$0xff]
        %v445 = vld [vmem:[%s248 + $0x380] sm:$0xf]
        %v446 = vld [vmem:[%s248 + $0x384] sm:$0xff]
        %v447 = vld [vmem:[%s248 + $0x38c] sm:$0xff]
        %v448 = vld [vmem:[%s248 + $0x394] sm:$0xff]
        %v449 = vld [vmem:[%s248 + $0x39c] sm:$0xff]
        %v450 = vld [vmem:[%s248 + $0x3a4] sm:$0xf]
        %v451 = vld [vmem:[%s248 + $0x3a8] sm:$0xff]
        %v452 = vld [vmem:[%s248 + $0x3b0] sm:$0xff]
        %v453 = vld [vmem:[%s248 + $0x3b8] sm:$0xff]
        %v454 = vld [vmem:[%s248 + $0x3c0] sm:$0xff]
        %v455 = vld [vmem:[%s248 + $0x3c8] sm:$0xf]
        %v456 = vld [vmem:[%s248 + $0x3cc] sm:$0xff]
        %v457 = vld [vmem:[%s248 + $0x3d4] sm:$0xff]
        %v458 = vld [vmem:[%s248 + $0x3dc] sm:$0xff]
        %v459 = vld [vmem:[%s248 + $0x3e4] sm:$0xff]
        %v460 = vld [vmem:[%s248 + $0x3ec] sm:$0xf]
        %v461 = vld [vmem:[%s248 + $0x3f0] sm:$0xff]
        %v462 = vld [vmem:[%s248 + $0x3f8] sm:$0xff]
        %v463 = vld [vmem:[%s248 + $0x400] sm:$0xff]
        %v464 = vld [vmem:[%s248 + $0x408] sm:$0xff]
        %v465 = vld [vmem:[%s248 + $0x410] sm:$0xf]
        %v466 = vld [vmem:[%s248 + $0x414] sm:$0xff]
        %v467 = vld [vmem:[%s248 + $0x41c] sm:$0xff]
        %v468 = vld [vmem:[%s248 + $0x424] sm:$0xff]
        %v469 = vld [vmem:[%s248 + $0x42c] sm:$0xff]
        %v470 = vld [vmem:[%s248 + $0x434] sm:$0xf]
        %v471 = vld [vmem:[%s248 + $0x438] sm:$0xff]
        %v472 = vld [vmem:[%s248 + $0x440] sm:$0xff]
        %v473 = vld [vmem:[%s248 + $0x448] sm:$0xff]
        %v474 = vld [vmem:[%s248 + $0x450] sm:$0xff]
        %v475 = vld [vmem:[%s248 + $0x458] sm:$0xf]
        %v476 = vld [vmem:[%s248 + $0x45c] sm:$0xff]
        %v477 = vld [vmem:[%s248 + $0x464] sm:$0xff]
        %v478 = vld [vmem:[%s248 + $0x46c] sm:$0xff]
        %v479 = vld [vmem:[%s248 + $0x474] sm:$0xff]
        %v480 = vld [vmem:[%s248 + $0x47c] sm:$0xf]
        %v641 = vunpack.c.l.b16 %v321
        %v642 = vunpack.c.h.b16 %v321
        %v643 = vunpack.c.l.b16 %v322
        %v644 = vunpack.c.h.b16 %v322
        %v645 = vunpack.c.l.b16 %v323
        %v646 = vunpack.c.h.b16 %v323
        %v647 = vunpack.c.l.b16 %v324
        %v648 = vunpack.c.h.b16 %v324
        %v649 = vunpack.c.l.b16 %v325
        %v650 = vunpack.c.l.b16 %v326
        %v651 = vunpack.c.h.b16 %v326
        %v652 = vunpack.c.l.b16 %v327
        %v653 = vunpack.c.h.b16 %v327
        %v654 = vunpack.c.l.b16 %v328
        %v655 = vunpack.c.h.b16 %v328
        %v656 = vunpack.c.l.b16 %v329
        %v657 = vunpack.c.h.b16 %v329
        %v658 = vunpack.c.l.b16 %v330
        %v659 = vunpack.c.l.b16 %v331
        %v660 = vunpack.c.h.b16 %v331
        %v661 = vunpack.c.l.b16 %v332
        %v662 = vunpack.c.h.b16 %v332
        %v663 = vunpack.c.l.b16 %v333
        %v664 = vunpack.c.h.b16 %v333
        %v665 = vunpack.c.l.b16 %v334
        %v666 = vunpack.c.h.b16 %v334
        %v667 = vunpack.c.l.b16 %v335
        %v668 = vunpack.c.l.b16 %v336
        %v669 = vunpack.c.h.b16 %v336
        %v670 = vunpack.c.l.b16 %v337
        %v671 = vunpack.c.h.b16 %v337
        %v672 = vunpack.c.l.b16 %v338
        %v673 = vunpack.c.h.b16 %v338
        %v674 = vunpack.c.l.b16 %v339
        %v675 = vunpack.c.h.b16 %v339
        %v676 = vunpack.c.l.b16 %v340
        %v677 = vunpack.c.l.b16 %v341
        %v678 = vunpack.c.h.b16 %v341
        %v679 = vunpack.c.l.b16 %v342
        %v680 = vunpack.c.h.b16 %v342
        %v681 = vunpack.c.l.b16 %v343
        %v682 = vunpack.c.h.b16 %v343
        %v683 = vunpack.c.l.b16 %v344
        %v684 = vunpack.c.h.b16 %v344
        %v685 = vunpack.c.l.b16 %v345
        %v686 = vunpack.c.l.b16 %v346
        %v687 = vunpack.c.h.b16 %v346
        %v688 = vunpack.c.l.b16 %v347
        %v689 = vunpack.c.h.b16 %v347
        %v690 = vunpack.c.l.b16 %v348
        %v691 = vunpack.c.h.b16 %v348
        %v692 = vunpack.c.l.b16 %v349
        %v693 = vunpack.c.h.b16 %v349
        %v694 = vunpack.c.l.b16 %v350
        %v695 = vunpack.c.l.b16 %v351
        %v696 = vunpack.c.h.b16 %v351
        %v697 = vunpack.c.l.b16 %v352
        %v698 = vunpack.c.h.b16 %v352
        %v699 = vunpack.c.l.b16 %v353
        %v700 = vunpack.c.h.b16 %v353
        %v701 = vunpack.c.l.b16 %v354
        %v702 = vunpack.c.h.b16 %v354
        %v703 = vunpack.c.l.b16 %v355
        %v704 = vunpack.c.l.b16 %v356
        %v705 = vunpack.c.h.b16 %v356
        %v706 = vunpack.c.l.b16 %v357
        %v707 = vunpack.c.h.b16 %v357
        %v708 = vunpack.c.l.b16 %v358
        %v709 = vunpack.c.h.b16 %v358
        %v710 = vunpack.c.l.b16 %v359
        %v711 = vunpack.c.h.b16 %v359
        %v712 = vunpack.c.l.b16 %v360
        %v713 = vunpack.c.l.b16 %v361
        %v714 = vunpack.c.h.b16 %v361
        %v715 = vunpack.c.l.b16 %v362
        %v716 = vunpack.c.h.b16 %v362
        %v717 = vunpack.c.l.b16 %v363
        %v718 = vunpack.c.h.b16 %v363
        %v719 = vunpack.c.l.b16 %v364
        %v720 = vunpack.c.h.b16 %v364
        %v721 = vunpack.c.l.b16 %v365
        %v722 = vunpack.c.l.b16 %v366
        %v723 = vunpack.c.h.b16 %v366
        %v724 = vunpack.c.l.b16 %v367
        %v725 = vunpack.c.h.b16 %v367
        %v726 = vunpack.c.l.b16 %v368
        %v727 = vunpack.c.h.b16 %v368
        %v728 = vunpack.c.l.b16 %v369
        %v729 = vunpack.c.h.b16 %v369
        %v730 = vunpack.c.l.b16 %v370
        %v731 = vunpack.c.l.b16 %v371
        %v732 = vunpack.c.h.b16 %v371
        %v733 = vunpack.c.l.b16 %v372
        %v734 = vunpack.c.h.b16 %v372
        %v735 = vunpack.c.l.b16 %v373
        %v736 = vunpack.c.h.b16 %v373
        %v737 = vunpack.c.l.b16 %v374
        %v738 = vunpack.c.h.b16 %v374
        %v739 = vunpack.c.l.b16 %v375
        %v740 = vunpack.c.l.b16 %v376
        %v741 = vunpack.c.h.b16 %v376
        %v742 = vunpack.c.l.b16 %v377
        %v743 = vunpack.c.h.b16 %v377
        %v744 = vunpack.c.l.b16 %v378
        %v745 = vunpack.c.h.b16 %v378
        %v746 = vunpack.c.l.b16 %v379
        %v747 = vunpack.c.h.b16 %v379
        %v748 = vunpack.c.l.b16 %v380
        %v749 = vunpack.c.l.b16 %v381
        %v750 = vunpack.c.h.b16 %v381
        %v751 = vunpack.c.l.b16 %v382
        %v752 = vunpack.c.h.b16 %v382
        %v753 = vunpack.c.l.b16 %v383
        %v754 = vunpack.c.h.b16 %v383
        %v755 = vunpack.c.l.b16 %v384
        %v756 = vunpack.c.h.b16 %v384
        %v757 = vunpack.c.l.b16 %v385
        %v758 = vunpack.c.l.b16 %v386
        %v759 = vunpack.c.h.b16 %v386
        %v760 = vunpack.c.l.b16 %v387
        %v761 = vunpack.c.h.b16 %v387
        %v762 = vunpack.c.l.b16 %v388
        %v763 = vunpack.c.h.b16 %v388
        %v764 = vunpack.c.l.b16 %v389
        %v765 = vunpack.c.h.b16 %v389
        %v766 = vunpack.c.l.b16 %v390
        %v767 = vunpack.c.l.b16 %v391
        %v768 = vunpack.c.h.b16 %v391
        %v769 = vunpack.c.l.b16 %v392
        %v770 = vunpack.c.h.b16 %v392
        %v771 = vunpack.c.l.b16 %v393
        %v772 = vunpack.c.h.b16 %v393
        %v773 = vunpack.c.l.b16 %v394
        %v774 = vunpack.c.h.b16 %v394
        %v775 = vunpack.c.l.b16 %v395
        %v776 = vunpack.c.l.b16 %v396
        %v777 = vunpack.c.h.b16 %v396
        %v778 = vunpack.c.l.b16 %v397
        %v779 = vunpack.c.h.b16 %v397
        %v780 = vunpack.c.l.b16 %v398
        %v781 = vunpack.c.h.b16 %v398
        %v782 = vunpack.c.l.b16 %v399
        %v783 = vunpack.c.h.b16 %v399
        %v784 = vunpack.c.l.b16 %v400
        %v785 = vunpack.c.l.b16 %v401
        %v786 = vunpack.c.h.b16 %v401
        %v787 = vunpack.c.l.b16 %v402
        %v788 = vunpack.c.h.b16 %v402
        %v789 = vunpack.c.l.b16 %v403
        %v790 = vunpack.c.h.b16 %v403
        %v791 = vunpack.c.l.b16 %v404
        %v792 = vunpack.c.h.b16 %v404
        %v793 = vunpack.c.l.b16 %v405
        %v794 = vunpack.c.l.b16 %v406
        %v795 = vunpack.c.h.b16 %v406
        %v796 = vunpack.c.l.b16 %v407
        %v797 = vunpack.c.h.b16 %v407
        %v798 = vunpack.c.l.b16 %v408
        %v799 = vunpack.c.h.b16 %v408
        %v800 = vunpack.c.l.b16 %v409
        %v801 = vunpack.c.h.b16 %v409
        %v802 = vunpack.c.l.b16 %v410
        %v803 = vunpack.c.l.b16 %v411
        %v804 = vunpack.c.h.b16 %v411
        %v805 = vunpack.c.l.b16 %v412
        %v806 = vunpack.c.h.b16 %v412
        %v807 = vunpack.c.l.b16 %v413
        %v808 = vunpack.c.h.b16 %v413
        %v809 = vunpack.c.l.b16 %v414
        %v810 = vunpack.c.h.b16 %v414
        %v811 = vunpack.c.l.b16 %v415
        %v812 = vunpack.c.l.b16 %v416
        %v813 = vunpack.c.h.b16 %v416
        %v814 = vunpack.c.l.b16 %v417
        %v815 = vunpack.c.h.b16 %v417
        %v816 = vunpack.c.l.b16 %v418
        %v817 = vunpack.c.h.b16 %v418
        %v818 = vunpack.c.l.b16 %v419
        %v819 = vunpack.c.h.b16 %v419
        %v820 = vunpack.c.l.b16 %v420
        %v821 = vunpack.c.l.b16 %v421
        %v822 = vunpack.c.h.b16 %v421
        %v823 = vunpack.c.l.b16 %v422
        %v824 = vunpack.c.h.b16 %v422
        %v825 = vunpack.c.l.b16 %v423
        %v826 = vunpack.c.h.b16 %v423
        %v827 = vunpack.c.l.b16 %v424
        %v828 = vunpack.c.h.b16 %v424
        %v829 = vunpack.c.l.b16 %v425
        %v830 = vunpack.c.l.b16 %v426
        %v831 = vunpack.c.h.b16 %v426
        %v832 = vunpack.c.l.b16 %v427
        %v833 = vunpack.c.h.b16 %v427
        %v834 = vunpack.c.l.b16 %v428
        %v835 = vunpack.c.h.b16 %v428
        %v836 = vunpack.c.l.b16 %v429
        %v837 = vunpack.c.h.b16 %v429
        %v838 = vunpack.c.l.b16 %v430
        %v839 = vunpack.c.l.b16 %v431
        %v840 = vunpack.c.h.b16 %v431
        %v841 = vunpack.c.l.b16 %v432
        %v842 = vunpack.c.h.b16 %v432
        %v843 = vunpack.c.l.b16 %v433
        %v844 = vunpack.c.h.b16 %v433
        %v845 = vunpack.c.l.b16 %v434
        %v846 = vunpack.c.h.b16 %v434
        %v847 = vunpack.c.l.b16 %v435
        %v848 = vunpack.c.l.b16 %v436
        %v849 = vunpack.c.h.b16 %v436
        %v850 = vunpack.c.l.b16 %v437
        %v851 = vunpack.c.h.b16 %v437
        %v852 = vunpack.c.l.b16 %v438
        %v853 = vunpack.c.h.b16 %v438
        %v854 = vunpack.c.l.b16 %v439
        %v855 = vunpack.c.h.b16 %v439
        %v856 = vunpack.c.l.b16 %v440
        %v857 = vunpack.c.l.b16 %v441
        %v858 = vunpack.c.h.b16 %v441
        %v859 = vunpack.c.l.b16 %v442
        %v860 = vunpack.c.h.b16 %v442
        %v861 = vunpack.c.l.b16 %v443
        %v862 = vunpack.c.h.b16 %v443
        %v863 = vunpack.c.l.b16 %v444
        %v864 = vunpack.c.h.b16 %v444
        %v865 = vunpack.c.l.b16 %v445
        %v866 = vunpack.c.l.b16 %v446
        %v867 = vunpack.c.h.b16 %v446
        %v868 = vunpack.c.l.b16 %v447
        %v869 = vunpack.c.h.b16 %v447
        %v870 = vunpack.c.l.b16 %v448
        %v871 = vunpack.c.h.b16 %v448
        %v872 = vunpack.c.l.b16 %v449
        %v873 = vunpack.c.h.b16 %v449
        %v874 = vunpack.c.l.b16 %v450
        %v875 = vunpack.c.l.b16 %v451
        %v876 = vunpack.c.h.b16 %v451
        %v877 = vunpack.c.l.b16 %v452
        %v878 = vunpack.c.h.b16 %v452
        %v879 = vunpack.c.l.b16 %v453
        %v880 = vunpack.c.h.b16 %v453
        %v881 = vunpack.c.l.b16 %v454
        %v882 = vunpack.c.h.b16 %v454
        %v883 = vunpack.c.l.b16 %v455
        %v884 = vunpack.c.l.b16 %v456
        %v885 = vunpack.c.h.b16 %v456
        %v886 = vunpack.c.l.b16 %v457
        %v887 = vunpack.c.h.b16 %v457
        %v888 = vunpack.c.l.b16 %v458
        %v889 = vunpack.c.h.b16 %v458
        %v890 = vunpack.c.l.b16 %v459
        %v891 = vunpack.c.h.b16 %v459
        %v892 = vunpack.c.l.b16 %v460
        %v893 = vunpack.c.l.b16 %v461
        %v894 = vunpack.c.h.b16 %v461
        %v895 = vunpack.c.l.b16 %v462
        %v896 = vunpack.c.h.b16 %v462
        %v897 = vunpack.c.l.b16 %v463
        %v898 = vunpack.c.h.b16 %v463
        %v899 = vunpack.c.l.b16 %v464
        %v900 = vunpack.c.h.b16 %v464
        %v901 = vunpack.c.l.b16 %v465
        %v902 = vunpack.c.l.b16 %v466
        %v903 = vunpack.c.h.b16 %v466
        %v904 = vunpack.c.l.b16 %v467
        %v905 = vunpack.c.h.b16 %v467
        %v906 = vunpack.c.l.b16 %v468
        %v907 = vunpack.c.h.b16 %v468
        %v908 = vunpack.c.l.b16 %v469
        %v909 = vunpack.c.h.b16 %v469
        %v910 = vunpack.c.l.b16 %v470
        %v911 = vunpack.c.l.b16 %v471
        %v912 = vunpack.c.h.b16 %v471
        %v913 = vunpack.c.l.b16 %v472
        %v914 = vunpack.c.h.b16 %v472
        %v915 = vunpack.c.l.b16 %v473
        %v916 = vunpack.c.h.b16 %v473
        %v917 = vunpack.c.l.b16 %v474
        %v918 = vunpack.c.h.b16 %v474
        %v919 = vunpack.c.l.b16 %v475
        %v920 = vunpack.c.l.b16 %v476
        %v921 = vunpack.c.h.b16 %v476
        %v922 = vunpack.c.l.b16 %v477
        %v923 = vunpack.c.h.b16 %v477
        %v924 = vunpack.c.l.b16 %v478
        %v925 = vunpack.c.h.b16 %v478
        %v926 = vunpack.c.l.b16 %v479
        %v927 = vunpack.c.h.b16 %v479
        %v928 = vunpack.c.l.b16 %v480
        %v929 = vpack.c.b16 %v650, %v641
        %v930 = vpack.c.b16 %v651, %v642
        %v931 = vpack.c.b16 %v652, %v643
        %v932 = vpack.c.b16 %v653, %v644
        %v933 = vpack.c.b16 %v654, %v645
        %v934 = vpack.c.b16 %v655, %v646
        %v935 = vpack.c.b16 %v656, %v647
        %v936 = vpack.c.b16 %v657, %v648
        %v937 = vpack.c.b16 %v658, %v649
        %v938 = vpack.c.b16 %v668, %v659
        %v939 = vpack.c.b16 %v669, %v660
        %v940 = vpack.c.b16 %v670, %v661
        %v941 = vpack.c.b16 %v671, %v662
        %v942 = vpack.c.b16 %v672, %v663
        %v943 = vpack.c.b16 %v673, %v664
        %v944 = vpack.c.b16 %v674, %v665
        %v945 = vpack.c.b16 %v675, %v666
        %v946 = vpack.c.b16 %v676, %v667
        %v947 = vpack.c.b16 %v686, %v677
        %v948 = vpack.c.b16 %v687, %v678
        %v949 = vpack.c.b16 %v688, %v679
        %v950 = vpack.c.b16 %v689, %v680
        %v951 = vpack.c.b16 %v690, %v681
        %v952 = vpack.c.b16 %v691, %v682
        %v953 = vpack.c.b16 %v692, %v683
        %v954 = vpack.c.b16 %v693, %v684
        %v955 = vpack.c.b16 %v694, %v685
        %v956 = vpack.c.b16 %v704, %v695
        %v957 = vpack.c.b16 %v705, %v696
        %v958 = vpack.c.b16 %v706, %v697
        %v959 = vpack.c.b16 %v707, %v698
        %v960 = vpack.c.b16 %v708, %v699
        %v961 = vpack.c.b16 %v709, %v700
        %v962 = vpack.c.b16 %v710, %v701
        %v963 = vpack.c.b16 %v711, %v702
        %v964 = vpack.c.b16 %v712, %v703
        %v965 = vpack.c.b16 %v722, %v713
        %v966 = vpack.c.b16 %v723, %v714
        %v967 = vpack.c.b16 %v724, %v715
        %v968 = vpack.c.b16 %v725, %v716
        %v969 = vpack.c.b16 %v726, %v717
        %v970 = vpack.c.b16 %v727, %v718
        %v971 = vpack.c.b16 %v728, %v719
        %v972 = vpack.c.b16 %v729, %v720
        %v973 = vpack.c.b16 %v730, %v721
        %v974 = vpack.c.b16 %v740, %v731
        %v975 = vpack.c.b16 %v741, %v732
        %v976 = vpack.c.b16 %v742, %v733
        %v977 = vpack.c.b16 %v743, %v734
        %v978 = vpack.c.b16 %v744, %v735
        %v979 = vpack.c.b16 %v745, %v736
        %v980 = vpack.c.b16 %v746, %v737
        %v981 = vpack.c.b16 %v747, %v738
        %v982 = vpack.c.b16 %v748, %v739
        %v983 = vpack.c.b16 %v758, %v749
        %v984 = vpack.c.b16 %v759, %v750
        %v985 = vpack.c.b16 %v760, %v751
        %v986 = vpack.c.b16 %v761, %v752
        %v987 = vpack.c.b16 %v762, %v753
        %v988 = vpack.c.b16 %v763, %v754
        %v989 = vpack.c.b16 %v764, %v755
        %v990 = vpack.c.b16 %v765, %v756
        %v991 = vpack.c.b16 %v766, %v757
        %v992 = vpack.c.b16 %v776, %v767
        %v993 = vpack.c.b16 %v777, %v768
        %v994 = vpack.c.b16 %v778, %v769
        %v995 = vpack.c.b16 %v779, %v770
        %v996 = vpack.c.b16 %v780, %v771
        %v997 = vpack.c.b16 %v781, %v772
        %v998 = vpack.c.b16 %v782, %v773
        %v999 = vpack.c.b16 %v783, %v774
        %v1000 = vpack.c.b16 %v784, %v775
        %v1001 = vpack.c.b16 %v794, %v785
        %v1002 = vpack.c.b16 %v795, %v786
        %v1003 = vpack.c.b16 %v796, %v787
        %v1004 = vpack.c.b16 %v797, %v788
        %v1005 = vpack.c.b16 %v798, %v789
        %v1006 = vpack.c.b16 %v799, %v790
        %v1007 = vpack.c.b16 %v800, %v791
        %v1008 = vpack.c.b16 %v801, %v792
        %v1009 = vpack.c.b16 %v802, %v793
        %v1010 = vpack.c.b16 %v812, %v803
        %v1011 = vpack.c.b16 %v813, %v804
        %v1012 = vpack.c.b16 %v814, %v805
        %v1013 = vpack.c.b16 %v815, %v806
        %v1014 = vpack.c.b16 %v816, %v807
        %v1015 = vpack.c.b16 %v817, %v808
        %v1016 = vpack.c.b16 %v818, %v809
        %v1017 = vpack.c.b16 %v819, %v810
        %v1018 = vpack.c.b16 %v820, %v811
        %v1019 = vpack.c.b16 %v830, %v821
        %v1020 = vpack.c.b16 %v831, %v822
        %v1021 = vpack.c.b16 %v832, %v823
        %v1022 = vpack.c.b16 %v833, %v824
        %v1023 = vpack.c.b16 %v834, %v825
        %v1024 = vpack.c.b16 %v835, %v826
        %v1025 = vpack.c.b16 %v836, %v827
        %v1026 = vpack.c.b16 %v837, %v828
        %v1027 = vpack.c.b16 %v838, %v829
        %v1028 = vpack.c.b16 %v848, %v839
        %v1029 = vpack.c.b16 %v849, %v840
        %v1030 = vpack.c.b16 %v850, %v841
        %v1031 = vpack.c.b16 %v851, %v842
        %v1032 = vpack.c.b16 %v852, %v843
        %v1033 = vpack.c.b16 %v853, %v844
        %v1034 = vpack.c.b16 %v854, %v845
        %v1035 = vpack.c.b16 %v855, %v846
        %v1036 = vpack.c.b16 %v856, %v847
        %v1037 = vpack.c.b16 %v866, %v857
        %v1038 = vpack.c.b16 %v867, %v858
        %v1039 = vpack.c.b16 %v868, %v859
        %v1040 = vpack.c.b16 %v869, %v860
        %v1041 = vpack.c.b16 %v870, %v861
        %v1042 = vpack.c.b16 %v871, %v862
        %v1043 = vpack.c.b16 %v872, %v863
        %v1044 = vpack.c.b16 %v873, %v864
        %v1045 = vpack.c.b16 %v874, %v865
        %v1046 = vpack.c.b16 %v884, %v875
        %v1047 = vpack.c.b16 %v885, %v876
        %v1048 = vpack.c.b16 %v886, %v877
        %v1049 = vpack.c.b16 %v887, %v878
        %v1050 = vpack.c.b16 %v888, %v879
        %v1051 = vpack.c.b16 %v889, %v880
        %v1052 = vpack.c.b16 %v890, %v881
        %v1053 = vpack.c.b16 %v891, %v882
        %v1054 = vpack.c.b16 %v892, %v883
        %v1055 = vpack.c.b16 %v902, %v893
        %v1056 = vpack.c.b16 %v903, %v894
        %v1057 = vpack.c.b16 %v904, %v895
        %v1058 = vpack.c.b16 %v905, %v896
        %v1059 = vpack.c.b16 %v906, %v897
        %v1060 = vpack.c.b16 %v907, %v898
        %v1061 = vpack.c.b16 %v908, %v899
        %v1062 = vpack.c.b16 %v909, %v900
        %v1063 = vpack.c.b16 %v910, %v901
        %v1064 = vpack.c.b16 %v920, %v911
        %v1065 = vpack.c.b16 %v921, %v912
        %v1066 = vpack.c.b16 %v922, %v913
        %v1067 = vpack.c.b16 %v923, %v914
        %v1068 = vpack.c.b16 %v924, %v915
        %v1069 = vpack.c.b16 %v925, %v916
        %v1070 = vpack.c.b16 %v926, %v917
        %v1071 = vpack.c.b16 %v927, %v918
        %v1072 = vpack.c.b16 %v928, %v919
        %1217 = vmatprep.subr.bf16.mxu0 %v993
        %1218 = vmatpush1.bf16.msra.mxu0 %v992
        %1219 = vmatprep.subr.bf16.mxu0 %v984
        %1220 = vmatpush1.bf16.msra.mxu0 %v983
        %1221 = vmatprep.subr.bf16.mxu0 %v975
        %1222 = vmatpush1.bf16.msra.mxu0 %v974
        %1223 = vmatprep.subr.bf16.mxu0 %v966
        %1224 = vmatpush1.bf16.msra.mxu0 %v965
        %1225 = vmatprep.subr.bf16.mxu0 %v957
        %1226 = vmatpush1.bf16.msra.mxu0 %v956
        %1227 = vmatprep.subr.bf16.mxu0 %v948
        %1228 = vmatpush1.bf16.msra.mxu0 %v947
        %1229 = vmatprep.subr.bf16.mxu0 %v939
        %1230 = vmatpush1.bf16.msra.mxu0 %v938
        %1231 = vmatprep.subr.bf16.mxu0 %v930
        %1232 = vmatpush1.bf16.msra.mxu0 %v929
        %1233 = vmatprep.subr.bf16.mxu0 %v1065
        %1234 = vmatpush2.bf16.msra.mxu0 %v1064
        %1235 = vmatprep.subr.bf16.mxu0 %v1056
        %1236 = vmatpush2.bf16.msra.mxu0 %v1055
        %1237 = vmatprep.subr.bf16.mxu0 %v1047
        %1238 = vmatpush2.bf16.msra.mxu0 %v1046
        %1239 = vmatprep.subr.bf16.mxu0 %v1038
        %1240 = vmatpush2.bf16.msra.mxu0 %v1037
        %1241 = vmatprep.subr.bf16.mxu0 %v1029
        %1242 = vmatpush2.bf16.msra.mxu0 %v1028
        %1243 = vmatprep.subr.bf16.mxu0 %v1020
        %1244 = vmatpush2.bf16.msra.mxu0 %v1019
        %1245 = vmatprep.subr.bf16.mxu0 %v1011
        %1246 = vmatpush2.bf16.msra.mxu0 %v1010
        %1247 = vmatprep.subr.bf16.mxu0 %v1002
        %1248 = vmatpush2.bf16.msra.mxu0 %v1001
        %1249 = vmatprep.mubr.bf16.mxu0 %v320
        %1250 = vmatmul.mubr.bf16.gmra.mxu0 %v319
        %v1251 = vpop.f32.mrf.mxu0
        %v1252 = vadd.f32 0.0, %v1251
        %v1253 = vpop.f32.mrf.mxu0
        %v1254 = vadd.f32 0.0, %v1253
        %v1255 = vpop.f32.mrf.mxu0
        %v1256 = vpop.f32.mrf.mxu0
        %1257 = vdwg.mxu0
        %1258 = vmatprep.subr.bf16.mxu0 %v995
        %1259 = vmatpush1.bf16.msra.mxu0 %v994
        %1260 = vmatprep.subr.bf16.mxu0 %v986
        %1261 = vmatpush1.bf16.msra.mxu0 %v985
        %1262 = vmatprep.subr.bf16.mxu0 %v977
        %1263 = vmatpush1.bf16.msra.mxu0 %v976
        %1264 = vmatprep.subr.bf16.mxu0 %v968
        %1265 = vmatpush1.bf16.msra.mxu0 %v967
        %1266 = vmatprep.subr.bf16.mxu0 %v959
        %1267 = vmatpush1.bf16.msra.mxu0 %v958
        %1268 = vmatprep.subr.bf16.mxu0 %v950
        %1269 = vmatpush1.bf16.msra.mxu0 %v949
        %1270 = vmatprep.subr.bf16.mxu0 %v941
        %1271 = vmatpush1.bf16.msra.mxu0 %v940
        %1272 = vmatprep.subr.bf16.mxu0 %v932
        %1273 = vmatpush1.bf16.msra.mxu0 %v931
        %1274 = vmatprep.subr.bf16.mxu0 %v1067
        %1275 = vmatpush2.bf16.msra.mxu0 %v1066
        %1276 = vmatprep.subr.bf16.mxu0 %v1058
        %1277 = vmatpush2.bf16.msra.mxu0 %v1057
        %1278 = vmatprep.subr.bf16.mxu0 %v1049
        %1279 = vmatpush2.bf16.msra.mxu0 %v1048
        %1280 = vmatprep.subr.bf16.mxu0 %v1040
        %1281 = vmatpush2.bf16.msra.mxu0 %v1039
        %1282 = vmatprep.subr.bf16.mxu0 %v1031
        %1283 = vmatpush2.bf16.msra.mxu0 %v1030
        %1284 = vmatprep.subr.bf16.mxu0 %v1022
        %1285 = vmatpush2.bf16.msra.mxu0 %v1021
        %1286 = vmatprep.subr.bf16.mxu0 %v1013
        %1287 = vmatpush2.bf16.msra.mxu0 %v1012
        %1288 = vmatprep.subr.bf16.mxu0 %v1004
        %1289 = vmatpush2.bf16.msra.mxu0 %v1003
        %1290 = vmatprep.mubr.bf16.mxu0 %v320
        %1291 = vmatmul.mubr.bf16.gmra.mxu0 %v319
        %v1292 = vpop.f32.mrf.mxu0
        %v1293 = vadd.f32 0.0, %v1292
        %v1294 = vpop.f32.mrf.mxu0
        %v1295 = vadd.f32 0.0, %v1294
        %v1296 = vpop.f32.mrf.mxu0
        %v1297 = vpop.f32.mrf.mxu0
        %1298 = vdwg.mxu0
        %1299 = vmatprep.subr.bf16.mxu0 %v997
        %1300 = vmatpush1.bf16.msra.mxu0 %v996
        %1301 = vmatprep.subr.bf16.mxu0 %v988
        %1302 = vmatpush1.bf16.msra.mxu0 %v987
        %1303 = vmatprep.subr.bf16.mxu0 %v979
        %1304 = vmatpush1.bf16.msra.mxu0 %v978
        %1305 = vmatprep.subr.bf16.mxu0 %v970
        %1306 = vmatpush1.bf16.msra.mxu0 %v969
        %1307 = vmatprep.subr.bf16.mxu0 %v961
        %1308 = vmatpush1.bf16.msra.mxu0 %v960
        %1309 = vmatprep.subr.bf16.mxu0 %v952
        %1310 = vmatpush1.bf16.msra.mxu0 %v951
        %1311 = vmatprep.subr.bf16.mxu0 %v943
        %1312 = vmatpush1.bf16.msra.mxu0 %v942
        %1313 = vmatprep.subr.bf16.mxu0 %v934
        %1314 = vmatpush1.bf16.msra.mxu0 %v933
        %1315 = vmatprep.subr.bf16.mxu0 %v1069
        %1316 = vmatpush2.bf16.msra.mxu0 %v1068
        %1317 = vmatprep.subr.bf16.mxu0 %v1060
        %1318 = vmatpush2.bf16.msra.mxu0 %v1059
        %1319 = vmatprep.subr.bf16.mxu0 %v1051
        %1320 = vmatpush2.bf16.msra.mxu0 %v1050
        %1321 = vmatprep.subr.bf16.mxu0 %v1042
        %1322 = vmatpush2.bf16.msra.mxu0 %v1041
        %1323 = vmatprep.subr.bf16.mxu0 %v1033
        %1324 = vmatpush2.bf16.msra.mxu0 %v1032
        %1325 = vmatprep.subr.bf16.mxu0 %v1024
        %1326 = vmatpush2.bf16.msra.mxu0 %v1023
        %1327 = vmatprep.subr.bf16.mxu0 %v1015
        %1328 = vmatpush2.bf16.msra.mxu0 %v1014
        %1329 = vmatprep.subr.bf16.mxu0 %v1006
        %1330 = vmatpush2.bf16.msra.mxu0 %v1005
        %1331 = vmatprep.mubr.bf16.mxu0 %v320
        %1332 = vmatmul.mubr.bf16.gmra.mxu0 %v319
        %v1333 = vpop.f32.mrf.mxu0
        %v1334 = vadd.f32 0.0, %v1333
        %v1335 = vpop.f32.mrf.mxu0
        %v1336 = vadd.f32 0.0, %v1335
        %v1337 = vpop.f32.mrf.mxu0
        %v1338 = vpop.f32.mrf.mxu0
        %1339 = vdwg.mxu0
        %1340 = vmatprep.subr.bf16.mxu0 %v999
        %1341 = vmatpush1.bf16.msra.mxu0 %v998
        %1342 = vmatprep.subr.bf16.mxu0 %v990
        %1343 = vmatpush1.bf16.msra.mxu0 %v989
        %1344 = vmatprep.subr.bf16.mxu0 %v981
        %1345 = vmatpush1.bf16.msra.mxu0 %v980
        %1346 = vmatprep.subr.bf16.mxu0 %v972
        %1347 = vmatpush1.bf16.msra.mxu0 %v971
        %1348 = vmatprep.subr.bf16.mxu0 %v963
        %1349 = vmatpush1.bf16.msra.mxu0 %v962
        %1350 = vmatprep.subr.bf16.mxu0 %v954
        %1351 = vmatpush1.bf16.msra.mxu0 %v953
        %1352 = vmatprep.subr.bf16.mxu0 %v945
        %1353 = vmatpush1.bf16.msra.mxu0 %v944
        %1354 = vmatprep.subr.bf16.mxu0 %v936
        %1355 = vmatpush1.bf16.msra.mxu0 %v935
        %1356 = vmatprep.subr.bf16.mxu0 %v1071
        %1357 = vmatpush2.bf16.msra.mxu0 %v1070
        %1358 = vmatprep.subr.bf16.mxu0 %v1062
        %1359 = vmatpush2.bf16.msra.mxu0 %v1061
        %1360 = vmatprep.subr.bf16.mxu0 %v1053
        %1361 = vmatpush2.bf16.msra.mxu0 %v1052
        %1362 = vmatprep.subr.bf16.mxu0 %v1044
        %1363 = vmatpush2.bf16.msra.mxu0 %v1043
        %1364 = vmatprep.subr.bf16.mxu0 %v1035
        %1365 = vmatpush2.bf16.msra.mxu0 %v1034
        %1366 = vmatprep.subr.bf16.mxu0 %v1026
        %1367 = vmatpush2.bf16.msra.mxu0 %v1025
        %1368 = vmatprep.subr.bf16.mxu0 %v1017
        %1369 = vmatpush2.bf16.msra.mxu0 %v1016
        %1370 = vmatprep.subr.bf16.mxu0 %v1008
        %1371 = vmatpush2.bf16.msra.mxu0 %v1007
        %1372 = vmatprep.mubr.bf16.mxu0 %v320
        %1373 = vmatmul.mubr.bf16.gmra.mxu0 %v319
        %v1374 = vpop.f32.mrf.mxu0
        %v1375 = vadd.f32 0.0, %v1374
        %v1376 = vpop.f32.mrf.mxu0
        %v1377 = vadd.f32 0.0, %v1376
        %v1378 = vpop.f32.mrf.mxu0
        %v1379 = vpop.f32.mrf.mxu0
        %1380 = vdwg.mxu0
        %1381 = vmatprep.subr.bf16.mxu0 0
        %1382 = vmatpush1.bf16.msra.mxu0 %v1000
        %1383 = vmatprep.subr.bf16.mxu0 0
        %1384 = vmatpush1.bf16.msra.mxu0 %v991
        %1385 = vmatprep.subr.bf16.mxu0 0
        %1386 = vmatpush1.bf16.msra.mxu0 %v982
        %1387 = vmatprep.subr.bf16.mxu0 0
        %1388 = vmatpush1.bf16.msra.mxu0 %v973
        %1389 = vmatprep.subr.bf16.mxu0 0
        %1390 = vmatpush1.bf16.msra.mxu0 %v964
        %1391 = vmatprep.subr.bf16.mxu0 0
        %1392 = vmatpush1.bf16.msra.mxu0 %v955
        %1393 = vmatprep.subr.bf16.mxu0 0
        %1394 = vmatpush1.bf16.msra.mxu0 %v946
        %1395 = vmatprep.subr.bf16.mxu0 0
        %1396 = vmatpush1.bf16.msra.mxu0 %v937
        %1397 = vmatprep.subr.bf16.mxu0 0
        %1398 = vmatpush2.bf16.msra.mxu0 %v1072
        %1399 = vmatprep.subr.bf16.mxu0 0
        %1400 = vmatpush2.bf16.msra.mxu0 %v1063
        %1401 = vmatprep.subr.bf16.mxu0 0
        %1402 = vmatpush2.bf16.msra.mxu0 %v1054
        %1403 = vmatprep.subr.bf16.mxu0 0
        %1404 = vmatpush2.bf16.msra.mxu0 %v1045
        %1405 = vmatprep.subr.bf16.mxu0 0
        %1406 = vmatpush2.bf16.msra.mxu0 %v1036
        %1407 = vmatprep.subr.bf16.mxu0 0
        %1408 = vmatpush2.bf16.msra.mxu0 %v1027
        %1409 = vmatprep.subr.bf16.mxu0 0
        %1410 = vmatpush2.bf16.msra.mxu0 %v1018
        %1411 = vmatprep.subr.bf16.mxu0 0
        %1412 = vmatpush2.bf16.msra.mxu0 %v1009
        %1413 = vmatprep.mubr.bf16.mxu0 %v320
        %1414 = vmatmul.mubr.bf16.gmra.mxu0 %v319
        %v1415 = vpop.f32.mrf.mxu0
        %v1416 = vadd.f32 0.0, %v1415
        %v1417 = vpop.f32.mrf.mxu0
        %v1418 = vpop.f32.mrf.mxu0
        %v1419 = vpop.f32.mrf.mxu0
        %1420 = vdwg.mxu0
        %v1421 = vadd.f32 %v308, %v1252
        %v1422 = vadd.f32 %v309, %v1254
        %v1423 = vadd.f32 %v310, %v1293
        %v1424 = vadd.f32 %v311, %v1295
        %v1425 = vadd.f32 %v312, %v1334
        %v1426 = vadd.f32 %v313, %v1336
        %v1427 = vadd.f32 %v314, %v1375
        %v1428 = vadd.f32 %v315, %v1377
        %v1429 = vadd.f32 %v316, %v1416
        %1430 = vst [vmem:[#allocation2] sm:$0xff] %v1421
        %1431 = vst [vmem:[#allocation2 + $0x8] sm:$0xff] %v1422
        %1432 = vst [vmem:[#allocation2 + $0x10] sm:$0xff] %v1423
        %1433 = vst [vmem:[#allocation2 + $0x18] sm:$0xff] %v1424
        %1434 = vst [vmem:[#allocation2 + $0x20] sm:$0xff] %v1425
        %1435 = vst [vmem:[#allocation2 + $0x28] sm:$0xff] %v1426
        %1436 = vst [vmem:[#allocation2 + $0x30] sm:$0xff] %v1427
        %1437 = vst [vmem:[#allocation2 + $0x38] sm:$0xff] %v1428
        %1438 = vst [vmem:[#allocation2 + $0x40] sm:$0xff] %v1429
        %p1439 = scmp.eq.s32.totalorder %s21, 1
        // Predicated region
        $region61: #{mlp_forward.1} parent=39 // pred_check
          %p1440 = pneg %p1439
        $region62: #{mlp_forward.1} parent=39 // pred_check_branch
          %1442 = sbr.rel (%p1440) target = $region64
        $region63: #{mlp_forward.1} parent=39 // pred_region
          %v1443 = vld [vmem:[#allocation2] sm:$0xff]
          %v1444 = vld [vmem:[#allocation2 + $0x8] sm:$0xff]
          %v1445 = vld [vmem:[#allocation2 + $0x10] sm:$0xff]
          %v1446 = vld [vmem:[#allocation2 + $0x18] sm:$0xff]
          %v1447 = vld [vmem:[#allocation2 + $0x20] sm:$0xff]
          %v1448 = vld [vmem:[#allocation2 + $0x28] sm:$0xff]
          %v1449 = vld [vmem:[#allocation2 + $0x30] sm:$0xff]
          %v1450 = vld [vmem:[#allocation2 + $0x38] sm:$0xff]
          %v1451 = vld [vmem:[#allocation2 + $0x40] sm:$0xff]
          %v1452 = vld [vmem:[#allocation5] sm:$0xff]
          %v1453 = vld [vmem:[#allocation5 + $0x8] sm:$0x1]
          %v1456 = vlaneseq
          %v1457 = vshrl.u32 %v1456, 7
          %v1458 = vsub.s32 0, %v1457
          %v1459 = vrot.slane %v1452, %v1458
          %v1460 = vlaneseq
          %v1461 = vshrl.u32 %v1460, 7
          %v1462 = vsub.s32 1, %v1461
          %v1463 = vrot.slane %v1452, %v1462
          %v1464 = vlaneseq
          %v1465 = vshrl.u32 %v1464, 7
          %v1466 = vsub.s32 2, %v1465
          %v1467 = vrot.slane %v1452, %v1466
          %v1468 = vlaneseq
          %v1469 = vshrl.u32 %v1468, 7
          %v1470 = vsub.s32 3, %v1469
          %v1471 = vrot.slane %v1452, %v1470
          %v1472 = vlaneseq
          %v1473 = vshrl.u32 %v1472, 7
          %v1474 = vsub.s32 4, %v1473
          %v1475 = vrot.slane %v1452, %v1474
          %v1476 = vlaneseq
          %v1477 = vshrl.u32 %v1476, 7
          %v1478 = vsub.s32 5, %v1477
          %v1479 = vrot.slane %v1452, %v1478
          %v1480 = vlaneseq
          %v1481 = vshrl.u32 %v1480, 7
          %v1482 = vsub.s32 6, %v1481
          %v1483 = vrot.slane %v1452, %v1482
          %v1484 = vlaneseq
          %v1485 = vshrl.u32 %v1484, 7
          %v1486 = vsub.s32 7, %v1485
          %v1487 = vrot.slane %v1452, %v1486
          %v1488 = vlaneseq
          %v1489 = vshrl.u32 %v1488, 7
          %v1490 = vsub.s32 0, %v1489
          %v1491 = vrot.slane %v1453, %v1490
          %v1501 = vadd.f32 %v1443, %v1459
          %v1502 = vadd.f32 %v1444, %v1463
          %v1503 = vadd.f32 %v1445, %v1467
          %v1504 = vadd.f32 %v1446, %v1471
          %v1505 = vadd.f32 %v1447, %v1475
          %v1506 = vadd.f32 %v1448, %v1479
          %v1507 = vadd.f32 %v1449, %v1483
          %v1508 = vadd.f32 %v1450, %v1487
          %v1509 = vadd.f32 %v1451, %v1491
          %v1510 = vmax.f32 %v1501, 0.0
          %v1511 = vmax.f32 %v1502, 0.0
          %v1512 = vmax.f32 %v1503, 0.0
          %v1513 = vmax.f32 %v1504, 0.0
          %v1514 = vmax.f32 %v1505, 0.0
          %v1515 = vmax.f32 %v1506, 0.0
          %v1516 = vmax.f32 %v1507, 0.0
          %v1517 = vmax.f32 %v1508, 0.0
          %v1518 = vmax.f32 %v1509, 0.0
          %v1519 = vld [vmem:[#allocation7] sm:$0xf]
          %v1520 = vld [vmem:[#allocation7 + $0x4] sm:$0xf]
          %v1521 = vld [vmem:[#allocation7 + $0x8] sm:$0xf]
          %v1522 = vld [vmem:[#allocation7 + $0xc] sm:$0xf]
          %v1523 = vld [vmem:[#allocation7 + $0x10] sm:$0xf]
          %v1524 = vld [vmem:[#allocation7 + $0x14] sm:$0xf]
          %v1525 = vld [vmem:[#allocation7 + $0x18] sm:$0xf]
          %v1526 = vld [vmem:[#allocation7 + $0x1c] sm:$0xf]
          %v1527 = vld [vmem:[#allocation7 + $0x20] sm:$0xf]
          %v1528 = vld [vmem:[#allocation7 + $0x24] sm:$0xf]
          %v1529 = vld [vmem:[#allocation7 + $0x28] sm:$0xf]
          %v1530 = vld [vmem:[#allocation7 + $0x2c] sm:$0xf]
          %v1531 = vld [vmem:[#allocation7 + $0x30] sm:$0xf]
          %v1532 = vld [vmem:[#allocation7 + $0x34] sm:$0xf]
          %v1533 = vld [vmem:[#allocation7 + $0x38] sm:$0xf]
          %v1534 = vld [vmem:[#allocation7 + $0x3c] sm:$0xf]
          %v1535 = vld [vmem:[#allocation7 + $0x40] sm:$0xf]
          %v1536 = vld [vmem:[#allocation7 + $0x44] sm:$0xf]
          %v1537 = vld [vmem:[#allocation7 + $0x48] sm:$0xf]
          %v1538 = vld [vmem:[#allocation7 + $0x4c] sm:$0xf]
          %v1539 = vld [vmem:[#allocation7 + $0x50] sm:$0xf]
          %v1540 = vld [vmem:[#allocation7 + $0x54] sm:$0xf]
          %v1541 = vld [vmem:[#allocation7 + $0x58] sm:$0xf]
          %v1542 = vld [vmem:[#allocation7 + $0x5c] sm:$0xf]
          %v1543 = vld [vmem:[#allocation7 + $0x60] sm:$0xf]
          %v1544 = vld [vmem:[#allocation7 + $0x64] sm:$0xf]
          %v1545 = vld [vmem:[#allocation7 + $0x68] sm:$0xf]
          %v1546 = vld [vmem:[#allocation7 + $0x6c] sm:$0xf]
          %v1547 = vld [vmem:[#allocation7 + $0x70] sm:$0xf]
          %v1548 = vld [vmem:[#allocation7 + $0x74] sm:$0xf]
          %v1549 = vld [vmem:[#allocation7 + $0x78] sm:$0xf]
          %v1550 = vld [vmem:[#allocation7 + $0x7c] sm:$0xf]
          %v1551 = vld [vmem:[#allocation7 + $0x80] sm:$0xf]
          %v1552 = vld [vmem:[#allocation7 + $0x84] sm:$0xf]
          %v1553 = vld [vmem:[#allocation7 + $0x88] sm:$0xf]
          %v1554 = vld [vmem:[#allocation7 + $0x8c] sm:$0xf]
          %v1555 = vld [vmem:[#allocation7 + $0x90] sm:$0xf]
          %v1556 = vld [vmem:[#allocation7 + $0x94] sm:$0xf]
          %v1557 = vld [vmem:[#allocation7 + $0x98] sm:$0xf]
          %v1558 = vld [vmem:[#allocation7 + $0x9c] sm:$0xf]
          %v1559 = vld [vmem:[#allocation7 + $0xa0] sm:$0xf]
          %v1560 = vld [vmem:[#allocation7 + $0xa4] sm:$0xf]
          %v1561 = vld [vmem:[#allocation7 + $0xa8] sm:$0xf]
          %v1562 = vld [vmem:[#allocation7 + $0xac] sm:$0xf]
          %v1563 = vld [vmem:[#allocation7 + $0xb0] sm:$0xf]
          %v1564 = vld [vmem:[#allocation7 + $0xb4] sm:$0xf]
          %v1565 = vld [vmem:[#allocation7 + $0xb8] sm:$0xf]
          %v1566 = vld [vmem:[#allocation7 + $0xbc] sm:$0xf]
          %v1567 = vld [vmem:[#allocation7 + $0xc0] sm:$0xf]
          %v1568 = vld [vmem:[#allocation7 + $0xc4] sm:$0xf]
          %v1569 = vld [vmem:[#allocation7 + $0xc8] sm:$0xf]
          %v1570 = vld [vmem:[#allocation7 + $0xcc] sm:$0xf]
          %v1571 = vld [vmem:[#allocation7 + $0xd0] sm:$0xf]
          %v1572 = vld [vmem:[#allocation7 + $0xd4] sm:$0xf]
          %v1573 = vld [vmem:[#allocation7 + $0xd8] sm:$0xf]
          %v1574 = vld [vmem:[#allocation7 + $0xdc] sm:$0xf]
          %v1575 = vld [vmem:[#allocation7 + $0xe0] sm:$0xf]
          %v1576 = vld [vmem:[#allocation7 + $0xe4] sm:$0xf]
          %v1577 = vld [vmem:[#allocation7 + $0xe8] sm:$0xf]
          %v1578 = vld [vmem:[#allocation7 + $0xec] sm:$0xf]
          %v1579 = vld [vmem:[#allocation7 + $0xf0] sm:$0xf]
          %v1580 = vld [vmem:[#allocation7 + $0xf4] sm:$0xf]
          %v1581 = vld [vmem:[#allocation7 + $0xf8] sm:$0xf]
          %v1582 = vld [vmem:[#allocation7 + $0xfc] sm:$0xf]
          %v1583 = vld [vmem:[#allocation7 + $0x100] sm:$0xf]
          %v1584 = vld [vmem:[#allocation7 + $0x104] sm:$0xf]
          %v1585 = vld [vmem:[#allocation7 + $0x108] sm:$0xf]
          %v1586 = vld [vmem:[#allocation7 + $0x10c] sm:$0xf]
          %v1587 = vld [vmem:[#allocation7 + $0x110] sm:$0xf]
          %v1588 = vld [vmem:[#allocation7 + $0x114] sm:$0xf]
          %v1589 = vld [vmem:[#allocation7 + $0x118] sm:$0xf]
          %v1590 = vld [vmem:[#allocation7 + $0x11c] sm:$0xf]
          %v1591 = vld [vmem:[#allocation7 + $0x120] sm:$0xf]
          %v1592 = vld [vmem:[#allocation7 + $0x124] sm:$0xf]
          %v1593 = vld [vmem:[#allocation7 + $0x128] sm:$0xf]
          %v1594 = vld [vmem:[#allocation7 + $0x12c] sm:$0xf]
          %v1595 = vld [vmem:[#allocation7 + $0x130] sm:$0xf]
          %v1596 = vld [vmem:[#allocation7 + $0x134] sm:$0xf]
          %v1597 = vld [vmem:[#allocation7 + $0x138] sm:$0xf]
          %v1598 = vld [vmem:[#allocation7 + $0x13c] sm:$0xf]
          %v1599 = vld [vmem:[#allocation7 + $0x140] sm:$0xf]
          %v1600 = vld [vmem:[#allocation7 + $0x144] sm:$0xf]
          %v1601 = vld [vmem:[#allocation7 + $0x148] sm:$0xf]
          %v1602 = vld [vmem:[#allocation7 + $0x14c] sm:$0xf]
          %v1603 = vld [vmem:[#allocation7 + $0x150] sm:$0xf]
          %v1604 = vld [vmem:[#allocation7 + $0x154] sm:$0xf]
          %v1605 = vld [vmem:[#allocation7 + $0x158] sm:$0xf]
          %v1606 = vld [vmem:[#allocation7 + $0x15c] sm:$0xf]
          %v1607 = vld [vmem:[#allocation7 + $0x160] sm:$0xf]
          %v1608 = vld [vmem:[#allocation7 + $0x164] sm:$0xf]
          %v1609 = vld [vmem:[#allocation7 + $0x168] sm:$0xf]
          %v1610 = vld [vmem:[#allocation7 + $0x16c] sm:$0xf]
          %v1611 = vld [vmem:[#allocation7 + $0x170] sm:$0xf]
          %v1612 = vld [vmem:[#allocation7 + $0x174] sm:$0xf]
          %v1613 = vld [vmem:[#allocation7 + $0x178] sm:$0xf]
          %v1614 = vld [vmem:[#allocation7 + $0x17c] sm:$0xf]
          %v1615 = vld [vmem:[#allocation7 + $0x180] sm:$0xf]
          %v1616 = vld [vmem:[#allocation7 + $0x184] sm:$0xf]
          %v1617 = vld [vmem:[#allocation7 + $0x188] sm:$0xf]
          %v1618 = vld [vmem:[#allocation7 + $0x18c] sm:$0xf]
          %v1619 = vld [vmem:[#allocation7 + $0x190] sm:$0xf]
          %v1620 = vld [vmem:[#allocation7 + $0x194] sm:$0xf]
          %v1621 = vld [vmem:[#allocation7 + $0x198] sm:$0xf]
          %v1622 = vld [vmem:[#allocation7 + $0x19c] sm:$0xf]
          %v1623 = vld [vmem:[#allocation7 + $0x1a0] sm:$0xf]
          %v1624 = vld [vmem:[#allocation7 + $0x1a4] sm:$0xf]
          %v1625 = vld [vmem:[#allocation7 + $0x1a8] sm:$0xf]
          %v1626 = vld [vmem:[#allocation7 + $0x1ac] sm:$0xf]
          %v1627 = vld [vmem:[#allocation7 + $0x1b0] sm:$0xf]
          %v1628 = vld [vmem:[#allocation7 + $0x1b4] sm:$0xf]
          %v1629 = vld [vmem:[#allocation7 + $0x1b8] sm:$0xf]
          %v1630 = vld [vmem:[#allocation7 + $0x1bc] sm:$0xf]
          %v1631 = vld [vmem:[#allocation7 + $0x1c0] sm:$0xf]
          %v1632 = vld [vmem:[#allocation7 + $0x1c4] sm:$0xf]
          %v1633 = vld [vmem:[#allocation7 + $0x1c8] sm:$0xf]
          %v1634 = vld [vmem:[#allocation7 + $0x1cc] sm:$0xf]
          %v1635 = vld [vmem:[#allocation7 + $0x1d0] sm:$0xf]
          %v1636 = vld [vmem:[#allocation7 + $0x1d4] sm:$0xf]
          %v1637 = vld [vmem:[#allocation7 + $0x1d8] sm:$0xf]
          %v1638 = vld [vmem:[#allocation7 + $0x1dc] sm:$0xf]
          %v1639 = vld [vmem:[#allocation7 + $0x1e0] sm:$0xf]
          %v1640 = vld [vmem:[#allocation7 + $0x1e4] sm:$0xf]
          %v1641 = vld [vmem:[#allocation7 + $0x1e8] sm:$0xf]
          %v1642 = vld [vmem:[#allocation7 + $0x1ec] sm:$0xf]
          %v1643 = vld [vmem:[#allocation7 + $0x1f0] sm:$0xf]
          %v1644 = vld [vmem:[#allocation7 + $0x1f4] sm:$0xf]
          %v1645 = vld [vmem:[#allocation7 + $0x1f8] sm:$0xf]
          %v1646 = vld [vmem:[#allocation7 + $0x1fc] sm:$0xf]
          %v1647 = vld [vmem:[#allocation7 + $0x200] sm:$0xf]
          %v1648 = vld [vmem:[#allocation7 + $0x204] sm:$0xf]
          %v1649 = vld [vmem:[#allocation7 + $0x208] sm:$0xf]
          %v1650 = vld [vmem:[#allocation7 + $0x20c] sm:$0xf]
          %v1651 = vld [vmem:[#allocation7 + $0x210] sm:$0xf]
          %v1652 = vld [vmem:[#allocation7 + $0x214] sm:$0xf]
          %v1653 = vld [vmem:[#allocation7 + $0x218] sm:$0xf]
          %v1654 = vld [vmem:[#allocation7 + $0x21c] sm:$0xf]
          %v1655 = vld [vmem:[#allocation7 + $0x220] sm:$0xf]
          %v1656 = vld [vmem:[#allocation7 + $0x224] sm:$0xf]
          %v1657 = vld [vmem:[#allocation7 + $0x228] sm:$0xf]
          %v1658 = vld [vmem:[#allocation7 + $0x22c] sm:$0xf]
          %v1659 = vld [vmem:[#allocation7 + $0x230] sm:$0xf]
          %v1660 = vld [vmem:[#allocation7 + $0x234] sm:$0xf]
          %v1661 = vld [vmem:[#allocation7 + $0x238] sm:$0xf]
          %v1662 = vld [vmem:[#allocation7 + $0x23c] sm:$0xf]
          %v1663 = vunpack.c.l.bf16 %v1519
          %v1664 = vunpack.c.l.bf16 %v1520
          %v1665 = vunpack.c.l.bf16 %v1521
          %v1666 = vunpack.c.l.bf16 %v1522
          %v1667 = vunpack.c.l.bf16 %v1523
          %v1668 = vunpack.c.l.bf16 %v1524
          %v1669 = vunpack.c.l.bf16 %v1525
          %v1670 = vunpack.c.l.bf16 %v1526
          %v1671 = vunpack.c.l.bf16 %v1527
          %v1672 = vunpack.c.l.bf16 %v1528
          %v1673 = vunpack.c.l.bf16 %v1529
          %v1674 = vunpack.c.l.bf16 %v1530
          %v1675 = vunpack.c.l.bf16 %v1531
          %v1676 = vunpack.c.l.bf16 %v1532
          %v1677 = vunpack.c.l.bf16 %v1533
          %v1678 = vunpack.c.l.bf16 %v1534
          %v1679 = vunpack.c.l.bf16 %v1535
          %v1680 = vunpack.c.l.bf16 %v1536
          %v1681 = vunpack.c.l.bf16 %v1537
          %v1682 = vunpack.c.l.bf16 %v1538
          %v1683 = vunpack.c.l.bf16 %v1539
          %v1684 = vunpack.c.l.bf16 %v1540
          %v1685 = vunpack.c.l.bf16 %v1541
          %v1686 = vunpack.c.l.bf16 %v1542
          %v1687 = vunpack.c.l.bf16 %v1543
          %v1688 = vunpack.c.l.bf16 %v1544
          %v1689 = vunpack.c.l.bf16 %v1545
          %v1690 = vunpack.c.l.bf16 %v1546
          %v1691 = vunpack.c.l.bf16 %v1547
          %v1692 = vunpack.c.l.bf16 %v1548
          %v1693 = vunpack.c.l.bf16 %v1549
          %v1694 = vunpack.c.l.bf16 %v1550
          %v1695 = vunpack.c.l.bf16 %v1551
          %v1696 = vunpack.c.l.bf16 %v1552
          %v1697 = vunpack.c.l.bf16 %v1553
          %v1698 = vunpack.c.l.bf16 %v1554
          %v1699 = vunpack.c.l.bf16 %v1555
          %v1700 = vunpack.c.l.bf16 %v1556
          %v1701 = vunpack.c.l.bf16 %v1557
          %v1702 = vunpack.c.l.bf16 %v1558
          %v1703 = vunpack.c.l.bf16 %v1559
          %v1704 = vunpack.c.l.bf16 %v1560
          %v1705 = vunpack.c.l.bf16 %v1561
          %v1706 = vunpack.c.l.bf16 %v1562
          %v1707 = vunpack.c.l.bf16 %v1563
          %v1708 = vunpack.c.l.bf16 %v1564
          %v1709 = vunpack.c.l.bf16 %v1565
          %v1710 = vunpack.c.l.bf16 %v1566
          %v1711 = vunpack.c.l.bf16 %v1567
          %v1712 = vunpack.c.l.bf16 %v1568
          %v1713 = vunpack.c.l.bf16 %v1569
          %v1714 = vunpack.c.l.bf16 %v1570
          %v1715 = vunpack.c.l.bf16 %v1571
          %v1716 = vunpack.c.l.bf16 %v1572
          %v1717 = vunpack.c.l.bf16 %v1573
          %v1718 = vunpack.c.l.bf16 %v1574
          %v1719 = vunpack.c.l.bf16 %v1575
          %v1720 = vunpack.c.l.bf16 %v1576
          %v1721 = vunpack.c.l.bf16 %v1577
          %v1722 = vunpack.c.l.bf16 %v1578
          %v1723 = vunpack.c.l.bf16 %v1579
          %v1724 = vunpack.c.l.bf16 %v1580
          %v1725 = vunpack.c.l.bf16 %v1581
          %v1726 = vunpack.c.l.bf16 %v1582
          %v1727 = vunpack.c.l.bf16 %v1583
          %v1728 = vunpack.c.l.bf16 %v1584
          %v1729 = vunpack.c.l.bf16 %v1585
          %v1730 = vunpack.c.l.bf16 %v1586
          %v1731 = vunpack.c.l.bf16 %v1587
          %v1732 = vunpack.c.l.bf16 %v1588
          %v1733 = vunpack.c.l.bf16 %v1589
          %v1734 = vunpack.c.l.bf16 %v1590
          %v1735 = vunpack.c.l.bf16 %v1591
          %v1736 = vunpack.c.l.bf16 %v1592
          %v1737 = vunpack.c.l.bf16 %v1593
          %v1738 = vunpack.c.l.bf16 %v1594
          %v1739 = vunpack.c.l.bf16 %v1595
          %v1740 = vunpack.c.l.bf16 %v1596
          %v1741 = vunpack.c.l.bf16 %v1597
          %v1742 = vunpack.c.l.bf16 %v1598
          %v1743 = vunpack.c.l.bf16 %v1599
          %v1744 = vunpack.c.l.bf16 %v1600
          %v1745 = vunpack.c.l.bf16 %v1601
          %v1746 = vunpack.c.l.bf16 %v1602
          %v1747 = vunpack.c.l.bf16 %v1603
          %v1748 = vunpack.c.l.bf16 %v1604
          %v1749 = vunpack.c.l.bf16 %v1605
          %v1750 = vunpack.c.l.bf16 %v1606
          %v1751 = vunpack.c.l.bf16 %v1607
          %v1752 = vunpack.c.l.bf16 %v1608
          %v1753 = vunpack.c.l.bf16 %v1609
          %v1754 = vunpack.c.l.bf16 %v1610
          %v1755 = vunpack.c.l.bf16 %v1611
          %v1756 = vunpack.c.l.bf16 %v1612
          %v1757 = vunpack.c.l.bf16 %v1613
          %v1758 = vunpack.c.l.bf16 %v1614
          %v1759 = vunpack.c.l.bf16 %v1615
          %v1760 = vunpack.c.l.bf16 %v1616
          %v1761 = vunpack.c.l.bf16 %v1617
          %v1762 = vunpack.c.l.bf16 %v1618
          %v1763 = vunpack.c.l.bf16 %v1619
          %v1764 = vunpack.c.l.bf16 %v1620
          %v1765 = vunpack.c.l.bf16 %v1621
          %v1766 = vunpack.c.l.bf16 %v1622
          %v1767 = vunpack.c.l.bf16 %v1623
          %v1768 = vunpack.c.l.bf16 %v1624
          %v1769 = vunpack.c.l.bf16 %v1625
          %v1770 = vunpack.c.l.bf16 %v1626
          %v1771 = vunpack.c.l.bf16 %v1627
          %v1772 = vunpack.c.l.bf16 %v1628
          %v1773 = vunpack.c.l.bf16 %v1629
          %v1774 = vunpack.c.l.bf16 %v1630
          %v1775 = vunpack.c.l.bf16 %v1631
          %v1776 = vunpack.c.l.bf16 %v1632
          %v1777 = vunpack.c.l.bf16 %v1633
          %v1778 = vunpack.c.l.bf16 %v1634
          %v1779 = vunpack.c.l.bf16 %v1635
          %v1780 = vunpack.c.l.bf16 %v1636
          %v1781 = vunpack.c.l.bf16 %v1637
          %v1782 = vunpack.c.l.bf16 %v1638
          %v1783 = vunpack.c.l.bf16 %v1639
          %v1784 = vunpack.c.l.bf16 %v1640
          %v1785 = vunpack.c.l.bf16 %v1641
          %v1786 = vunpack.c.l.bf16 %v1642
          %v1787 = vunpack.c.l.bf16 %v1643
          %v1788 = vunpack.c.l.bf16 %v1644
          %v1789 = vunpack.c.l.bf16 %v1645
          %v1790 = vunpack.c.l.bf16 %v1646
          %v1791 = vunpack.c.l.bf16 %v1647
          %v1792 = vunpack.c.l.bf16 %v1648
          %v1793 = vunpack.c.l.bf16 %v1649
          %v1794 = vunpack.c.l.bf16 %v1650
          %v1795 = vunpack.c.l.bf16 %v1651
          %v1796 = vunpack.c.l.bf16 %v1652
          %v1797 = vunpack.c.l.bf16 %v1653
          %v1798 = vunpack.c.l.bf16 %v1654
          %v1799 = vunpack.c.l.bf16 %v1655
          %v1800 = vunpack.c.l.bf16 %v1656
          %v1801 = vunpack.c.l.bf16 %v1657
          %v1802 = vunpack.c.l.bf16 %v1658
          %v1803 = vunpack.c.l.bf16 %v1659
          %v1804 = vunpack.c.l.bf16 %v1660
          %v1805 = vunpack.c.l.bf16 %v1661
          %v1806 = vunpack.c.l.bf16 %v1662
          %v1807 = vld [vmem:[#allocation8] sm:$0x1]
          %v1809 = vlaneseq
          %v1810 = vshrl.u32 %v1809, 7
          %v1811 = vsub.s32 0, %v1810
          %v1812 = vrot.slane %v1807, %v1811
          %1814 = vmatprep.subr.mxu0 0.0
          %1815 = vmatpush1.msra.mxu0 %v1678
          %1816 = vmatprep.subr.mxu0 0.0
          %1817 = vmatpush1.msra.mxu0 %v1677
          %1818 = vmatprep.subr.mxu0 0.0
          %1819 = vmatpush1.msra.mxu0 %v1676
          %1820 = vmatprep.subr.mxu0 0.0
          %1821 = vmatpush1.msra.mxu0 %v1675
          %1822 = vmatprep.subr.mxu0 0.0
          %1823 = vmatpush1.msra.mxu0 %v1674
          %1824 = vmatprep.subr.mxu0 0.0
          %1825 = vmatpush1.msra.mxu0 %v1673
          %1826 = vmatprep.subr.mxu0 0.0
          %1827 = vmatpush1.msra.mxu0 %v1672
          %1828 = vmatprep.subr.mxu0 0.0
          %1829 = vmatpush1.msra.mxu0 %v1671
          %1830 = vmatprep.subr.mxu0 0.0
          %1831 = vmatpush1.msra.mxu0 %v1670
          %1832 = vmatprep.subr.mxu0 0.0
          %1833 = vmatpush1.msra.mxu0 %v1669
          %1834 = vmatprep.subr.mxu0 0.0
          %1835 = vmatpush1.msra.mxu0 %v1668
          %1836 = vmatprep.subr.mxu0 0.0
          %1837 = vmatpush1.msra.mxu0 %v1667
          %1838 = vmatprep.subr.mxu0 0.0
          %1839 = vmatpush1.msra.mxu0 %v1666
          %1840 = vmatprep.subr.mxu0 0.0
          %1841 = vmatpush1.msra.mxu0 %v1665
          %1842 = vmatprep.subr.mxu0 0.0
          %1843 = vmatpush1.msra.mxu0 %v1664
          %1844 = vmatprep.subr.mxu0 0.0
          %1845 = vmatpush1.msra.mxu0 %v1663
          %1846 = vmatprep.subr.mxu0 0.0
          %1847 = vmatpush2.msra.mxu0 %v1694
          %1848 = vmatprep.subr.mxu0 0.0
          %1849 = vmatpush2.msra.mxu0 %v1693
          %1850 = vmatprep.subr.mxu0 0.0
          %1851 = vmatpush2.msra.mxu0 %v1692
          %1852 = vmatprep.subr.mxu0 0.0
          %1853 = vmatpush2.msra.mxu0 %v1691
          %1854 = vmatprep.subr.mxu0 0.0
          %1855 = vmatpush2.msra.mxu0 %v1690
          %1856 = vmatprep.subr.mxu0 0.0
          %1857 = vmatpush2.msra.mxu0 %v1689
          %1858 = vmatprep.subr.mxu0 0.0
          %1859 = vmatpush2.msra.mxu0 %v1688
          %1860 = vmatprep.subr.mxu0 0.0
          %1861 = vmatpush2.msra.mxu0 %v1687
          %1862 = vmatprep.subr.mxu0 0.0
          %1863 = vmatpush2.msra.mxu0 %v1686
          %1864 = vmatprep.subr.mxu0 0.0
          %1865 = vmatpush2.msra.mxu0 %v1685
          %1866 = vmatprep.subr.mxu0 0.0
          %1867 = vmatpush2.msra.mxu0 %v1684
          %1868 = vmatprep.subr.mxu0 0.0
          %1869 = vmatpush2.msra.mxu0 %v1683
          %1870 = vmatprep.subr.mxu0 0.0
          %1871 = vmatpush2.msra.mxu0 %v1682
          %1872 = vmatprep.subr.mxu0 0.0
          %1873 = vmatpush2.msra.mxu0 %v1681
          %1874 = vmatprep.subr.mxu0 0.0
          %1875 = vmatpush2.msra.mxu0 %v1680
          %1876 = vmatprep.subr.mxu0 0.0
          %1877 = vmatpush2.msra.mxu0 %v1679
          %1878 = vmatprep.mubr.f32.mxu0 %v1511
          %1879 = vmatmul.mubr.f32.gmra.mxu0 %v1510
          %v1880 = vpop.f32.mrf.mxu0
          %v1881 = vadd.f32 %v1812, %v1880
          %v1882 = vpop.f32.mrf.mxu0
          %1883 = vdwg.mxu0
          %1884 = vmatprep.subr.mxu0 0.0
          %1885 = vmatpush1.msra.mxu0 %v1710
          %1886 = vmatprep.subr.mxu0 0.0
          %1887 = vmatpush1.msra.mxu0 %v1709
          %1888 = vmatprep.subr.mxu0 0.0
          %1889 = vmatpush1.msra.mxu0 %v1708
          %1890 = vmatprep.subr.mxu0 0.0
          %1891 = vmatpush1.msra.mxu0 %v1707
          %1892 = vmatprep.subr.mxu0 0.0
          %1893 = vmatpush1.msra.mxu0 %v1706
          %1894 = vmatprep.subr.mxu0 0.0
          %1895 = vmatpush1.msra.mxu0 %v1705
          %1896 = vmatprep.subr.mxu0 0.0
          %1897 = vmatpush1.msra.mxu0 %v1704
          %1898 = vmatprep.subr.mxu0 0.0
          %1899 = vmatpush1.msra.mxu0 %v1703
          %1900 = vmatprep.subr.mxu0 0.0
          %1901 = vmatpush1.msra.mxu0 %v1702
          %1902 = vmatprep.subr.mxu0 0.0
          %1903 = vmatpush1.msra.mxu0 %v1701
          %1904 = vmatprep.subr.mxu0 0.0
          %1905 = vmatpush1.msra.mxu0 %v1700
          %1906 = vmatprep.subr.mxu0 0.0
          %1907 = vmatpush1.msra.mxu0 %v1699
          %1908 = vmatprep.subr.mxu0 0.0
          %1909 = vmatpush1.msra.mxu0 %v1698
          %1910 = vmatprep.subr.mxu0 0.0
          %1911 = vmatpush1.msra.mxu0 %v1697
          %1912 = vmatprep.subr.mxu0 0.0
          %1913 = vmatpush1.msra.mxu0 %v1696
          %1914 = vmatprep.subr.mxu0 0.0
          %1915 = vmatpush1.msra.mxu0 %v1695
          %1916 = vmatprep.subr.mxu0 0.0
          %1917 = vmatpush2.msra.mxu0 %v1726
          %1918 = vmatprep.subr.mxu0 0.0
          %1919 = vmatpush2.msra.mxu0 %v1725
          %1920 = vmatprep.subr.mxu0 0.0
          %1921 = vmatpush2.msra.mxu0 %v1724
          %1922 = vmatprep.subr.mxu0 0.0
          %1923 = vmatpush2.msra.mxu0 %v1723
          %1924 = vmatprep.subr.mxu0 0.0
          %1925 = vmatpush2.msra.mxu0 %v1722
          %1926 = vmatprep.subr.mxu0 0.0
          %1927 = vmatpush2.msra.mxu0 %v1721
          %1928 = vmatprep.subr.mxu0 0.0
          %1929 = vmatpush2.msra.mxu0 %v1720
          %1930 = vmatprep.subr.mxu0 0.0
          %1931 = vmatpush2.msra.mxu0 %v1719
          %1932 = vmatprep.subr.mxu0 0.0
          %1933 = vmatpush2.msra.mxu0 %v1718
          %1934 = vmatprep.subr.mxu0 0.0
          %1935 = vmatpush2.msra.mxu0 %v1717
          %1936 = vmatprep.subr.mxu0 0.0
          %1937 = vmatpush2.msra.mxu0 %v1716
          %1938 = vmatprep.subr.mxu0 0.0
          %1939 = vmatpush2.msra.mxu0 %v1715
          %1940 = vmatprep.subr.mxu0 0.0
          %1941 = vmatpush2.msra.mxu0 %v1714
          %1942 = vmatprep.subr.mxu0 0.0
          %1943 = vmatpush2.msra.mxu0 %v1713
          %1944 = vmatprep.subr.mxu0 0.0
          %1945 = vmatpush2.msra.mxu0 %v1712
          %1946 = vmatprep.subr.mxu0 0.0
          %1947 = vmatpush2.msra.mxu0 %v1711
          %1948 = vmatprep.mubr.f32.mxu0 %v1513
          %1949 = vmatmul.mubr.f32.gmra.mxu0 %v1512
          %v1950 = vpop.f32.mrf.mxu0
          %v1951 = vadd.f32 %v1881, %v1950
          %v1952 = vpop.f32.mrf.mxu0
          %1953 = vdwg.mxu0
          %1954 = vmatprep.subr.mxu0 0.0
          %1955 = vmatpush1.msra.mxu0 %v1742
          %1956 = vmatprep.subr.mxu0 0.0
          %1957 = vmatpush1.msra.mxu0 %v1741
          %1958 = vmatprep.subr.mxu0 0.0
          %1959 = vmatpush1.msra.mxu0 %v1740
          %1960 = vmatprep.subr.mxu0 0.0
          %1961 = vmatpush1.msra.mxu0 %v1739
          %1962 = vmatprep.subr.mxu0 0.0
          %1963 = vmatpush1.msra.mxu0 %v1738
          %1964 = vmatprep.subr.mxu0 0.0
          %1965 = vmatpush1.msra.mxu0 %v1737
          %1966 = vmatprep.subr.mxu0 0.0
          %1967 = vmatpush1.msra.mxu0 %v1736
          %1968 = vmatprep.subr.mxu0 0.0
          %1969 = vmatpush1.msra.mxu0 %v1735
          %1970 = vmatprep.subr.mxu0 0.0
          %1971 = vmatpush1.msra.mxu0 %v1734
          %1972 = vmatprep.subr.mxu0 0.0
          %1973 = vmatpush1.msra.mxu0 %v1733
          %1974 = vmatprep.subr.mxu0 0.0
          %1975 = vmatpush1.msra.mxu0 %v1732
          %1976 = vmatprep.subr.mxu0 0.0
          %1977 = vmatpush1.msra.mxu0 %v1731
          %1978 = vmatprep.subr.mxu0 0.0
          %1979 = vmatpush1.msra.mxu0 %v1730
          %1980 = vmatprep.subr.mxu0 0.0
          %1981 = vmatpush1.msra.mxu0 %v1729
          %1982 = vmatprep.subr.mxu0 0.0
          %1983 = vmatpush1.msra.mxu0 %v1728
          %1984 = vmatprep.subr.mxu0 0.0
          %1985 = vmatpush1.msra.mxu0 %v1727
          %1986 = vmatprep.subr.mxu0 0.0
          %1987 = vmatpush2.msra.mxu0 %v1758
          %1988 = vmatprep.subr.mxu0 0.0
          %1989 = vmatpush2.msra.mxu0 %v1757
          %1990 = vmatprep.subr.mxu0 0.0
          %1991 = vmatpush2.msra.mxu0 %v1756
          %1992 = vmatprep.subr.mxu0 0.0
          %1993 = vmatpush2.msra.mxu0 %v1755
          %1994 = vmatprep.subr.mxu0 0.0
          %1995 = vmatpush2.msra.mxu0 %v1754
          %1996 = vmatprep.subr.mxu0 0.0
          %1997 = vmatpush2.msra.mxu0 %v1753
          %1998 = vmatprep.subr.mxu0 0.0
          %1999 = vmatpush2.msra.mxu0 %v1752
          %2000 = vmatprep.subr.mxu0 0.0
          %2001 = vmatpush2.msra.mxu0 %v1751
          %2002 = vmatprep.subr.mxu0 0.0
          %2003 = vmatpush2.msra.mxu0 %v1750
          %2004 = vmatprep.subr.mxu0 0.0
          %2005 = vmatpush2.msra.mxu0 %v1749
          %2006 = vmatprep.subr.mxu0 0.0
          %2007 = vmatpush2.msra.mxu0 %v1748
          %2008 = vmatprep.subr.mxu0 0.0
          %2009 = vmatpush2.msra.mxu0 %v1747
          %2010 = vmatprep.subr.mxu0 0.0
          %2011 = vmatpush2.msra.mxu0 %v1746
          %2012 = vmatprep.subr.mxu0 0.0
          %2013 = vmatpush2.msra.mxu0 %v1745
          %2014 = vmatprep.subr.mxu0 0.0
          %2015 = vmatpush2.msra.mxu0 %v1744
          %2016 = vmatprep.subr.mxu0 0.0
          %2017 = vmatpush2.msra.mxu0 %v1743
          %2018 = vmatprep.mubr.f32.mxu0 %v1515
          %2019 = vmatmul.mubr.f32.gmra.mxu0 %v1514
          %v2020 = vpop.f32.mrf.mxu0
          %v2021 = vadd.f32 %v1951, %v2020
          %v2022 = vpop.f32.mrf.mxu0
          %2023 = vdwg.mxu0
          %2024 = vmatprep.subr.mxu0 0.0
          %2025 = vmatpush1.msra.mxu0 %v1774
          %2026 = vmatprep.subr.mxu0 0.0
          %2027 = vmatpush1.msra.mxu0 %v1773
          %2028 = vmatprep.subr.mxu0 0.0
          %2029 = vmatpush1.msra.mxu0 %v1772
          %2030 = vmatprep.subr.mxu0 0.0
          %2031 = vmatpush1.msra.mxu0 %v1771
          %2032 = vmatprep.subr.mxu0 0.0
          %2033 = vmatpush1.msra.mxu0 %v1770
          %2034 = vmatprep.subr.mxu0 0.0
          %2035 = vmatpush1.msra.mxu0 %v1769
          %2036 = vmatprep.subr.mxu0 0.0
          %2037 = vmatpush1.msra.mxu0 %v1768
          %2038 = vmatprep.subr.mxu0 0.0
          %2039 = vmatpush1.msra.mxu0 %v1767
          %2040 = vmatprep.subr.mxu0 0.0
          %2041 = vmatpush1.msra.mxu0 %v1766
          %2042 = vmatprep.subr.mxu0 0.0
          %2043 = vmatpush1.msra.mxu0 %v1765
          %2044 = vmatprep.subr.mxu0 0.0
          %2045 = vmatpush1.msra.mxu0 %v1764
          %2046 = vmatprep.subr.mxu0 0.0
          %2047 = vmatpush1.msra.mxu0 %v1763
          %2048 = vmatprep.subr.mxu0 0.0
          %2049 = vmatpush1.msra.mxu0 %v1762
          %2050 = vmatprep.subr.mxu0 0.0
          %2051 = vmatpush1.msra.mxu0 %v1761
          %2052 = vmatprep.subr.mxu0 0.0
          %2053 = vmatpush1.msra.mxu0 %v1760
          %2054 = vmatprep.subr.mxu0 0.0
          %2055 = vmatpush1.msra.mxu0 %v1759
          %2056 = vmatprep.subr.mxu0 0.0
          %2057 = vmatpush2.msra.mxu0 %v1790
          %2058 = vmatprep.subr.mxu0 0.0
          %2059 = vmatpush2.msra.mxu0 %v1789
          %2060 = vmatprep.subr.mxu0 0.0
          %2061 = vmatpush2.msra.mxu0 %v1788
          %2062 = vmatprep.subr.mxu0 0.0
          %2063 = vmatpush2.msra.mxu0 %v1787
          %2064 = vmatprep.subr.mxu0 0.0
          %2065 = vmatpush2.msra.mxu0 %v1786
          %2066 = vmatprep.subr.mxu0 0.0
          %2067 = vmatpush2.msra.mxu0 %v1785
          %2068 = vmatprep.subr.mxu0 0.0
          %2069 = vmatpush2.msra.mxu0 %v1784
          %2070 = vmatprep.subr.mxu0 0.0
          %2071 = vmatpush2.msra.mxu0 %v1783
          %2072 = vmatprep.subr.mxu0 0.0
          %2073 = vmatpush2.msra.mxu0 %v1782
          %2074 = vmatprep.subr.mxu0 0.0
          %2075 = vmatpush2.msra.mxu0 %v1781
          %2076 = vmatprep.subr.mxu0 0.0
          %2077 = vmatpush2.msra.mxu0 %v1780
          %2078 = vmatprep.subr.mxu0 0.0
          %2079 = vmatpush2.msra.mxu0 %v1779
          %2080 = vmatprep.subr.mxu0 0.0
          %2081 = vmatpush2.msra.mxu0 %v1778
          %2082 = vmatprep.subr.mxu0 0.0
          %2083 = vmatpush2.msra.mxu0 %v1777
          %2084 = vmatprep.subr.mxu0 0.0
          %2085 = vmatpush2.msra.mxu0 %v1776
          %2086 = vmatprep.subr.mxu0 0.0
          %2087 = vmatpush2.msra.mxu0 %v1775
          %2088 = vmatprep.mubr.f32.mxu0 %v1517
          %2089 = vmatmul.mubr.f32.gmra.mxu0 %v1516
          %v2090 = vpop.f32.mrf.mxu0
          %v2091 = vadd.f32 %v2021, %v2090
          %v2092 = vpop.f32.mrf.mxu0
          %2093 = vdwg.mxu0
          %2094 = vmatprep.subr.mxu0 0.0
          %2095 = vmatpush1.msra.mxu0 %v1806
          %2096 = vmatprep.subr.mxu0 0.0
          %2097 = vmatpush1.msra.mxu0 %v1805
          %2098 = vmatprep.subr.mxu0 0.0
          %2099 = vmatpush1.msra.mxu0 %v1804
          %2100 = vmatprep.subr.mxu0 0.0
          %2101 = vmatpush1.msra.mxu0 %v1803
          %2102 = vmatprep.subr.mxu0 0.0
          %2103 = vmatpush1.msra.mxu0 %v1802
          %2104 = vmatprep.subr.mxu0 0.0
          %2105 = vmatpush1.msra.mxu0 %v1801
          %2106 = vmatprep.subr.mxu0 0.0
          %2107 = vmatpush1.msra.mxu0 %v1800
          %2108 = vmatprep.subr.mxu0 0.0
          %2109 = vmatpush1.msra.mxu0 %v1799
          %2110 = vmatprep.subr.mxu0 0.0
          %2111 = vmatpush1.msra.mxu0 %v1798
          %2112 = vmatprep.subr.mxu0 0.0
          %2113 = vmatpush1.msra.mxu0 %v1797
          %2114 = vmatprep.subr.mxu0 0.0
          %2115 = vmatpush1.msra.mxu0 %v1796
          %2116 = vmatprep.subr.mxu0 0.0
          %2117 = vmatpush1.msra.mxu0 %v1795
          %2118 = vmatprep.subr.mxu0 0.0
          %2119 = vmatpush1.msra.mxu0 %v1794
          %2120 = vmatprep.subr.mxu0 0.0
          %2121 = vmatpush1.msra.mxu0 %v1793
          %2122 = vmatprep.subr.mxu0 0.0
          %2123 = vmatpush1.msra.mxu0 %v1792
          %2124 = vmatprep.subr.mxu0 0.0
          %2125 = vmatpush1.msra.mxu0 %v1791
          %2126 = vmatprep.subr.mxu0 0.0
          %2127 = vmatpush2.msra.mxu0 0.0
          %2128 = vmatprep.subr.mxu0 0.0
          %2129 = vmatpush2.msra.mxu0 0.0
          %2130 = vmatprep.subr.mxu0 0.0
          %2131 = vmatpush2.msra.mxu0 0.0
          %2132 = vmatprep.subr.mxu0 0.0
          %2133 = vmatpush2.msra.mxu0 0.0
          %2134 = vmatprep.subr.mxu0 0.0
          %2135 = vmatpush2.msra.mxu0 0.0
          %2136 = vmatprep.subr.mxu0 0.0
          %2137 = vmatpush2.msra.mxu0 0.0
          %2138 = vmatprep.subr.mxu0 0.0
          %2139 = vmatpush2.msra.mxu0 0.0
          %2140 = vmatprep.subr.mxu0 0.0
          %2141 = vmatpush2.msra.mxu0 0.0
          %2142 = vmatprep.subr.mxu0 0.0
          %2143 = vmatpush2.msra.mxu0 0.0
          %2144 = vmatprep.subr.mxu0 0.0
          %2145 = vmatpush2.msra.mxu0 0.0
          %2146 = vmatprep.subr.mxu0 0.0
          %2147 = vmatpush2.msra.mxu0 0.0
          %2148 = vmatprep.subr.mxu0 0.0
          %2149 = vmatpush2.msra.mxu0 0.0
          %2150 = vmatprep.subr.mxu0 0.0
          %2151 = vmatpush2.msra.mxu0 0.0
          %2152 = vmatprep.subr.mxu0 0.0
          %2153 = vmatpush2.msra.mxu0 0.0
          %2154 = vmatprep.subr.mxu0 0.0
          %2155 = vmatpush2.msra.mxu0 0.0
          %2156 = vmatprep.subr.mxu0 0.0
          %2157 = vmatpush2.msra.mxu0 0.0
          %2158 = vmatprep.mubr.f32.mxu0 0.0
          %2159 = vmatmul.mubr.f32.gmra.mxu0 %v1518
          %v2160 = vpop.f32.mrf.mxu0
          %v2161 = vadd.f32 %v2091, %v2160
          %v2162 = vpop.f32.mrf.mxu0
          %2163 = vdwg.mxu0
          %v2164 = vsub.f32 0.0, %v2161
          %v2165 = vmul.f32 %v2164, 1.442695
          %v2166 = vpow.pop %v2165
          %v2167 = vadd.f32 %v2166, 1.0
          %v2168 = vrcp.pop %v2167
          %v2169 = vmul.f32 1.0, %v2168
          %2170 = vst [vmem:[%s5] sm:$0xff] %v2169
        $region64: #{mlp_forward.1} parent=39 // pred_fallthru
          _
        // Predicated region
        $region65: #{mlp_forward.1} parent=39 // pred_check
          %p2171 = pneg %p149
        $region66: #{mlp_forward.1} parent=39 // pred_check_branch
          %2173 = sbr.rel (%p2171) target = $region68
        $region67: #{mlp_forward.1} parent=39 // pred_region
          _
        $region68: #{mlp_forward.1} parent=39 // pred_fallthru
          _
        // Predicated region
        $region69: #{mlp_forward.1} parent=39 // pred_check
          %p2174 = pneg %p149
        $region70: #{mlp_forward.1} parent=39 // pred_check_branch
          %2176 = sbr.rel (%p2174) target = $region72
        $region71: #{mlp_forward.1} parent=39 // pred_region
          _
        $region72: #{mlp_forward.1} parent=39 // pred_fallthru
          _
      $region40: #{mlp_forward.1} parent=5 // pred_fallthru
        _
      %p2177 = scmp.le.s32.totalorder 2, %s16
      // Predicated region
      $region73: #{mlp_forward.1} parent=5 // pred_check
        %p2178 = pneg %p2177
      $region74: #{mlp_forward.1} parent=5 // pred_check_branch
        %2180 = sbr.rel (%p2178) target = $region76
      $region75: #{mlp_forward.1} parent=5 // pred_region
        %s2181 = ssub.s32 %s16, 2
      $region76: #{mlp_forward.1} parent=5 // pred_fallthru
        _
    $region6: #{mlp_forward.1} parent=1 // loop_footer
      %s20 = sadd.s32 1, %s16
    $region7: #{mlp_forward.1} parent=1 // loop_footer_branch
      %15 = sbr.rel target = $region3
    $region8: #{mlp_forward.1} parent=1 // loop_exit
      _
    %2182 = vsyncpa [#allocation4], 1
    %s2183 = scalar_lea.sflag [#allocation4], 1
    %2184 = vsyncpa %s2183, 1
    %2185 = vsyncpa [#allocation6], 1
    %2186 = vsyncpa [#allocation9], 1

// kernel: mlp_forward.1
$region0: #{mlp_forward.1}
  #allocation0 [shape = 'u32[]', space=smem, size = 0x4, offset = 0x4, fixed_abs, tag = 'smem constant byte address 0x4 - core index']
  #allocation1 [shape = 'u32[144,128]{1,0:T(1,128)}', space=vmem, size = 0x12000, scoped, tag = 'internal scratch']
  #allocation2 [shape = 'f32[8,1152]{1,0:T(8,128)}', space=vmem, size = 0x9000, scoped, tag = 'scratch operand']
  %s0 = inlined_call_operand.vmem [shape: f32[8,512], index: 0, kind: input, shape index: {}]
  %s1 = inlined_call_operand.hbm [shape: bf16[512,1152], index: 1, kind: input, shape index: {}]
  %s2 = inlined_call_operand.hbm [shape: f32[1,1152], index: 2, kind: input, shape index: {}]
  %s3 = inlined_call_operand.hbm [shape: bf16[1152,128], index: 3, kind: input, shape index: {}]
  %s4 = inlined_call_operand.hbm [shape: f32[1,128], index: 4, kind: input, shape index: {}]
  %s5 = inlined_call_operand.vmem [shape: f32[8,128], index: 5, kind: output, shape index: {}]
  %s6 = sld [smem:[#allocation0]]
  $region77: #{mlp_forward.1} parent=0
    _
  %s8 = ssub.s32 1, %s6
  %s9 = scalar_select 0, %s8, %s6
  $region1: #{mlp_forward.1} parent=0
    #allocation3 [shape = 'u8[1179648]{0}', space=vmem, size = 0x120000, scoped, tag = 'input window, operand 1']
    #allocation4 [shape = 's32[2]{0}', space=sflag, size = 0x8, scoped, tag = 'scoped memory for mlp_forward.1']
    #allocation5 [shape = 'u8[4608]{0}', space=vmem, size = 0x1400, scoped, tag = 'input window, operand 2, single buffered']
    #allocation6 [shape = 's32[1]{0}', space=sflag, size = 0x4, scoped, tag = 'scoped memory for mlp_forward.1']
    #allocation7 [shape = 'u8[294912]{0}', space=vmem, size = 0x48000, scoped, tag = 'input window, operand 3, single buffered']
    #allocation8 [shape = 'u8[512]{0}', space=vmem, size = 0x400, scoped, tag = 'input window, operand 4, single buffered']
    #allocation9 [shape = 's32[1]{0}', space=sflag, size = 0x4, scoped, tag = 'scoped memory for mlp_forward.1']
    %10 = vsyncpa [#allocation4], 0
    %s11 = scalar_lea.sflag [#allocation4], 1
    %12 = vsyncpa %s11, 0
    %13 = vsyncpa [#allocation6], 0
    %14 = vsyncpa [#allocation9], 0
    loop: start=0, step=1, limit=4
    $region2: #{mlp_forward.1} parent=1 // loop_pre_header
      _
    $region3: #{mlp_forward.1} parent=1 // loop_header
      %s16 = sphi 0, %s20
      %p17 = scmp.ge.s32.totalorder %s16, 4
      %s26 = sphi 0, %s28
      %s29 = sphi 0, %s26
      %s30 = sphi 0, %s29
      %s46 = sphi 0, %s30
      %s52 = sphi 0, %s54
      %s55 = sphi 0, %s52
      %s56 = sphi 0, %s55
      %s72 = sphi 0, %s56
      %s76 = sphi 0, %s76
      %s78 = sphi 0, %s76
      %s79 = sphi 0, %s78
      %s93 = sphi 0, %s79
      %s97 = sphi 0, %s97
      %s99 = sphi 0, %s97
      %s100 = sphi 0, %s99
      %s114 = sphi 0, %s100
      %s118 = sphi 0, %s118
      %s120 = sphi 0, %s118
      %s121 = sphi 0, %s120
      %s135 = sphi 0, %s121
      %s139 = sphi 0, %s139
      %s141 = sphi 0, %s139
      %s142 = sphi 0, %s141
      %s156 = sphi 0, %s142
    $region4: #{mlp_forward.1} parent=1 // loop_header_branch
      %19 = sbr.rel (%p17) target = $region8
    $region5: #{mlp_forward.1} parent=1 // loop_body
      %s21 = ssub.s32 %s16, 1
      %s22 = ssub.s32 %s16, 2
      %s23 = sadd.s32 %s16, 1
      %s24 = ssub.s32 %s16, %s23
      %p25 = scmp.eq.s32.totalorder %s24, 0
      %s27 = sadd.s32 %s26, 1
      %s28 = scalar_select %p25, %s26, %s27
      %p31 = pneg %p25
      %p32 = scmp.eq.s32.totalorder %s16, 1
      %p33 = por %p31, %p32
      %p34 = scmp.ne.s32.totalorder %s26, %s29
      %p35 = scmp.eq.s32.totalorder %s16, 0
      %p36 = por %p34, %p35
      %p37 = scmp.ne.s32.totalorder %s26, %s29
      %p38 = scmp.eq.s32.totalorder %s21, 1
      %p39 = por %p37, %p38
      %p40 = scmp.ne.s32.totalorder %s29, %s30
      %p41 = scmp.eq.s32.totalorder %s21, 0
      %p42 = por %p40, %p41
      %p43 = scmp.ne.s32.totalorder %s29, %s30
      %p44 = scmp.eq.s32.totalorder %s22, 1
      %p45 = por %p43, %p44
      %p47 = scmp.ne.s32.totalorder %s30, %s46
      %p48 = scmp.eq.s32.totalorder %s22, 0
      %p49 = por %p47, %p48
      %s50 = ssub.s32 %s16, %s23
      %p51 = scmp.eq.s32.totalorder %s50, 0
      %s53 = sadd.s32 %s52, 1
      %s54 = scalar_select %p51, %s52, %s53
      %p57 = pneg %p51
      %p58 = scmp.eq.s32.totalorder %s16, 1
      %p59 = por %p57, %p58
      %p60 = scmp.ne.s32.totalorder %s52, %s55
      %p61 = scmp.eq.s32.totalorder %s16, 0
      %p62 = por %p60, %p61
      %p63 = scmp.ne.s32.totalorder %s52, %s55
      %p64 = scmp.eq.s32.totalorder %s21, 1
      %p65 = por %p63, %p64
      %p66 = scmp.ne.s32.totalorder %s55, %s56
      %p67 = scmp.eq.s32.totalorder %s21, 0
      %p68 = por %p66, %p67
      %p69 = scmp.ne.s32.totalorder %s55, %s56
      %p70 = scmp.eq.s32.totalorder %s22, 1
      %p71 = por %p69, %p70
      %p73 = scmp.ne.s32.totalorder %s56, %s72
      %p74 = scmp.eq.s32.totalorder %s22, 0
      %p75 = por %p73, %p74
      %s77 = sadd.s32 %s76, 1
      %p80 = scmp.eq.s32.totalorder %s16, 1
      %p81 = scmp.ne.s32.totalorder %s76, %s78
      %p82 = scmp.eq.s32.totalorder %s16, 0
      %p83 = por %p81, %p82
      %p84 = scmp.ne.s32.totalorder %s76, %s78
      %p85 = scmp.eq.s32.totalorder %s21, 1
      %p86 = por %p84, %p85
      %p87 = scmp.ne.s32.totalorder %s78, %s79
      %p88 = scmp.eq.s32.totalorder %s21, 0
      %p89 = por %p87, %p88
      %p90 = scmp.ne.s32.totalorder %s78, %s79
      %p91 = scmp.eq.s32.totalorder %s22, 1
      %p92 = por %p90, %p91
      %p94 = scmp.ne.s32.totalorder %s79, %s93
      %p95 = scmp.eq.s32.totalorder %s22, 0
      %p96 = por %p94, %p95
      %s98 = sadd.s32 %s97, 1
      %p101 = scmp.eq.s32.totalorder %s16, 1
      %p102 = scmp.ne.s32.totalorder %s97, %s99
      %p103 = scmp.eq.s32.totalorder %s16, 0
      %p104 = por %p102, %p103
      %p105 = scmp.ne.s32.totalorder %s97, %s99
      %p106 = scmp.eq.s32.totalorder %s21, 1
      %p107 = por %p105, %p106
      %p108 = scmp.ne.s32.totalorder %s99, %s100
      %p109 = scmp.eq.s32.totalorder %s21, 0
      %p110 = por %p108, %p109
      %p111 = scmp.ne.s32.totalorder %s99, %s100
      %p112 = scmp.eq.s32.totalorder %s22, 1
      %p113 = por %p111, %p112
      %p115 = scmp.ne.s32.totalorder %s100, %s114
      %p116 = scmp.eq.s32.totalorder %s22, 0
      %p117 = por %p115, %p116
      %s119 = sadd.s32 %s118, 1
      %p122 = scmp.eq.s32.totalorder %s16, 1
      %p123 = scmp.ne.s32.totalorder %s118, %s120
      %p124 = scmp.eq.s32.totalorder %s16, 0
      %p125 = por %p123, %p124
      %p126 = scmp.ne.s32.totalorder %s118, %s120
      %p127 = scmp.eq.s32.totalorder %s21, 1
      %p128 = por %p126, %p127
      %p129 = scmp.ne.s32.totalorder %s120, %s121
      %p130 = scmp.eq.s32.totalorder %s21, 0
      %p131 = por %p129, %p130
      %p132 = scmp.ne.s32.totalorder %s120, %s121
      %p133 = scmp.eq.s32.totalorder %s22, 1
      %p134 = por %p132, %p133
      %p136 = scmp.ne.s32.totalorder %s121, %s135
      %p137 = scmp.eq.s32.totalorder %s22, 0
      %p138 = por %p136, %p137
      %s140 = sadd.s32 %s139, 1
      %p143 = scmp.eq.s32.totalorder %s16, 1
      %p144 = scmp.ne.s32.totalorder %s139, %s141
      %p145 = scmp.eq.s32.totalorder %s16, 0
      %p146 = por %p144, %p145
      %p147 = scmp.ne.s32.totalorder %s139, %s141
      %p148 = scmp.eq.s32.totalorder %s21, 1
      %p149 = por %p147, %p148
      %p150 = scmp.ne.s32.totalorder %s141, %s142
      %p151 = scmp.eq.s32.totalorder %s21, 0
      %p152 = por %p150, %p151
      %p153 = scmp.ne.s32.totalorder %s141, %s142
      %p154 = scmp.eq.s32.totalorder %s22, 1
      %p155 = por %p153, %p154
      %p157 = scmp.ne.s32.totalorder %s142, %s156
      %p158 = scmp.eq.s32.totalorder %s22, 0
      %p159 = por %p157, %p158
      %p160 = scmp.le.s32.totalorder 1, %s16
      %p161 = scmp.lt.s32.totalorder %s16, 3
      %p162 = pnand %p160, %p161
      %p163 = pneg %p162
      // Predicated region
      $region9: #{mlp_forward.1} parent=5 // pred_check
        _
      $region10: #{mlp_forward.1} parent=5 // pred_check_branch
        %165 = sbr.rel (%p162) target = $region12
      $region11: #{mlp_forward.1} parent=5 // pred_region
        %s166 = ssub.s32 %s16, 1
        // Predicated region
        $region13: #{mlp_forward.1} parent=11 // pred_check
          %p167 = pneg %p89
        $region14: #{mlp_forward.1} parent=11 // pred_check_branch
          %169 = sbr.rel (%p167) target = $region16
        $region15: #{mlp_forward.1} parent=11 // pred_region
          %s171 = ssub.s32 144, 144
          %172 = vsyncadd [#allocation6], %s171
          %s174 = sshll.u32 [#allocation5], 4
          %s175 = int_to_ptr.vmem [resolvable:$true] %s174
          %177 = dma.hbm_to_vmem [thread:$0]  %s2, 144, %s175, [#allocation6]
        $region16: #{mlp_forward.1} parent=11 // pred_fallthru
          _
        // Predicated region
        $region17: #{mlp_forward.1} parent=11 // pred_check
          %p178 = pneg %p110
        $region18: #{mlp_forward.1} parent=11 // pred_check_branch
          %180 = sbr.rel (%p178) target = $region20
        $region19: #{mlp_forward.1} parent=11 // pred_region
          %s182 = ssub.s32 9216, 9216
          %183 = vsyncadd [#allocation6], %s182
          %s184 = sshll.u32 [#allocation7], 4
          %s185 = int_to_ptr.vmem [resolvable:$true] %s184
          %190 = dma.hbm_to_vmem [thread:$0]  %s3, 9216, %s185, [#allocation6], 64, 64, 4
        $region20: #{mlp_forward.1} parent=11 // pred_fallthru
          _
        // Predicated region
        $region21: #{mlp_forward.1} parent=11 // pred_check
          %p191 = pneg %p131
        $region22: #{mlp_forward.1} parent=11 // pred_check_branch
          %193 = sbr.rel (%p191) target = $region24
        $region23: #{mlp_forward.1} parent=11 // pred_region
          %s195 = ssub.s32 16, 16
          %196 = vsyncadd [#allocation9], %s195
          %s198 = sshll.u32 [#allocation8], 4
          %s199 = int_to_ptr.vmem [resolvable:$true] %s198
          %201 = dma.hbm_to_vmem [thread:$0]  %s4, 16, %s199, [#allocation9]
        $region24: #{mlp_forward.1} parent=11 // pred_fallthru
          _
      $region12: #{mlp_forward.1} parent=5 // pred_fallthru
        _
      %p202 = scmp.lt.s32.totalorder %s16, 2
      // Predicated region
      $region25: #{mlp_forward.1} parent=5 // pred_check
        %p203 = pneg %p202
      $region26: #{mlp_forward.1} parent=5 // pred_check_branch
        %205 = sbr.rel (%p203) target = $region28
      $region27: #{mlp_forward.1} parent=5 // pred_region
        // Predicated region
        $region29: #{mlp_forward.1} parent=27 // pred_check
          %p206 = pneg %p36
        $region30: #{mlp_forward.1} parent=27 // pred_check_branch
          %208 = sbr.rel (%p206) target = $region32
        $region31: #{mlp_forward.1} parent=27 // pred_region
          %s209 = smul.u32 2, %s16
          %p210 = scmp.lt.s32.totalorder %s209, 3
          %s211 = scalar_select %p210, %s209, 3
          %s212 = smul.addr %s211, 8
          %s213 = scalar_lea.vmem %s0, %s212
          %s214 = smul.u32 2, %s16
        $region32: #{mlp_forward.1} parent=27 // pred_fallthru
          _
        // Predicated region
        $region33: #{mlp_forward.1} parent=27 // pred_check
          %p215 = pneg %p62
        $region34: #{mlp_forward.1} parent=27 // pred_check_branch
          %217 = sbr.rel (%p215) target = $region36
        $region35: #{mlp_forward.1} parent=27 // pred_region
          %s218 = sand.u32 %s52, 1
          %s219 = scalar_lea.sflag [#allocation4], %s218
          %s220 = sand.u32 %s52, 1
          %s221 = smul.addr %s220, 1152
          %s222 = scalar_lea.vmem [#allocation3], %s221
          %s223 = smul.u32 32, %s16
          %s225 = ssub.s32 18432, 18432
          %226 = vsyncadd %s219, %s225
          %s227 = smul.addr %s223, 9
          %s228 = smul.addr %s227, 64
          %s229 = scalar_lea.hbm %s1, %s228
          %s230 = sshll.u32 %s222, 4
          %s231 = int_to_ptr.vmem [resolvable:$true] %s230
          %236 = dma.hbm_to_vmem [thread:$0]  %s229, 18432, %s231, %s219, 576, 576, 36
        $region36: #{mlp_forward.1} parent=27 // pred_fallthru
          _
      $region28: #{mlp_forward.1} parent=5 // pred_fallthru
        _
      %p237 = scmp.le.s32.totalorder 1, %s16
      %p238 = scmp.lt.s32.totalorder %s16, 3
      %p239 = pnand %p237, %p238
      %p240 = pneg %p239
      // Predicated region
      $region37: #{mlp_forward.1} parent=5 // pred_check
        _
      $region38: #{mlp_forward.1} parent=5 // pred_check_branch
        %242 = sbr.rel (%p239) target = $region40
      $region39: #{mlp_forward.1} parent=5 // pred_region
        %s243 = ssub.s32 %s16, 1
        %s244 = sand.u32 %s55, 1
        %s245 = scalar_lea.sflag [#allocation4], %s244
        %s246 = sand.u32 %s55, 1
        %s247 = smul.addr %s246, 1152
        %s248 = scalar_lea.vmem [#allocation3], %s247
        // Predicated region
        $region41: #{mlp_forward.1} parent=39 // pred_check
          %p249 = pneg %p68
        $region42: #{mlp_forward.1} parent=39 // pred_check_branch
          %251 = sbr.rel (%p249) target = $region44
        $region43: #{mlp_forward.1} parent=39 // pred_region
          %252 = dma.done %s245, 18432
        $region44: #{mlp_forward.1} parent=39 // pred_fallthru
          _
        // Predicated region
        $region45: #{mlp_forward.1} parent=39 // pred_check
          %p253 = pneg %p89
        $region46: #{mlp_forward.1} parent=39 // pred_check_branch
          %255 = sbr.rel (%p253) target = $region48
        $region47: #{mlp_forward.1} parent=39 // pred_region
          %256 = dma.done [#allocation6], 144
        $region48: #{mlp_forward.1} parent=39 // pred_fallthru
          _
        // Predicated region
        $region49: #{mlp_forward.1} parent=39 // pred_check
          %p257 = pneg %p110
        $region50: #{mlp_forward.1} parent=39 // pred_check_branch
          %259 = sbr.rel (%p257) target = $region52
        $region51: #{mlp_forward.1} parent=39 // pred_region
          %260 = dma.done [#allocation6], 9216
        $region52: #{mlp_forward.1} parent=39 // pred_fallthru
          _
        // Predicated region
        $region53: #{mlp_forward.1} parent=39 // pred_check
          %p261 = pneg %p131
        $region54: #{mlp_forward.1} parent=39 // pred_check_branch
          %263 = sbr.rel (%p261) target = $region56
        $region55: #{mlp_forward.1} parent=39 // pred_region
          %264 = dma.done [#allocation9], 16
        $region56: #{mlp_forward.1} parent=39 // pred_fallthru
          _
        %s265 = smul.u32 2, %s21
        %p266 = scmp.lt.s32.totalorder %s265, 3
        %s267 = scalar_select %p266, %s265, 3
        %s268 = smul.addr %s267, 8
        %s269 = scalar_lea.vmem %s0, %s268
        %p270 = pneg %p42
        %p271 = pneg %p39
        %s272 = sand.u32 %s55, 1
        %s273 = scalar_lea.sflag [#allocation4], %s272
        %s274 = sand.u32 %s55, 1
        %s275 = smul.addr %s274, 1152
        %s276 = scalar_lea.vmem [#allocation3], %s275
        %p277 = pneg %p68
        %p278 = pneg %p65
        %p279 = pneg %p89
        %p280 = pneg %p86
        %p281 = pneg %p110
        %p282 = pneg %p107
        %p283 = pneg %p131
        %p284 = pneg %p128
        %p285 = pneg %p152
        %p286 = pneg %p149
        %s287 = smul.u32 2, %s21
        %p288 = scmp.lt.s32.totalorder %s287, 3
        %s289 = scalar_select %p288, %s287, 3
        %s290 = smul.addr %s289, 8
        %s291 = scalar_lea.vmem %s0, %s290
        %s292 = smul.u32 2, %s21
        %s293 = smul.u32 32, %s21
        %p295 = scmp.eq.s32.totalorder %s21, 0
        // Predicated region
        $region57: #{mlp_forward.1} parent=39 // pred_check
          %p296 = pneg %p295
        $region58: #{mlp_forward.1} parent=39 // pred_check_branch
          %298 = sbr.rel (%p296) target = $region60
        $region59: #{mlp_forward.1} parent=39 // pred_region
          %299 = vst [vmem:[#allocation2] sm:$0xff] 0.0
          %300 = vst [vmem:[#allocation2 + $0x8] sm:$0xff] 0.0
          %301 = vst [vmem:[#allocation2 + $0x10] sm:$0xff] 0.0
          %302 = vst [vmem:[#allocation2 + $0x18] sm:$0xff] 0.0
          %303 = vst [vmem:[#allocation2 + $0x20] sm:$0xff] 0.0
          %304 = vst [vmem:[#allocation2 + $0x28] sm:$0xff] 0.0
          %305 = vst [vmem:[#allocation2 + $0x30] sm:$0xff] 0.0
          %306 = vst [vmem:[#allocation2 + $0x38] sm:$0xff] 0.0
          %307 = vst [vmem:[#allocation2 + $0x40] sm:$0xff] 0.0
        $region60: #{mlp_forward.1} parent=39 // pred_fallthru
          _
        %v308 = vld [vmem:[#allocation2] sm:$0xff]
        %v309 = vld [vmem:[#allocation2 + $0x8] sm:$0xff]
        %v310 = vld [vmem:[#allocation2 + $0x10] sm:$0xff]
        %v311 = vld [vmem:[#allocation2 + $0x18] sm:$0xff]
        %v312 = vld [vmem:[#allocation2 + $0x20] sm:$0xff]
        %v313 = vld [vmem:[#allocation2 + $0x28] sm:$0xff]
        %v314 = vld [vmem:[#allocation2 + $0x30] sm:$0xff]
        %v315 = vld [vmem:[#allocation2 + $0x38] sm:$0xff]
        %v316 = vld [vmem:[#allocation2 + $0x40] sm:$0xff]
        %v317 = vld [vmem:[%s291] sm:$0xff]
        %v318 = vld [vmem:[%s291 + $0x8] sm:$0xff]
        %v319 = vpack.c.bf16 %v317, %v317
        %v320 = vpack.c.bf16 %v318, %v318
        %v321 = vld [vmem:[%s248] sm:$0xff]
        %v322 = vld [vmem:[%s248 + $0x8] sm:$0xff]
        %v323 = vld [vmem:[%s248 + $0x10] sm:$0xff]
        %v324 = vld [vmem:[%s248 + $0x18] sm:$0xff]
        %v325 = vld [vmem:[%s248 + $0x20] sm:$0xf]
        %v326 = vld [vmem:[%s248 + $0x24] sm:$0xff]
        %v327 = vld [vmem:[%s248 + $0x2c] sm:$0xff]
        %v328 = vld [vmem:[%s248 + $0x34] sm:$0xff]
        %v329 = vld [vmem:[%s248 + $0x3c] sm:$0xff]
        %v330 = vld [vmem:[%s248 + $0x44] sm:$0xf]
        %v331 = vld [vmem:[%s248 + $0x48] sm:$0xff]
        %v332 = vld [vmem:[%s248 + $0x50] sm:$0xff]
        %v333 = vld [vmem:[%s248 + $0x58] sm:$0xff]
        %v334 = vld [vmem:[%s248 + $0x60] sm:$0xff]
        %v335 = vld [vmem:[%s248 + $0x68] sm:$0xf]
        %v336 = vld [vmem:[%s248 + $0x6c] sm:$0xff]
        %v337 = vld [vmem:[%s248 + $0x74] sm:$0xff]
        %v338 = vld [vmem:[%s248 + $0x7c] sm:$0xff]
        %v339 = vld [vmem:[%s248 + $0x84] sm:$0xff]
        %v340 = vld [vmem:[%s248 + $0x8c] sm:$0xf]
        %v341 = vld [vmem:[%s248 + $0x90] sm:$0xff]
        %v342 = vld [vmem:[%s248 + $0x98] sm:$0xff]
        %v343 = vld [vmem:[%s248 + $0xa0] sm:$0xff]
        %v344 = vld [vmem:[%s248 + $0xa8] sm:$0xff]
        %v345 = vld [vmem:[%s248 + $0xb0] sm:$0xf]
        %v346 = vld [vmem:[%s248 + $0xb4] sm:$0xff]
        %v347 = vld [vmem:[%s248 + $0xbc] sm:$0xff]
        %v348 = vld [vmem:[%s248 + $0xc4] sm:$0xff]
        %v349 = vld [vmem:[%s248 + $0xcc] sm:$0xff]
        %v350 = vld [vmem:[%s248 + $0xd4] sm:$0xf]
        %v351 = vld [vmem:[%s248 + $0xd8] sm:$0xff]
        %v352 = vld [vmem:[%s248 + $0xe0] sm:$0xff]
        %v353 = vld [vmem:[%s248 + $0xe8] sm:$0xff]
        %v354 = vld [vmem:[%s248 + $0xf0] sm:$0xff]
        %v355 = vld [vmem:[%s248 + $0xf8] sm:$0xf]
        %v356 = vld [vmem:[%s248 + $0xfc] sm:$0xff]
        %v357 = vld [vmem:[%s248 + $0x104] sm:$0xff]
        %v358 = vld [vmem:[%s248 + $0x10c] sm:$0xff]
        %v359 = vld [vmem:[%s248 + $0x114] sm:$0xff]
        %v360 = vld [vmem:[%s248 + $0x11c] sm:$0xf]
        %v361 = vld [vmem:[%s248 + $0x120] sm:$0xff]
        %v362 = vld [vmem:[%s248 + $0x128] sm:$0xff]
        %v363 = vld [vmem:[%s248 + $0x130] sm:$0xff]
        %v364 = vld [vmem:[%s248 + $0x138] sm:$0xff]
        %v365 = vld [vmem:[%s248 + $0x140] sm:$0xf]
        %v366 = vld [vmem:[%s248 + $0x144] sm:$0xff]
        %v367 = vld [vmem:[%s248 + $0x14c] sm:$0xff]
        %v368 = vld [vmem:[%s248 + $0x154] sm:$0xff]
        %v369 = vld [vmem:[%s248 + $0x15c] sm:$0xff]
        %v370 = vld [vmem:[%s248 + $0x164] sm:$0xf]
        %v371 = vld [vmem:[%s248 + $0x168] sm:$0xff]
        %v372 = vld [vmem:[%s248 + $0x170] sm:$0xff]
        %v373 = vld [vmem:[%s248 + $0x178] sm:$0xff]
        %v374 = vld [vmem:[%s248 + $0x180] sm:$0xff]
        %v375 = vld [vmem:[%s248 + $0x188] sm:$0xf]
        %v376 = vld [vmem:[%s248 + $0x18c] sm:$0xff]
        %v377 = vld [vmem:[%s248 + $0x194] sm:$0xff]
        %v378 = vld [vmem:[%s248 + $0x19c] sm:$0xff]
        %v379 = vld [vmem:[%s248 + $0x1a4] sm:$0xff]
        %v380 = vld [vmem:[%s248 + $0x1ac] sm:$0xf]
        %v381 = vld [vmem:[%s248 + $0x1b0] sm:$0xff]
        %v382 = vld [vmem:[%s248 + $0x1b8] sm:$0xff]
        %v383 = vld [vmem:[%s248 + $0x1c0] sm:$0xff]
        %v384 = vld [vmem:[%s248 + $0x1c8] sm:$0xff]
        %v385 = vld [vmem:[%s248 + $0x1d0] sm:$0xf]
        %v386 = vld [vmem:[%s248 + $0x1d4] sm:$0xff]
        %v387 = vld [vmem:[%s248 + $0x1dc] sm:$0xff]
        %v388 = vld [vmem:[%s248 + $0x1e4] sm:$0xff]
        %v389 = vld [vmem:[%s248 + $0x1ec] sm:$0xff]
        %v390 = vld [vmem:[%s248 + $0x1f4] sm:$0xf]
        %v391 = vld [vmem:[%s248 + $0x1f8] sm:$0xff]
        %v392 = vld [vmem:[%s248 + $0x200] sm:$0xff]
        %v393 = vld [vmem:[%s248 + $0x208] sm:$0xff]
        %v394 = vld [vmem:[%s248 + $0x210] sm:$0xff]
        %v395 = vld [vmem:[%s248 + $0x218] sm:$0xf]
        %v396 = vld [vmem:[%s248 + $0x21c] sm:$0xff]
        %v397 = vld [vmem:[%s248 + $0x224] sm:$0xff]
        %v398 = vld [vmem:[%s248 + $0x22c] sm:$0xff]
        %v399 = vld [vmem:[%s248 + $0x234] sm:$0xff]
        %v400 = vld [vmem:[%s248 + $0x23c] sm:$0xf]
        %v401 = vld [vmem:[%s248 + $0x240] sm:$0xff]
        %v402 = vld [vmem:[%s248 + $0x248] sm:$0xff]
        %v403 = vld [vmem:[%s248 + $0x250] sm:$0xff]
        %v404 = vld [vmem:[%s248 + $0x258] sm:$0xff]
        %v405 = vld [vmem:[%s248 + $0x260] sm:$0xf]
        %v406 = vld [vmem:[%s248 + $0x264] sm:$0xff]
        %v407 = vld [vmem:[%s248 + $0x26c] sm:$0xff]
        %v408 = vld [vmem:[%s248 + $0x274] sm:$0xff]
        %v409 = vld [vmem:[%s248 + $0x27c] sm:$0xff]
        %v410 = vld [vmem:[%s248 + $0x284] sm:$0xf]
        %v411 = vld [vmem:[%s248 + $0x288] sm:$0xff]
        %v412 = vld [vmem:[%s248 + $0x290] sm:$0xff]
        %v413 = vld [vmem:[%s248 + $0x298] sm:$0xff]
        %v414 = vld [vmem:[%s248 + $0x2a0] sm:$0xff]
        %v415 = vld [vmem:[%s248 + $0x2a8] sm:$0xf]
        %v416 = vld [vmem:[%s248 + $0x2ac] sm:$0xff]
        %v417 = vld [vmem:[%s248 + $0x2b4] sm:$0xff]
        %v418 = vld [vmem:[%s248 + $0x2bc] sm:$0xff]
        %v419 = vld [vmem:[%s248 + $0x2c4] sm:$0xff]
        %v420 = vld [vmem:[%s248 + $0x2cc] sm:$0xf]
        %v421 = vld [vmem:[%s248 + $0x2d0] sm:$0xff]
        %v422 = vld [vmem:[%s248 + $0x2d8] sm:$0xff]
        %v423 = vld [vmem:[%s248 + $0x2e0] sm:$0xff]
        %v424 = vld [vmem:[%s248 + $0x2e8] sm:$0xff]
        %v425 = vld [vmem:[%s248 + $0x2f0] sm:$0xf]
        %v426 = vld [vmem:[%s248 + $0x2f4] sm:$0xff]
        %v427 = vld [vmem:[%s248 + $0x2fc] sm:$0xff]
        %v428 = vld [vmem:[%s248 + $0x304] sm:$0xff]
        %v429 = vld [vmem:[%s248 + $0x30c] sm:$0xff]
        %v430 = vld [vmem:[%s248 + $0x314] sm:$0xf]
        %v431 = vld [vmem:[%s248 + $0x318] sm:$0xff]
        %v432 = vld [vmem:[%s248 + $0x320] sm:$0xff]
        %v433 = vld [vmem:[%s248 + $0x328] sm:$0xff]
        %v434 = vld [vmem:[%s248 + $0x330] sm:$0xff]
        %v435 = vld [vmem:[%s248 + $0x338] sm:$0xf]
        %v436 = vld [vmem:[%s248 + $0x33c] sm:$0xff]
        %v437 = vld [vmem:[%s248 + $0x344] sm:$0xff]
        %v438 = vld [vmem:[%s248 + $0x34c] sm:$0xff]
        %v439 = vld [vmem:[%s248 + $0x354] sm:$0xff]
        %v440 = vld [vmem:[%s248 + $0x35c] sm:$0xf]
        %v441 = vld [vmem:[%s248 + $0x360] sm:$0xff]
        %v442 = vld [vmem:[%s248 + $0x368] sm:$0xff]
        %v443 = vld [vmem:[%s248 + $0x370] sm:$0xff]
        %v444 = vld [vmem:[%s248 + $0x378] sm:$0xff]
        %v445 = vld [vmem:[%s248 + $0x380] sm:$0xf]
        %v446 = vld [vmem:[%s248 + $0x384] sm:$0xff]
        %v447 = vld [vmem:[%s248 + $0x38c] sm:$0xff]
        %v448 = vld [vmem:[%s248 + $0x394] sm:$0xff]
        %v449 = vld [vmem:[%s248 + $0x39c] sm:$0xff]
        %v450 = vld [vmem:[%s248 + $0x3a4] sm:$0xf]
        %v451 = vld [vmem:[%s248 + $0x3a8] sm:$0xff]
        %v452 = vld [vmem:[%s248 + $0x3b0] sm:$0xff]
        %v453 = vld [vmem:[%s248 + $0x3b8] sm:$0xff]
        %v454 = vld [vmem:[%s248 + $0x3c0] sm:$0xff]
        %v455 = vld [vmem:[%s248 + $0x3c8] sm:$0xf]
        %v456 = vld [vmem:[%s248 + $0x3cc] sm:$0xff]
        %v457 = vld [vmem:[%s248 + $0x3d4] sm:$0xff]
        %v458 = vld [vmem:[%s248 + $0x3dc] sm:$0xff]
        %v459 = vld [vmem:[%s248 + $0x3e4] sm:$0xff]
        %v460 = vld [vmem:[%s248 + $0x3ec] sm:$0xf]
        %v461 = vld [vmem:[%s248 + $0x3f0] sm:$0xff]
        %v462 = vld [vmem:[%s248 + $0x3f8] sm:$0xff]
        %v463 = vld [vmem:[%s248 + $0x400] sm:$0xff]
        %v464 = vld [vmem:[%s248 + $0x408] sm:$0xff]
        %v465 = vld [vmem:[%s248 + $0x410] sm:$0xf]
        %v466 = vld [vmem:[%s248 + $0x414] sm:$0xff]
        %v467 = vld [vmem:[%s248 + $0x41c] sm:$0xff]
        %v468 = vld [vmem:[%s248 + $0x424] sm:$0xff]
        %v469 = vld [vmem:[%s248 + $0x42c] sm:$0xff]
        %v470 = vld [vmem:[%s248 + $0x434] sm:$0xf]
        %v471 = vld [vmem:[%s248 + $0x438] sm:$0xff]
        %v472 = vld [vmem:[%s248 + $0x440] sm:$0xff]
        %v473 = vld [vmem:[%s248 + $0x448] sm:$0xff]
        %v474 = vld [vmem:[%s248 + $0x450] sm:$0xff]
        %v475 = vld [vmem:[%s248 + $0x458] sm:$0xf]
        %v476 = vld [vmem:[%s248 + $0x45c] sm:$0xff]
        %v477 = vld [vmem:[%s248 + $0x464] sm:$0xff]
        %v478 = vld [vmem:[%s248 + $0x46c] sm:$0xff]
        %v479 = vld [vmem:[%s248 + $0x474] sm:$0xff]
        %v480 = vld [vmem:[%s248 + $0x47c] sm:$0xf]
        %v641 = vunpack.c.l.b16 %v321
        %v642 = vunpack.c.h.b16 %v321
        %v643 = vunpack.c.l.b16 %v322
        %v644 = vunpack.c.h.b16 %v322
        %v645 = vunpack.c.l.b16 %v323
        %v646 = vunpack.c.h.b16 %v323
        %v647 = vunpack.c.l.b16 %v324
        %v648 = vunpack.c.h.b16 %v324
        %v649 = vunpack.c.l.b16 %v325
        %v650 = vunpack.c.l.b16 %v326
        %v651 = vunpack.c.h.b16 %v326
        %v652 = vunpack.c.l.b16 %v327
        %v653 = vunpack.c.h.b16 %v327
        %v654 = vunpack.c.l.b16 %v328
        %v655 = vunpack.c.h.b16 %v328
        %v656 = vunpack.c.l.b16 %v329
        %v657 = vunpack.c.h.b16 %v329
        %v658 = vunpack.c.l.b16 %v330
        %v659 = vunpack.c.l.b16 %v331
        %v660 = vunpack.c.h.b16 %v331
        %v661 = vunpack.c.l.b16 %v332
        %v662 = vunpack.c.h.b16 %v332
        %v663 = vunpack.c.l.b16 %v333
        %v664 = vunpack.c.h.b16 %v333
        %v665 = vunpack.c.l.b16 %v334
        %v666 = vunpack.c.h.b16 %v334
        %v667 = vunpack.c.l.b16 %v335
        %v668 = vunpack.c.l.b16 %v336
        %v669 = vunpack.c.h.b16 %v336
        %v670 = vunpack.c.l.b16 %v337
        %v671 = vunpack.c.h.b16 %v337
        %v672 = vunpack.c.l.b16 %v338
        %v673 = vunpack.c.h.b16 %v338
        %v674 = vunpack.c.l.b16 %v339
        %v675 = vunpack.c.h.b16 %v339
        %v676 = vunpack.c.l.b16 %v340
        %v677 = vunpack.c.l.b16 %v341
        %v678 = vunpack.c.h.b16 %v341
        %v679 = vunpack.c.l.b16 %v342
        %v680 = vunpack.c.h.b16 %v342
        %v681 = vunpack.c.l.b16 %v343
        %v682 = vunpack.c.h.b16 %v343
        %v683 = vunpack.c.l.b16 %v344
        %v684 = vunpack.c.h.b16 %v344
        %v685 = vunpack.c.l.b16 %v345
        %v686 = vunpack.c.l.b16 %v346
        %v687 = vunpack.c.h.b16 %v346
        %v688 = vunpack.c.l.b16 %v347
        %v689 = vunpack.c.h.b16 %v347
        %v690 = vunpack.c.l.b16 %v348
        %v691 = vunpack.c.h.b16 %v348
        %v692 = vunpack.c.l.b16 %v349
        %v693 = vunpack.c.h.b16 %v349
        %v694 = vunpack.c.l.b16 %v350
        %v695 = vunpack.c.l.b16 %v351
        %v696 = vunpack.c.h.b16 %v351
        %v697 = vunpack.c.l.b16 %v352
        %v698 = vunpack.c.h.b16 %v352
        %v699 = vunpack.c.l.b16 %v353
        %v700 = vunpack.c.h.b16 %v353
        %v701 = vunpack.c.l.b16 %v354
        %v702 = vunpack.c.h.b16 %v354
        %v703 = vunpack.c.l.b16 %v355
        %v704 = vunpack.c.l.b16 %v356
        %v705 = vunpack.c.h.b16 %v356
        %v706 = vunpack.c.l.b16 %v357
        %v707 = vunpack.c.h.b16 %v357
        %v708 = vunpack.c.l.b16 %v358
        %v709 = vunpack.c.h.b16 %v358
        %v710 = vunpack.c.l.b16 %v359
        %v711 = vunpack.c.h.b16 %v359
        %v712 = vunpack.c.l.b16 %v360
        %v713 = vunpack.c.l.b16 %v361
        %v714 = vunpack.c.h.b16 %v361
        %v715 = vunpack.c.l.b16 %v362
        %v716 = vunpack.c.h.b16 %v362
        %v717 = vunpack.c.l.b16 %v363
        %v718 = vunpack.c.h.b16 %v363
        %v719 = vunpack.c.l.b16 %v364
        %v720 = vunpack.c.h.b16 %v364
        %v721 = vunpack.c.l.b16 %v365
        %v722 = vunpack.c.l.b16 %v366
        %v723 = vunpack.c.h.b16 %v366
        %v724 = vunpack.c.l.b16 %v367
        %v725 = vunpack.c.h.b16 %v367
        %v726 = vunpack.c.l.b16 %v368
        %v727 = vunpack.c.h.b16 %v368
        %v728 = vunpack.c.l.b16 %v369
        %v729 = vunpack.c.h.b16 %v369
        %v730 = vunpack.c.l.b16 %v370
        %v731 = vunpack.c.l.b16 %v371
        %v732 = vunpack.c.h.b16 %v371
        %v733 = vunpack.c.l.b16 %v372
        %v734 = vunpack.c.h.b16 %v372
        %v735 = vunpack.c.l.b16 %v373
        %v736 = vunpack.c.h.b16 %v373
        %v737 = vunpack.c.l.b16 %v374
        %v738 = vunpack.c.h.b16 %v374
        %v739 = vunpack.c.l.b16 %v375
        %v740 = vunpack.c.l.b16 %v376
        %v741 = vunpack.c.h.b16 %v376
        %v742 = vunpack.c.l.b16 %v377
        %v743 = vunpack.c.h.b16 %v377
        %v744 = vunpack.c.l.b16 %v378
        %v745 = vunpack.c.h.b16 %v378
        %v746 = vunpack.c.l.b16 %v379
        %v747 = vunpack.c.h.b16 %v379
        %v748 = vunpack.c.l.b16 %v380
        %v749 = vunpack.c.l.b16 %v381
        %v750 = vunpack.c.h.b16 %v381
        %v751 = vunpack.c.l.b16 %v382
        %v752 = vunpack.c.h.b16 %v382
        %v753 = vunpack.c.l.b16 %v383
        %v754 = vunpack.c.h.b16 %v383
        %v755 = vunpack.c.l.b16 %v384
        %v756 = vunpack.c.h.b16 %v384
        %v757 = vunpack.c.l.b16 %v385
        %v758 = vunpack.c.l.b16 %v386
        %v759 = vunpack.c.h.b16 %v386
        %v760 = vunpack.c.l.b16 %v387
        %v761 = vunpack.c.h.b16 %v387
        %v762 = vunpack.c.l.b16 %v388
        %v763 = vunpack.c.h.b16 %v388
        %v764 = vunpack.c.l.b16 %v389
        %v765 = vunpack.c.h.b16 %v389
        %v766 = vunpack.c.l.b16 %v390
        %v767 = vunpack.c.l.b16 %v391
        %v768 = vunpack.c.h.b16 %v391
        %v769 = vunpack.c.l.b16 %v392
        %v770 = vunpack.c.h.b16 %v392
        %v771 = vunpack.c.l.b16 %v393
        %v772 = vunpack.c.h.b16 %v393
        %v773 = vunpack.c.l.b16 %v394
        %v774 = vunpack.c.h.b16 %v394
        %v775 = vunpack.c.l.b16 %v395
        %v776 = vunpack.c.l.b16 %v396
        %v777 = vunpack.c.h.b16 %v396
        %v778 = vunpack.c.l.b16 %v397
        %v779 = vunpack.c.h.b16 %v397
        %v780 = vunpack.c.l.b16 %v398
        %v781 = vunpack.c.h.b16 %v398
        %v782 = vunpack.c.l.b16 %v399
        %v783 = vunpack.c.h.b16 %v399
        %v784 = vunpack.c.l.b16 %v400
        %v785 = vunpack.c.l.b16 %v401
        %v786 = vunpack.c.h.b16 %v401
        %v787 = vunpack.c.l.b16 %v402
        %v788 = vunpack.c.h.b16 %v402
        %v789 = vunpack.c.l.b16 %v403
        %v790 = vunpack.c.h.b16 %v403
        %v791 = vunpack.c.l.b16 %v404
        %v792 = vunpack.c.h.b16 %v404
        %v793 = vunpack.c.l.b16 %v405
        %v794 = vunpack.c.l.b16 %v406
        %v795 = vunpack.c.h.b16 %v406
        %v796 = vunpack.c.l.b16 %v407
        %v797 = vunpack.c.h.b16 %v407
        %v798 = vunpack.c.l.b16 %v408
        %v799 = vunpack.c.h.b16 %v408
        %v800 = vunpack.c.l.b16 %v409
        %v801 = vunpack.c.h.b16 %v409
        %v802 = vunpack.c.l.b16 %v410
        %v803 = vunpack.c.l.b16 %v411
        %v804 = vunpack.c.h.b16 %v411
        %v805 = vunpack.c.l.b16 %v412
        %v806 = vunpack.c.h.b16 %v412
        %v807 = vunpack.c.l.b16 %v413
        %v808 = vunpack.c.h.b16 %v413
        %v809 = vunpack.c.l.b16 %v414
        %v810 = vunpack.c.h.b16 %v414
        %v811 = vunpack.c.l.b16 %v415
        %v812 = vunpack.c.l.b16 %v416
        %v813 = vunpack.c.h.b16 %v416
        %v814 = vunpack.c.l.b16 %v417
        %v815 = vunpack.c.h.b16 %v417
        %v816 = vunpack.c.l.b16 %v418
        %v817 = vunpack.c.h.b16 %v418
        %v818 = vunpack.c.l.b16 %v419
        %v819 = vunpack.c.h.b16 %v419
        %v820 = vunpack.c.l.b16 %v420
        %v821 = vunpack.c.l.b16 %v421
        %v822 = vunpack.c.h.b16 %v421
        %v823 = vunpack.c.l.b16 %v422
        %v824 = vunpack.c.h.b16 %v422
        %v825 = vunpack.c.l.b16 %v423
        %v826 = vunpack.c.h.b16 %v423
        %v827 = vunpack.c.l.b16 %v424
        %v828 = vunpack.c.h.b16 %v424
        %v829 = vunpack.c.l.b16 %v425
        %v830 = vunpack.c.l.b16 %v426
        %v831 = vunpack.c.h.b16 %v426
        %v832 = vunpack.c.l.b16 %v427
        %v833 = vunpack.c.h.b16 %v427
        %v834 = vunpack.c.l.b16 %v428
        %v835 = vunpack.c.h.b16 %v428
        %v836 = vunpack.c.l.b16 %v429
        %v837 = vunpack.c.h.b16 %v429
        %v838 = vunpack.c.l.b16 %v430
        %v839 = vunpack.c.l.b16 %v431
        %v840 = vunpack.c.h.b16 %v431
        %v841 = vunpack.c.l.b16 %v432
        %v842 = vunpack.c.h.b16 %v432
        %v843 = vunpack.c.l.b16 %v433
        %v844 = vunpack.c.h.b16 %v433
        %v845 = vunpack.c.l.b16 %v434
        %v846 = vunpack.c.h.b16 %v434
        %v847 = vunpack.c.l.b16 %v435
        %v848 = vunpack.c.l.b16 %v436
        %v849 = vunpack.c.h.b16 %v436
        %v850 = vunpack.c.l.b16 %v437
        %v851 = vunpack.c.h.b16 %v437
        %v852 = vunpack.c.l.b16 %v438
        %v853 = vunpack.c.h.b16 %v438
        %v854 = vunpack.c.l.b16 %v439
        %v855 = vunpack.c.h.b16 %v439
        %v856 = vunpack.c.l.b16 %v440
        %v857 = vunpack.c.l.b16 %v441
        %v858 = vunpack.c.h.b16 %v441
        %v859 = vunpack.c.l.b16 %v442
        %v860 = vunpack.c.h.b16 %v442
        %v861 = vunpack.c.l.b16 %v443
        %v862 = vunpack.c.h.b16 %v443
        %v863 = vunpack.c.l.b16 %v444
        %v864 = vunpack.c.h.b16 %v444
        %v865 = vunpack.c.l.b16 %v445
        %v866 = vunpack.c.l.b16 %v446
        %v867 = vunpack.c.h.b16 %v446
        %v868 = vunpack.c.l.b16 %v447
        %v869 = vunpack.c.h.b16 %v447
        %v870 = vunpack.c.l.b16 %v448
        %v871 = vunpack.c.h.b16 %v448
        %v872 = vunpack.c.l.b16 %v449
        %v873 = vunpack.c.h.b16 %v449
        %v874 = vunpack.c.l.b16 %v450
        %v875 = vunpack.c.l.b16 %v451
        %v876 = vunpack.c.h.b16 %v451
        %v877 = vunpack.c.l.b16 %v452
        %v878 = vunpack.c.h.b16 %v452
        %v879 = vunpack.c.l.b16 %v453
        %v880 = vunpack.c.h.b16 %v453
        %v881 = vunpack.c.l.b16 %v454
        %v882 = vunpack.c.h.b16 %v454
        %v883 = vunpack.c.l.b16 %v455
        %v884 = vunpack.c.l.b16 %v456
        %v885 = vunpack.c.h.b16 %v456
        %v886 = vunpack.c.l.b16 %v457
        %v887 = vunpack.c.h.b16 %v457
        %v888 = vunpack.c.l.b16 %v458
        %v889 = vunpack.c.h.b16 %v458
        %v890 = vunpack.c.l.b16 %v459
        %v891 = vunpack.c.h.b16 %v459
        %v892 = vunpack.c.l.b16 %v460
        %v893 = vunpack.c.l.b16 %v461
        %v894 = vunpack.c.h.b16 %v461
        %v895 = vunpack.c.l.b16 %v462
        %v896 = vunpack.c.h.b16 %v462
        %v897 = vunpack.c.l.b16 %v463
        %v898 = vunpack.c.h.b16 %v463
        %v899 = vunpack.c.l.b16 %v464
        %v900 = vunpack.c.h.b16 %v464
        %v901 = vunpack.c.l.b16 %v465
        %v902 = vunpack.c.l.b16 %v466
        %v903 = vunpack.c.h.b16 %v466
        %v904 = vunpack.c.l.b16 %v467
        %v905 = vunpack.c.h.b16 %v467
        %v906 = vunpack.c.l.b16 %v468
        %v907 = vunpack.c.h.b16 %v468
        %v908 = vunpack.c.l.b16 %v469
        %v909 = vunpack.c.h.b16 %v469
        %v910 = vunpack.c.l.b16 %v470
        %v911 = vunpack.c.l.b16 %v471
        %v912 = vunpack.c.h.b16 %v471
        %v913 = vunpack.c.l.b16 %v472
        %v914 = vunpack.c.h.b16 %v472
        %v915 = vunpack.c.l.b16 %v473
        %v916 = vunpack.c.h.b16 %v473
        %v917 = vunpack.c.l.b16 %v474
        %v918 = vunpack.c.h.b16 %v474
        %v919 = vunpack.c.l.b16 %v475
        %v920 = vunpack.c.l.b16 %v476
        %v921 = vunpack.c.h.b16 %v476
        %v922 = vunpack.c.l.b16 %v477
        %v923 = vunpack.c.h.b16 %v477
        %v924 = vunpack.c.l.b16 %v478
        %v925 = vunpack.c.h.b16 %v478
        %v926 = vunpack.c.l.b16 %v479
        %v927 = vunpack.c.h.b16 %v479
        %v928 = vunpack.c.l.b16 %v480
        %v929 = vpack.c.b16 %v650, %v641
        %v930 = vpack.c.b16 %v651, %v642
        %v931 = vpack.c.b16 %v652, %v643
        %v932 = vpack.c.b16 %v653, %v644
        %v933 = vpack.c.b16 %v654, %v645
        %v934 = vpack.c.b16 %v655, %v646
        %v935 = vpack.c.b16 %v656, %v647
        %v936 = vpack.c.b16 %v657, %v648
        %v937 = vpack.c.b16 %v658, %v649
        %v938 = vpack.c.b16 %v668, %v659
        %v939 = vpack.c.b16 %v669, %v660
        %v940 = vpack.c.b16 %v670, %v661
        %v941 = vpack.c.b16 %v671, %v662
        %v942 = vpack.c.b16 %v672, %v663
        %v943 = vpack.c.b16 %v673, %v664
        %v944 = vpack.c.b16 %v674, %v665
        %v945 = vpack.c.b16 %v675, %v666
        %v946 = vpack.c.b16 %v676, %v667
        %v947 = vpack.c.b16 %v686, %v677
        %v948 = vpack.c.b16 %v687, %v678
        %v949 = vpack.c.b16 %v688, %v679
        %v950 = vpack.c.b16 %v689, %v680
        %v951 = vpack.c.b16 %v690, %v681
        %v952 = vpack.c.b16 %v691, %v682
        %v953 = vpack.c.b16 %v692, %v683
        %v954 = vpack.c.b16 %v693, %v684
        %v955 = vpack.c.b16 %v694, %v685
        %v956 = vpack.c.b16 %v704, %v695
        %v957 = vpack.c.b16 %v705, %v696
        %v958 = vpack.c.b16 %v706, %v697
        %v959 = vpack.c.b16 %v707, %v698
        %v960 = vpack.c.b16 %v708, %v699
        %v961 = vpack.c.b16 %v709, %v700
        %v962 = vpack.c.b16 %v710, %v701
        %v963 = vpack.c.b16 %v711, %v702
        %v964 = vpack.c.b16 %v712, %v703
        %v965 = vpack.c.b16 %v722, %v713
        %v966 = vpack.c.b16 %v723, %v714
        %v967 = vpack.c.b16 %v724, %v715
        %v968 = vpack.c.b16 %v725, %v716
        %v969 = vpack.c.b16 %v726, %v717
        %v970 = vpack.c.b16 %v727, %v718
        %v971 = vpack.c.b16 %v728, %v719
        %v972 = vpack.c.b16 %v729, %v720
        %v973 = vpack.c.b16 %v730, %v721
        %v974 = vpack.c.b16 %v740, %v731
        %v975 = vpack.c.b16 %v741, %v732
        %v976 = vpack.c.b16 %v742, %v733
        %v977 = vpack.c.b16 %v743, %v734
        %v978 = vpack.c.b16 %v744, %v735
        %v979 = vpack.c.b16 %v745, %v736
        %v980 = vpack.c.b16 %v746, %v737
        %v981 = vpack.c.b16 %v747, %v738
        %v982 = vpack.c.b16 %v748, %v739
        %v983 = vpack.c.b16 %v758, %v749
        %v984 = vpack.c.b16 %v759, %v750
        %v985 = vpack.c.b16 %v760, %v751
        %v986 = vpack.c.b16 %v761, %v752
        %v987 = vpack.c.b16 %v762, %v753
        %v988 = vpack.c.b16 %v763, %v754
        %v989 = vpack.c.b16 %v764, %v755
        %v990 = vpack.c.b16 %v765, %v756
        %v991 = vpack.c.b16 %v766, %v757
        %v992 = vpack.c.b16 %v776, %v767
        %v993 = vpack.c.b16 %v777, %v768
        %v994 = vpack.c.b16 %v778, %v769
        %v995 = vpack.c.b16 %v779, %v770
        %v996 = vpack.c.b16 %v780, %v771
        %v997 = vpack.c.b16 %v781, %v772
        %v998 = vpack.c.b16 %v782, %v773
        %v999 = vpack.c.b16 %v783, %v774
        %v1000 = vpack.c.b16 %v784, %v775
        %v1001 = vpack.c.b16 %v794, %v785
        %v1002 = vpack.c.b16 %v795, %v786
        %v1003 = vpack.c.b16 %v796, %v787
        %v1004 = vpack.c.b16 %v797, %v788
        %v1005 = vpack.c.b16 %v798, %v789
        %v1006 = vpack.c.b16 %v799, %v790
        %v1007 = vpack.c.b16 %v800, %v791
        %v1008 = vpack.c.b16 %v801, %v792
        %v1009 = vpack.c.b16 %v802, %v793
        %v1010 = vpack.c.b16 %v812, %v803
        %v1011 = vpack.c.b16 %v813, %v804
        %v1012 = vpack.c.b16 %v814, %v805
        %v1013 = vpack.c.b16 %v815, %v806
        %v1014 = vpack.c.b16 %v816, %v807
        %v1015 = vpack.c.b16 %v817, %v808
        %v1016 = vpack.c.b16 %v818, %v809
        %v1017 = vpack.c.b16 %v819, %v810
        %v1018 = vpack.c.b16 %v820, %v811
        %v1019 = vpack.c.b16 %v830, %v821
        %v1020 = vpack.c.b16 %v831, %v822
        %v1021 = vpack.c.b16 %v832, %v823
        %v1022 = vpack.c.b16 %v833, %v824
        %v1023 = vpack.c.b16 %v834, %v825
        %v1024 = vpack.c.b16 %v835, %v826
        %v1025 = vpack.c.b16 %v836, %v827
        %v1026 = vpack.c.b16 %v837, %v828
        %v1027 = vpack.c.b16 %v838, %v829
        %v1028 = vpack.c.b16 %v848, %v839
        %v1029 = vpack.c.b16 %v849, %v840
        %v1030 = vpack.c.b16 %v850, %v841
        %v1031 = vpack.c.b16 %v851, %v842
        %v1032 = vpack.c.b16 %v852, %v843
        %v1033 = vpack.c.b16 %v853, %v844
        %v1034 = vpack.c.b16 %v854, %v845
        %v1035 = vpack.c.b16 %v855, %v846
        %v1036 = vpack.c.b16 %v856, %v847
        %v1037 = vpack.c.b16 %v866, %v857
        %v1038 = vpack.c.b16 %v867, %v858
        %v1039 = vpack.c.b16 %v868, %v859
        %v1040 = vpack.c.b16 %v869, %v860
        %v1041 = vpack.c.b16 %v870, %v861
        %v1042 = vpack.c.b16 %v871, %v862
        %v1043 = vpack.c.b16 %v872, %v863
        %v1044 = vpack.c.b16 %v873, %v864
        %v1045 = vpack.c.b16 %v874, %v865
        %v1046 = vpack.c.b16 %v884, %v875
        %v1047 = vpack.c.b16 %v885, %v876
        %v1048 = vpack.c.b16 %v886, %v877
        %v1049 = vpack.c.b16 %v887, %v878
        %v1050 = vpack.c.b16 %v888, %v879
        %v1051 = vpack.c.b16 %v889, %v880
        %v1052 = vpack.c.b16 %v890, %v881
        %v1053 = vpack.c.b16 %v891, %v882
        %v1054 = vpack.c.b16 %v892, %v883
        %v1055 = vpack.c.b16 %v902, %v893
        %v1056 = vpack.c.b16 %v903, %v894
        %v1057 = vpack.c.b16 %v904, %v895
        %v1058 = vpack.c.b16 %v905, %v896
        %v1059 = vpack.c.b16 %v906, %v897
        %v1060 = vpack.c.b16 %v907, %v898
        %v1061 = vpack.c.b16 %v908, %v899
        %v1062 = vpack.c.b16 %v909, %v900
        %v1063 = vpack.c.b16 %v910, %v901
        %v1064 = vpack.c.b16 %v920, %v911
        %v1065 = vpack.c.b16 %v921, %v912
        %v1066 = vpack.c.b16 %v922, %v913
        %v1067 = vpack.c.b16 %v923, %v914
        %v1068 = vpack.c.b16 %v924, %v915
        %v1069 = vpack.c.b16 %v925, %v916
        %v1070 = vpack.c.b16 %v926, %v917
        %v1071 = vpack.c.b16 %v927, %v918
        %v1072 = vpack.c.b16 %v928, %v919
        %1217 = vmatprep.subr.bf16.mxu0 %v993
        %1218 = vmatpush1.bf16.msra.mxu0 %v992
        %1219 = vmatprep.subr.bf16.mxu0 %v984
        %1220 = vmatpush1.bf16.msra.mxu0 %v983
        %1221 = vmatprep.subr.bf16.mxu0 %v975
        %1222 = vmatpush1.bf16.msra.mxu0 %v974
        %1223 = vmatprep.subr.bf16.mxu0 %v966
        %1224 = vmatpush1.bf16.msra.mxu0 %v965
        %1225 = vmatprep.subr.bf16.mxu0 %v957
        %1226 = vmatpush1.bf16.msra.mxu0 %v956
        %1227 = vmatprep.subr.bf16.mxu0 %v948
        %1228 = vmatpush1.bf16.msra.mxu0 %v947
        %1229 = vmatprep.subr.bf16.mxu0 %v939
        %1230 = vmatpush1.bf16.msra.mxu0 %v938
        %1231 = vmatprep.subr.bf16.mxu0 %v930
        %1232 = vmatpush1.bf16.msra.mxu0 %v929
        %1233 = vmatprep.subr.bf16.mxu0 %v1065
        %1234 = vmatpush2.bf16.msra.mxu0 %v1064
        %1235 = vmatprep.subr.bf16.mxu0 %v1056
        %1236 = vmatpush2.bf16.msra.mxu0 %v1055
        %1237 = vmatprep.subr.bf16.mxu0 %v1047
        %1238 = vmatpush2.bf16.msra.mxu0 %v1046
        %1239 = vmatprep.subr.bf16.mxu0 %v1038
        %1240 = vmatpush2.bf16.msra.mxu0 %v1037
        %1241 = vmatprep.subr.bf16.mxu0 %v1029
        %1242 = vmatpush2.bf16.msra.mxu0 %v1028
        %1243 = vmatprep.subr.bf16.mxu0 %v1020
        %1244 = vmatpush2.bf16.msra.mxu0 %v1019
        %1245 = vmatprep.subr.bf16.mxu0 %v1011
        %1246 = vmatpush2.bf16.msra.mxu0 %v1010
        %1247 = vmatprep.subr.bf16.mxu0 %v1002
        %1248 = vmatpush2.bf16.msra.mxu0 %v1001
        %1249 = vmatprep.mubr.bf16.mxu0 %v320
        %1250 = vmatmul.mubr.bf16.gmra.mxu0 %v319
        %v1251 = vpop.f32.mrf.mxu0
        %v1252 = vadd.f32 0.0, %v1251
        %v1253 = vpop.f32.mrf.mxu0
        %v1254 = vadd.f32 0.0, %v1253
        %v1255 = vpop.f32.mrf.mxu0
        %v1256 = vpop.f32.mrf.mxu0
        %1257 = vdwg.mxu0
        %1258 = vmatprep.subr.bf16.mxu0 %v995
        %1259 = vmatpush1.bf16.msra.mxu0 %v994
        %1260 = vmatprep.subr.bf16.mxu0 %v986
        %1261 = vmatpush1.bf16.msra.mxu0 %v985
        %1262 = vmatprep.subr.bf16.mxu0 %v977
        %1263 = vmatpush1.bf16.msra.mxu0 %v976
        %1264 = vmatprep.subr.bf16.mxu0 %v968
        %1265 = vmatpush1.bf16.msra.mxu0 %v967
        %1266 = vmatprep.subr.bf16.mxu0 %v959
        %1267 = vmatpush1.bf16.msra.mxu0 %v958
        %1268 = vmatprep.subr.bf16.mxu0 %v950
        %1269 = vmatpush1.bf16.msra.mxu0 %v949
        %1270 = vmatprep.subr.bf16.mxu0 %v941
        %1271 = vmatpush1.bf16.msra.mxu0 %v940
        %1272 = vmatprep.subr.bf16.mxu0 %v932
        %1273 = vmatpush1.bf16.msra.mxu0 %v931
        %1274 = vmatprep.subr.bf16.mxu0 %v1067
        %1275 = vmatpush2.bf16.msra.mxu0 %v1066
        %1276 = vmatprep.subr.bf16.mxu0 %v1058
        %1277 = vmatpush2.bf16.msra.mxu0 %v1057
        %1278 = vmatprep.subr.bf16.mxu0 %v1049
        %1279 = vmatpush2.bf16.msra.mxu0 %v1048
        %1280 = vmatprep.subr.bf16.mxu0 %v1040
        %1281 = vmatpush2.bf16.msra.mxu0 %v1039
        %1282 = vmatprep.subr.bf16.mxu0 %v1031
        %1283 = vmatpush2.bf16.msra.mxu0 %v1030
        %1284 = vmatprep.subr.bf16.mxu0 %v1022
        %1285 = vmatpush2.bf16.msra.mxu0 %v1021
        %1286 = vmatprep.subr.bf16.mxu0 %v1013
        %1287 = vmatpush2.bf16.msra.mxu0 %v1012
        %1288 = vmatprep.subr.bf16.mxu0 %v1004
        %1289 = vmatpush2.bf16.msra.mxu0 %v1003
        %1290 = vmatprep.mubr.bf16.mxu0 %v320
        %1291 = vmatmul.mubr.bf16.gmra.mxu0 %v319
        %v1292 = vpop.f32.mrf.mxu0
        %v1293 = vadd.f32 0.0, %v1292
        %v1294 = vpop.f32.mrf.mxu0
        %v1295 = vadd.f32 0.0, %v1294
        %v1296 = vpop.f32.mrf.mxu0
        %v1297 = vpop.f32.mrf.mxu0
        %1298 = vdwg.mxu0
        %1299 = vmatprep.subr.bf16.mxu0 %v997
        %1300 = vmatpush1.bf16.msra.mxu0 %v996
        %1301 = vmatprep.subr.bf16.mxu0 %v988
        %1302 = vmatpush1.bf16.msra.mxu0 %v987
        %1303 = vmatprep.subr.bf16.mxu0 %v979
        %1304 = vmatpush1.bf16.msra.mxu0 %v978
        %1305 = vmatprep.subr.bf16.mxu0 %v970
        %1306 = vmatpush1.bf16.msra.mxu0 %v969
        %1307 = vmatprep.subr.bf16.mxu0 %v961
        %1308 = vmatpush1.bf16.msra.mxu0 %v960
        %1309 = vmatprep.subr.bf16.mxu0 %v952
        %1310 = vmatpush1.bf16.msra.mxu0 %v951
        %1311 = vmatprep.subr.bf16.mxu0 %v943
        %1312 = vmatpush1.bf16.msra.mxu0 %v942
        %1313 = vmatprep.subr.bf16.mxu0 %v934
        %1314 = vmatpush1.bf16.msra.mxu0 %v933
        %1315 = vmatprep.subr.bf16.mxu0 %v1069
        %1316 = vmatpush2.bf16.msra.mxu0 %v1068
        %1317 = vmatprep.subr.bf16.mxu0 %v1060
        %1318 = vmatpush2.bf16.msra.mxu0 %v1059
        %1319 = vmatprep.subr.bf16.mxu0 %v1051
        %1320 = vmatpush2.bf16.msra.mxu0 %v1050
        %1321 = vmatprep.subr.bf16.mxu0 %v1042
        %1322 = vmatpush2.bf16.msra.mxu0 %v1041
        %1323 = vmatprep.subr.bf16.mxu0 %v1033
        %1324 = vmatpush2.bf16.msra.mxu0 %v1032
        %1325 = vmatprep.subr.bf16.mxu0 %v1024
        %1326 = vmatpush2.bf16.msra.mxu0 %v1023
        %1327 = vmatprep.subr.bf16.mxu0 %v1015
        %1328 = vmatpush2.bf16.msra.mxu0 %v1014
        %1329 = vmatprep.subr.bf16.mxu0 %v1006
        %1330 = vmatpush2.bf16.msra.mxu0 %v1005
        %1331 = vmatprep.mubr.bf16.mxu0 %v320
        %1332 = vmatmul.mubr.bf16.gmra.mxu0 %v319
        %v1333 = vpop.f32.mrf.mxu0
        %v1334 = vadd.f32 0.0, %v1333
        %v1335 = vpop.f32.mrf.mxu0
        %v1336 = vadd.f32 0.0, %v1335
        %v1337 = vpop.f32.mrf.mxu0
        %v1338 = vpop.f32.mrf.mxu0
        %1339 = vdwg.mxu0
        %1340 = vmatprep.subr.bf16.mxu0 %v999
        %1341 = vmatpush1.bf16.msra.mxu0 %v998
        %1342 = vmatprep.subr.bf16.mxu0 %v990
        %1343 = vmatpush1.bf16.msra.mxu0 %v989
        %1344 = vmatprep.subr.bf16.mxu0 %v981
        %1345 = vmatpush1.bf16.msra.mxu0 %v980
        %1346 = vmatprep.subr.bf16.mxu0 %v972
        %1347 = vmatpush1.bf16.msra.mxu0 %v971
        %1348 = vmatprep.subr.bf16.mxu0 %v963
        %1349 = vmatpush1.bf16.msra.mxu0 %v962
        %1350 = vmatprep.subr.bf16.mxu0 %v954
        %1351 = vmatpush1.bf16.msra.mxu0 %v953
        %1352 = vmatprep.subr.bf16.mxu0 %v945
        %1353 = vmatpush1.bf16.msra.mxu0 %v944
        %1354 = vmatprep.subr.bf16.mxu0 %v936
        %1355 = vmatpush1.bf16.msra.mxu0 %v935
        %1356 = vmatprep.subr.bf16.mxu0 %v1071
        %1357 = vmatpush2.bf16.msra.mxu0 %v1070
        %1358 = vmatprep.subr.bf16.mxu0 %v1062
        %1359 = vmatpush2.bf16.msra.mxu0 %v1061
        %1360 = vmatprep.subr.bf16.mxu0 %v1053
        %1361 = vmatpush2.bf16.msra.mxu0 %v1052
        %1362 = vmatprep.subr.bf16.mxu0 %v1044
        %1363 = vmatpush2.bf16.msra.mxu0 %v1043
        %1364 = vmatprep.subr.bf16.mxu0 %v1035
        %1365 = vmatpush2.bf16.msra.mxu0 %v1034
        %1366 = vmatprep.subr.bf16.mxu0 %v1026
        %1367 = vmatpush2.bf16.msra.mxu0 %v1025
        %1368 = vmatprep.subr.bf16.mxu0 %v1017
        %1369 = vmatpush2.bf16.msra.mxu0 %v1016
        %1370 = vmatprep.subr.bf16.mxu0 %v1008
        %1371 = vmatpush2.bf16.msra.mxu0 %v1007
        %1372 = vmatprep.mubr.bf16.mxu0 %v320
        %1373 = vmatmul.mubr.bf16.gmra.mxu0 %v319
        %v1374 = vpop.f32.mrf.mxu0
        %v1375 = vadd.f32 0.0, %v1374
        %v1376 = vpop.f32.mrf.mxu0
        %v1377 = vadd.f32 0.0, %v1376
        %v1378 = vpop.f32.mrf.mxu0
        %v1379 = vpop.f32.mrf.mxu0
        %1380 = vdwg.mxu0
        %1381 = vmatprep.subr.bf16.mxu0 0
        %1382 = vmatpush1.bf16.msra.mxu0 %v1000
        %1383 = vmatprep.subr.bf16.mxu0 0
        %1384 = vmatpush1.bf16.msra.mxu0 %v991
        %1385 = vmatprep.subr.bf16.mxu0 0
        %1386 = vmatpush1.bf16.msra.mxu0 %v982
        %1387 = vmatprep.subr.bf16.mxu0 0
        %1388 = vmatpush1.bf16.msra.mxu0 %v973
        %1389 = vmatprep.subr.bf16.mxu0 0
        %1390 = vmatpush1.bf16.msra.mxu0 %v964
        %1391 = vmatprep.subr.bf16.mxu0 0
        %1392 = vmatpush1.bf16.msra.mxu0 %v955
        %1393 = vmatprep.subr.bf16.mxu0 0
        %1394 = vmatpush1.bf16.msra.mxu0 %v946
        %1395 = vmatprep.subr.bf16.mxu0 0
        %1396 = vmatpush1.bf16.msra.mxu0 %v937
        %1397 = vmatprep.subr.bf16.mxu0 0
        %1398 = vmatpush2.bf16.msra.mxu0 %v1072
        %1399 = vmatprep.subr.bf16.mxu0 0
        %1400 = vmatpush2.bf16.msra.mxu0 %v1063
        %1401 = vmatprep.subr.bf16.mxu0 0
        %1402 = vmatpush2.bf16.msra.mxu0 %v1054
        %1403 = vmatprep.subr.bf16.mxu0 0
        %1404 = vmatpush2.bf16.msra.mxu0 %v1045
        %1405 = vmatprep.subr.bf16.mxu0 0
        %1406 = vmatpush2.bf16.msra.mxu0 %v1036
        %1407 = vmatprep.subr.bf16.mxu0 0
        %1408 = vmatpush2.bf16.msra.mxu0 %v1027
        %1409 = vmatprep.subr.bf16.mxu0 0
        %1410 = vmatpush2.bf16.msra.mxu0 %v1018
        %1411 = vmatprep.subr.bf16.mxu0 0
        %1412 = vmatpush2.bf16.msra.mxu0 %v1009
        %1413 = vmatprep.mubr.bf16.mxu0 %v320
        %1414 = vmatmul.mubr.bf16.gmra.mxu0 %v319
        %v1415 = vpop.f32.mrf.mxu0
        %v1416 = vadd.f32 0.0, %v1415
        %v1417 = vpop.f32.mrf.mxu0
        %v1418 = vpop.f32.mrf.mxu0
        %v1419 = vpop.f32.mrf.mxu0
        %1420 = vdwg.mxu0
        %v1421 = vadd.f32 %v308, %v1252
        %v1422 = vadd.f32 %v309, %v1254
        %v1423 = vadd.f32 %v310, %v1293
        %v1424 = vadd.f32 %v311, %v1295
        %v1425 = vadd.f32 %v312, %v1334
        %v1426 = vadd.f32 %v313, %v1336
        %v1427 = vadd.f32 %v314, %v1375
        %v1428 = vadd.f32 %v315, %v1377
        %v1429 = vadd.f32 %v316, %v1416
        %1430 = vst [vmem:[#allocation2] sm:$0xff] %v1421
        %1431 = vst [vmem:[#allocation2 + $0x8] sm:$0xff] %v1422
        %1432 = vst [vmem:[#allocation2 + $0x10] sm:$0xff] %v1423
        %1433 = vst [vmem:[#allocation2 + $0x18] sm:$0xff] %v1424
        %1434 = vst [vmem:[#allocation2 + $0x20] sm:$0xff] %v1425
        %1435 = vst [vmem:[#allocation2 + $0x28] sm:$0xff] %v1426
        %1436 = vst [vmem:[#allocation2 + $0x30] sm:$0xff] %v1427
        %1437 = vst [vmem:[#allocation2 + $0x38] sm:$0xff] %v1428
        %1438 = vst [vmem:[#allocation2 + $0x40] sm:$0xff] %v1429
        %p1439 = scmp.eq.s32.totalorder %s21, 1
        // Predicated region
        $region61: #{mlp_forward.1} parent=39 // pred_check
          %p1440 = pneg %p1439
        $region62: #{mlp_forward.1} parent=39 // pred_check_branch
          %1442 = sbr.rel (%p1440) target = $region64
        $region63: #{mlp_forward.1} parent=39 // pred_region
          %v1443 = vld [vmem:[#allocation2] sm:$0xff]
          %v1444 = vld [vmem:[#allocation2 + $0x8] sm:$0xff]
          %v1445 = vld [vmem:[#allocation2 + $0x10] sm:$0xff]
          %v1446 = vld [vmem:[#allocation2 + $0x18] sm:$0xff]
          %v1447 = vld [vmem:[#allocation2 + $0x20] sm:$0xff]
          %v1448 = vld [vmem:[#allocation2 + $0x28] sm:$0xff]
          %v1449 = vld [vmem:[#allocation2 + $0x30] sm:$0xff]
          %v1450 = vld [vmem:[#allocation2 + $0x38] sm:$0xff]
          %v1451 = vld [vmem:[#allocation2 + $0x40] sm:$0xff]
          %v1452 = vld [vmem:[#allocation5] sm:$0xff]
          %v1453 = vld [vmem:[#allocation5 + $0x8] sm:$0x1]
          %v1456 = vlaneseq
          %v1457 = vshrl.u32 %v1456, 7
          %v1458 = vsub.s32 0, %v1457
          %v1459 = vrot.slane %v1452, %v1458
          %v1460 = vlaneseq
          %v1461 = vshrl.u32 %v1460, 7
          %v1462 = vsub.s32 1, %v1461
          %v1463 = vrot.slane %v1452, %v1462
          %v1464 = vlaneseq
          %v1465 = vshrl.u32 %v1464, 7
          %v1466 = vsub.s32 2, %v1465
          %v1467 = vrot.slane %v1452, %v1466
          %v1468 = vlaneseq
          %v1469 = vshrl.u32 %v1468, 7
          %v1470 = vsub.s32 3, %v1469
          %v1471 = vrot.slane %v1452, %v1470
          %v1472 = vlaneseq
          %v1473 = vshrl.u32 %v1472, 7
          %v1474 = vsub.s32 4, %v1473
          %v1475 = vrot.slane %v1452, %v1474
          %v1476 = vlaneseq
          %v1477 = vshrl.u32 %v1476, 7
          %v1478 = vsub.s32 5, %v1477
          %v1479 = vrot.slane %v1452, %v1478
          %v1480 = vlaneseq
          %v1481 = vshrl.u32 %v1480, 7
          %v1482 = vsub.s32 6, %v1481
          %v1483 = vrot.slane %v1452, %v1482
          %v1484 = vlaneseq
          %v1485 = vshrl.u32 %v1484, 7
          %v1486 = vsub.s32 7, %v1485
          %v1487 = vrot.slane %v1452, %v1486
          %v1488 = vlaneseq
          %v1489 = vshrl.u32 %v1488, 7
          %v1490 = vsub.s32 0, %v1489
          %v1491 = vrot.slane %v1453, %v1490
          %v1501 = vadd.f32 %v1443, %v1459
          %v1502 = vadd.f32 %v1444, %v1463
          %v1503 = vadd.f32 %v1445, %v1467
          %v1504 = vadd.f32 %v1446, %v1471
          %v1505 = vadd.f32 %v1447, %v1475
          %v1506 = vadd.f32 %v1448, %v1479
          %v1507 = vadd.f32 %v1449, %v1483
          %v1508 = vadd.f32 %v1450, %v1487
          %v1509 = vadd.f32 %v1451, %v1491
          %v1510 = vmax.f32 %v1501, 0.0
          %v1511 = vmax.f32 %v1502, 0.0
          %v1512 = vmax.f32 %v1503, 0.0
          %v1513 = vmax.f32 %v1504, 0.0
          %v1514 = vmax.f32 %v1505, 0.0
          %v1515 = vmax.f32 %v1506, 0.0
          %v1516 = vmax.f32 %v1507, 0.0
          %v1517 = vmax.f32 %v1508, 0.0
          %v1518 = vmax.f32 %v1509, 0.0
          %v1519 = vld [vmem:[#allocation7] sm:$0xf]
          %v1520 = vld [vmem:[#allocation7 + $0x4] sm:$0xf]
          %v1521 = vld [vmem:[#allocation7 + $0x8] sm:$0xf]
          %v1522 = vld [vmem:[#allocation7 + $0xc] sm:$0xf]
          %v1523 = vld [vmem:[#allocation7 + $0x10] sm:$0xf]
          %v1524 = vld [vmem:[#allocation7 + $0x14] sm:$0xf]
          %v1525 = vld [vmem:[#allocation7 + $0x18] sm:$0xf]
          %v1526 = vld [vmem:[#allocation7 + $0x1c] sm:$0xf]
          %v1527 = vld [vmem:[#allocation7 + $0x20] sm:$0xf]
          %v1528 = vld [vmem:[#allocation7 + $0x24] sm:$0xf]
          %v1529 = vld [vmem:[#allocation7 + $0x28] sm:$0xf]
          %v1530 = vld [vmem:[#allocation7 + $0x2c] sm:$0xf]
          %v1531 = vld [vmem:[#allocation7 + $0x30] sm:$0xf]
          %v1532 = vld [vmem:[#allocation7 + $0x34] sm:$0xf]
          %v1533 = vld [vmem:[#allocation7 + $0x38] sm:$0xf]
          %v1534 = vld [vmem:[#allocation7 + $0x3c] sm:$0xf]
          %v1535 = vld [vmem:[#allocation7 + $0x40] sm:$0xf]
          %v1536 = vld [vmem:[#allocation7 + $0x44] sm:$0xf]
          %v1537 = vld [vmem:[#allocation7 + $0x48] sm:$0xf]
          %v1538 = vld [vmem:[#allocation7 + $0x4c] sm:$0xf]
          %v1539 = vld [vmem:[#allocation7 + $0x50] sm:$0xf]
          %v1540 = vld [vmem:[#allocation7 + $0x54] sm:$0xf]
          %v1541 = vld [vmem:[#allocation7 + $0x58] sm:$0xf]
          %v1542 = vld [vmem:[#allocation7 + $0x5c] sm:$0xf]
          %v1543 = vld [vmem:[#allocation7 + $0x60] sm:$0xf]
          %v1544 = vld [vmem:[#allocation7 + $0x64] sm:$0xf]
          %v1545 = vld [vmem:[#allocation7 + $0x68] sm:$0xf]
          %v1546 = vld [vmem:[#allocation7 + $0x6c] sm:$0xf]
          %v1547 = vld [vmem:[#allocation7 + $0x70] sm:$0xf]
          %v1548 = vld [vmem:[#allocation7 + $0x74] sm:$0xf]
          %v1549 = vld [vmem:[#allocation7 + $0x78] sm:$0xf]
          %v1550 = vld [vmem:[#allocation7 + $0x7c] sm:$0xf]
          %v1551 = vld [vmem:[#allocation7 + $0x80] sm:$0xf]
          %v1552 = vld [vmem:[#allocation7 + $0x84] sm:$0xf]
          %v1553 = vld [vmem:[#allocation7 + $0x88] sm:$0xf]
          %v1554 = vld [vmem:[#allocation7 + $0x8c] sm:$0xf]
          %v1555 = vld [vmem:[#allocation7 + $0x90] sm:$0xf]
          %v1556 = vld [vmem:[#allocation7 + $0x94] sm:$0xf]
          %v1557 = vld [vmem:[#allocation7 + $0x98] sm:$0xf]
          %v1558 = vld [vmem:[#allocation7 + $0x9c] sm:$0xf]
          %v1559 = vld [vmem:[#allocation7 + $0xa0] sm:$0xf]
          %v1560 = vld [vmem:[#allocation7 + $0xa4] sm:$0xf]
          %v1561 = vld [vmem:[#allocation7 + $0xa8] sm:$0xf]
          %v1562 = vld [vmem:[#allocation7 + $0xac] sm:$0xf]
          %v1563 = vld [vmem:[#allocation7 + $0xb0] sm:$0xf]
          %v1564 = vld [vmem:[#allocation7 + $0xb4] sm:$0xf]
          %v1565 = vld [vmem:[#allocation7 + $0xb8] sm:$0xf]
          %v1566 = vld [vmem:[#allocation7 + $0xbc] sm:$0xf]
          %v1567 = vld [vmem:[#allocation7 + $0xc0] sm:$0xf]
          %v1568 = vld [vmem:[#allocation7 + $0xc4] sm:$0xf]
          %v1569 = vld [vmem:[#allocation7 + $0xc8] sm:$0xf]
          %v1570 = vld [vmem:[#allocation7 + $0xcc] sm:$0xf]
          %v1571 = vld [vmem:[#allocation7 + $0xd0] sm:$0xf]
          %v1572 = vld [vmem:[#allocation7 + $0xd4] sm:$0xf]
          %v1573 = vld [vmem:[#allocation7 + $0xd8] sm:$0xf]
          %v1574 = vld [vmem:[#allocation7 + $0xdc] sm:$0xf]
          %v1575 = vld [vmem:[#allocation7 + $0xe0] sm:$0xf]
          %v1576 = vld [vmem:[#allocation7 + $0xe4] sm:$0xf]
          %v1577 = vld [vmem:[#allocation7 + $0xe8] sm:$0xf]
          %v1578 = vld [vmem:[#allocation7 + $0xec] sm:$0xf]
          %v1579 = vld [vmem:[#allocation7 + $0xf0] sm:$0xf]
          %v1580 = vld [vmem:[#allocation7 + $0xf4] sm:$0xf]
          %v1581 = vld [vmem:[#allocation7 + $0xf8] sm:$0xf]
          %v1582 = vld [vmem:[#allocation7 + $0xfc] sm:$0xf]
          %v1583 = vld [vmem:[#allocation7 + $0x100] sm:$0xf]
          %v1584 = vld [vmem:[#allocation7 + $0x104] sm:$0xf]
          %v1585 = vld [vmem:[#allocation7 + $0x108] sm:$0xf]
          %v1586 = vld [vmem:[#allocation7 + $0x10c] sm:$0xf]
          %v1587 = vld [vmem:[#allocation7 + $0x110] sm:$0xf]
          %v1588 = vld [vmem:[#allocation7 + $0x114] sm:$0xf]
          %v1589 = vld [vmem:[#allocation7 + $0x118] sm:$0xf]
          %v1590 = vld [vmem:[#allocation7 + $0x11c] sm:$0xf]
          %v1591 = vld [vmem:[#allocation7 + $0x120] sm:$0xf]
          %v1592 = vld [vmem:[#allocation7 + $0x124] sm:$0xf]
          %v1593 = vld [vmem:[#allocation7 + $0x128] sm:$0xf]
          %v1594 = vld [vmem:[#allocation7 + $0x12c] sm:$0xf]
          %v1595 = vld [vmem:[#allocation7 + $0x130] sm:$0xf]
          %v1596 = vld [vmem:[#allocation7 + $0x134] sm:$0xf]
          %v1597 = vld [vmem:[#allocation7 + $0x138] sm:$0xf]
          %v1598 = vld [vmem:[#allocation7 + $0x13c] sm:$0xf]
          %v1599 = vld [vmem:[#allocation7 + $0x140] sm:$0xf]
          %v1600 = vld [vmem:[#allocation7 + $0x144] sm:$0xf]
          %v1601 = vld [vmem:[#allocation7 + $0x148] sm:$0xf]
          %v1602 = vld [vmem:[#allocation7 + $0x14c] sm:$0xf]
          %v1603 = vld [vmem:[#allocation7 + $0x150] sm:$0xf]
          %v1604 = vld [vmem:[#allocation7 + $0x154] sm:$0xf]
          %v1605 = vld [vmem:[#allocation7 + $0x158] sm:$0xf]
          %v1606 = vld [vmem:[#allocation7 + $0x15c] sm:$0xf]
          %v1607 = vld [vmem:[#allocation7 + $0x160] sm:$0xf]
          %v1608 = vld [vmem:[#allocation7 + $0x164] sm:$0xf]
          %v1609 = vld [vmem:[#allocation7 + $0x168] sm:$0xf]
          %v1610 = vld [vmem:[#allocation7 + $0x16c] sm:$0xf]
          %v1611 = vld [vmem:[#allocation7 + $0x170] sm:$0xf]
          %v1612 = vld [vmem:[#allocation7 + $0x174] sm:$0xf]
          %v1613 = vld [vmem:[#allocation7 + $0x178] sm:$0xf]
          %v1614 = vld [vmem:[#allocation7 + $0x17c] sm:$0xf]
          %v1615 = vld [vmem:[#allocation7 + $0x180] sm:$0xf]
          %v1616 = vld [vmem:[#allocation7 + $0x184] sm:$0xf]
          %v1617 = vld [vmem:[#allocation7 + $0x188] sm:$0xf]
          %v1618 = vld [vmem:[#allocation7 + $0x18c] sm:$0xf]
          %v1619 = vld [vmem:[#allocation7 + $0x190] sm:$0xf]
          %v1620 = vld [vmem:[#allocation7 + $0x194] sm:$0xf]
          %v1621 = vld [vmem:[#allocation7 + $0x198] sm:$0xf]
          %v1622 = vld [vmem:[#allocation7 + $0x19c] sm:$0xf]
          %v1623 = vld [vmem:[#allocation7 + $0x1a0] sm:$0xf]
          %v1624 = vld [vmem:[#allocation7 + $0x1a4] sm:$0xf]
          %v1625 = vld [vmem:[#allocation7 + $0x1a8] sm:$0xf]
          %v1626 = vld [vmem:[#allocation7 + $0x1ac] sm:$0xf]
          %v1627 = vld [vmem:[#allocation7 + $0x1b0] sm:$0xf]
          %v1628 = vld [vmem:[#allocation7 + $0x1b4] sm:$0xf]
          %v1629 = vld [vmem:[#allocation7 + $0x1b8] sm:$0xf]
          %v1630 = vld [vmem:[#allocation7 + $0x1bc] sm:$0xf]
          %v1631 = vld [vmem:[#allocation7 + $0x1c0] sm:$0xf]
          %v1632 = vld [vmem:[#allocation7 + $0x1c4] sm:$0xf]
          %v1633 = vld [vmem:[#allocation7 + $0x1c8] sm:$0xf]
          %v1634 = vld [vmem:[#allocation7 + $0x1cc] sm:$0xf]
          %v1635 = vld [vmem:[#allocation7 + $0x1d0] sm:$0xf]
          %v1636 = vld [vmem:[#allocation7 + $0x1d4] sm:$0xf]
          %v1637 = vld [vmem:[#allocation7 + $0x1d8] sm:$0xf]
          %v1638 = vld [vmem:[#allocation7 + $0x1dc] sm:$0xf]
          %v1639 = vld [vmem:[#allocation7 + $0x1e0] sm:$0xf]
          %v1640 = vld [vmem:[#allocation7 + $0x1e4] sm:$0xf]
          %v1641 = vld [vmem:[#allocation7 + $0x1e8] sm:$0xf]
          %v1642 = vld [vmem:[#allocation7 + $0x1ec] sm:$0xf]
          %v1643 = vld [vmem:[#allocation7 + $0x1f0] sm:$0xf]
          %v1644 = vld [vmem:[#allocation7 + $0x1f4] sm:$0xf]
          %v1645 = vld [vmem:[#allocation7 + $0x1f8] sm:$0xf]
          %v1646 = vld [vmem:[#allocation7 + $0x1fc] sm:$0xf]
          %v1647 = vld [vmem:[#allocation7 + $0x200] sm:$0xf]
          %v1648 = vld [vmem:[#allocation7 + $0x204] sm:$0xf]
          %v1649 = vld [vmem:[#allocation7 + $0x208] sm:$0xf]
          %v1650 = vld [vmem:[#allocation7 + $0x20c] sm:$0xf]
          %v1651 = vld [vmem:[#allocation7 + $0x210] sm:$0xf]
          %v1652 = vld [vmem:[#allocation7 + $0x214] sm:$0xf]
          %v1653 = vld [vmem:[#allocation7 + $0x218] sm:$0xf]
          %v1654 = vld [vmem:[#allocation7 + $0x21c] sm:$0xf]
          %v1655 = vld [vmem:[#allocation7 + $0x220] sm:$0xf]
          %v1656 = vld [vmem:[#allocation7 + $0x224] sm:$0xf]
          %v1657 = vld [vmem:[#allocation7 + $0x228] sm:$0xf]
          %v1658 = vld [vmem:[#allocation7 + $0x22c] sm:$0xf]
          %v1659 = vld [vmem:[#allocation7 + $0x230] sm:$0xf]
          %v1660 = vld [vmem:[#allocation7 + $0x234] sm:$0xf]
          %v1661 = vld [vmem:[#allocation7 + $0x238] sm:$0xf]
          %v1662 = vld [vmem:[#allocation7 + $0x23c] sm:$0xf]
          %v1663 = vunpack.c.l.bf16 %v1519
          %v1664 = vunpack.c.l.bf16 %v1520
          %v1665 = vunpack.c.l.bf16 %v1521
          %v1666 = vunpack.c.l.bf16 %v1522
          %v1667 = vunpack.c.l.bf16 %v1523
          %v1668 = vunpack.c.l.bf16 %v1524
          %v1669 = vunpack.c.l.bf16 %v1525
          %v1670 = vunpack.c.l.bf16 %v1526
          %v1671 = vunpack.c.l.bf16 %v1527
          %v1672 = vunpack.c.l.bf16 %v1528
          %v1673 = vunpack.c.l.bf16 %v1529
          %v1674 = vunpack.c.l.bf16 %v1530
          %v1675 = vunpack.c.l.bf16 %v1531
          %v1676 = vunpack.c.l.bf16 %v1532
          %v1677 = vunpack.c.l.bf16 %v1533
          %v1678 = vunpack.c.l.bf16 %v1534
          %v1679 = vunpack.c.l.bf16 %v1535
          %v1680 = vunpack.c.l.bf16 %v1536
          %v1681 = vunpack.c.l.bf16 %v1537
          %v1682 = vunpack.c.l.bf16 %v1538
          %v1683 = vunpack.c.l.bf16 %v1539
          %v1684 = vunpack.c.l.bf16 %v1540
          %v1685 = vunpack.c.l.bf16 %v1541
          %v1686 = vunpack.c.l.bf16 %v1542
          %v1687 = vunpack.c.l.bf16 %v1543
          %v1688 = vunpack.c.l.bf16 %v1544
          %v1689 = vunpack.c.l.bf16 %v1545
          %v1690 = vunpack.c.l.bf16 %v1546
          %v1691 = vunpack.c.l.bf16 %v1547
          %v1692 = vunpack.c.l.bf16 %v1548
          %v1693 = vunpack.c.l.bf16 %v1549
          %v1694 = vunpack.c.l.bf16 %v1550
          %v1695 = vunpack.c.l.bf16 %v1551
          %v1696 = vunpack.c.l.bf16 %v1552
          %v1697 = vunpack.c.l.bf16 %v1553
          %v1698 = vunpack.c.l.bf16 %v1554
          %v1699 = vunpack.c.l.bf16 %v1555
          %v1700 = vunpack.c.l.bf16 %v1556
          %v1701 = vunpack.c.l.bf16 %v1557
          %v1702 = vunpack.c.l.bf16 %v1558
          %v1703 = vunpack.c.l.bf16 %v1559
          %v1704 = vunpack.c.l.bf16 %v1560
          %v1705 = vunpack.c.l.bf16 %v1561
          %v1706 = vunpack.c.l.bf16 %v1562
          %v1707 = vunpack.c.l.bf16 %v1563
          %v1708 = vunpack.c.l.bf16 %v1564
          %v1709 = vunpack.c.l.bf16 %v1565
          %v1710 = vunpack.c.l.bf16 %v1566
          %v1711 = vunpack.c.l.bf16 %v1567
          %v1712 = vunpack.c.l.bf16 %v1568
          %v1713 = vunpack.c.l.bf16 %v1569
          %v1714 = vunpack.c.l.bf16 %v1570
          %v1715 = vunpack.c.l.bf16 %v1571
          %v1716 = vunpack.c.l.bf16 %v1572
          %v1717 = vunpack.c.l.bf16 %v1573
          %v1718 = vunpack.c.l.bf16 %v1574
          %v1719 = vunpack.c.l.bf16 %v1575
          %v1720 = vunpack.c.l.bf16 %v1576
          %v1721 = vunpack.c.l.bf16 %v1577
          %v1722 = vunpack.c.l.bf16 %v1578
          %v1723 = vunpack.c.l.bf16 %v1579
          %v1724 = vunpack.c.l.bf16 %v1580
          %v1725 = vunpack.c.l.bf16 %v1581
          %v1726 = vunpack.c.l.bf16 %v1582
          %v1727 = vunpack.c.l.bf16 %v1583
          %v1728 = vunpack.c.l.bf16 %v1584
          %v1729 = vunpack.c.l.bf16 %v1585
          %v1730 = vunpack.c.l.bf16 %v1586
          %v1731 = vunpack.c.l.bf16 %v1587
          %v1732 = vunpack.c.l.bf16 %v1588
          %v1733 = vunpack.c.l.bf16 %v1589
          %v1734 = vunpack.c.l.bf16 %v1590
          %v1735 = vunpack.c.l.bf16 %v1591
          %v1736 = vunpack.c.l.bf16 %v1592
          %v1737 = vunpack.c.l.bf16 %v1593
          %v1738 = vunpack.c.l.bf16 %v1594
          %v1739 = vunpack.c.l.bf16 %v1595
          %v1740 = vunpack.c.l.bf16 %v1596
          %v1741 = vunpack.c.l.bf16 %v1597
          %v1742 = vunpack.c.l.bf16 %v1598
          %v1743 = vunpack.c.l.bf16 %v1599
          %v1744 = vunpack.c.l.bf16 %v1600
          %v1745 = vunpack.c.l.bf16 %v1601
          %v1746 = vunpack.c.l.bf16 %v1602
          %v1747 = vunpack.c.l.bf16 %v1603
          %v1748 = vunpack.c.l.bf16 %v1604
          %v1749 = vunpack.c.l.bf16 %v1605
          %v1750 = vunpack.c.l.bf16 %v1606
          %v1751 = vunpack.c.l.bf16 %v1607
          %v1752 = vunpack.c.l.bf16 %v1608
          %v1753 = vunpack.c.l.bf16 %v1609
          %v1754 = vunpack.c.l.bf16 %v1610
          %v1755 = vunpack.c.l.bf16 %v1611
          %v1756 = vunpack.c.l.bf16 %v1612
          %v1757 = vunpack.c.l.bf16 %v1613
          %v1758 = vunpack.c.l.bf16 %v1614
          %v1759 = vunpack.c.l.bf16 %v1615
          %v1760 = vunpack.c.l.bf16 %v1616
          %v1761 = vunpack.c.l.bf16 %v1617
          %v1762 = vunpack.c.l.bf16 %v1618
          %v1763 = vunpack.c.l.bf16 %v1619
          %v1764 = vunpack.c.l.bf16 %v1620
          %v1765 = vunpack.c.l.bf16 %v1621
          %v1766 = vunpack.c.l.bf16 %v1622
          %v1767 = vunpack.c.l.bf16 %v1623
          %v1768 = vunpack.c.l.bf16 %v1624
          %v1769 = vunpack.c.l.bf16 %v1625
          %v1770 = vunpack.c.l.bf16 %v1626
          %v1771 = vunpack.c.l.bf16 %v1627
          %v1772 = vunpack.c.l.bf16 %v1628
          %v1773 = vunpack.c.l.bf16 %v1629
          %v1774 = vunpack.c.l.bf16 %v1630
          %v1775 = vunpack.c.l.bf16 %v1631
          %v1776 = vunpack.c.l.bf16 %v1632
          %v1777 = vunpack.c.l.bf16 %v1633
          %v1778 = vunpack.c.l.bf16 %v1634
          %v1779 = vunpack.c.l.bf16 %v1635
          %v1780 = vunpack.c.l.bf16 %v1636
          %v1781 = vunpack.c.l.bf16 %v1637
          %v1782 = vunpack.c.l.bf16 %v1638
          %v1783 = vunpack.c.l.bf16 %v1639
          %v1784 = vunpack.c.l.bf16 %v1640
          %v1785 = vunpack.c.l.bf16 %v1641
          %v1786 = vunpack.c.l.bf16 %v1642
          %v1787 = vunpack.c.l.bf16 %v1643
          %v1788 = vunpack.c.l.bf16 %v1644
          %v1789 = vunpack.c.l.bf16 %v1645
          %v1790 = vunpack.c.l.bf16 %v1646
          %v1791 = vunpack.c.l.bf16 %v1647
          %v1792 = vunpack.c.l.bf16 %v1648
          %v1793 = vunpack.c.l.bf16 %v1649
          %v1794 = vunpack.c.l.bf16 %v1650
          %v1795 = vunpack.c.l.bf16 %v1651
          %v1796 = vunpack.c.l.bf16 %v1652
          %v1797 = vunpack.c.l.bf16 %v1653
          %v1798 = vunpack.c.l.bf16 %v1654
          %v1799 = vunpack.c.l.bf16 %v1655
          %v1800 = vunpack.c.l.bf16 %v1656
          %v1801 = vunpack.c.l.bf16 %v1657
          %v1802 = vunpack.c.l.bf16 %v1658
          %v1803 = vunpack.c.l.bf16 %v1659
          %v1804 = vunpack.c.l.bf16 %v1660
          %v1805 = vunpack.c.l.bf16 %v1661
          %v1806 = vunpack.c.l.bf16 %v1662
          %v1807 = vld [vmem:[#allocation8] sm:$0x1]
          %v1809 = vlaneseq
          %v1810 = vshrl.u32 %v1809, 7
          %v1811 = vsub.s32 0, %v1810
          %v1812 = vrot.slane %v1807, %v1811
          %1814 = vmatprep.subr.mxu0 0.0
          %1815 = vmatpush1.msra.mxu0 %v1678
          %1816 = vmatprep.subr.mxu0 0.0
          %1817 = vmatpush1.msra.mxu0 %v1677
          %1818 = vmatprep.subr.mxu0 0.0
          %1819 = vmatpush1.msra.mxu0 %v1676
          %1820 = vmatprep.subr.mxu0 0.0
          %1821 = vmatpush1.msra.mxu0 %v1675
          %1822 = vmatprep.subr.mxu0 0.0
          %1823 = vmatpush1.msra.mxu0 %v1674
          %1824 = vmatprep.subr.mxu0 0.0
          %1825 = vmatpush1.msra.mxu0 %v1673
          %1826 = vmatprep.subr.mxu0 0.0
          %1827 = vmatpush1.msra.mxu0 %v1672
          %1828 = vmatprep.subr.mxu0 0.0
          %1829 = vmatpush1.msra.mxu0 %v1671
          %1830 = vmatprep.subr.mxu0 0.0
          %1831 = vmatpush1.msra.mxu0 %v1670
          %1832 = vmatprep.subr.mxu0 0.0
          %1833 = vmatpush1.msra.mxu0 %v1669
          %1834 = vmatprep.subr.mxu0 0.0
          %1835 = vmatpush1.msra.mxu0 %v1668
          %1836 = vmatprep.subr.mxu0 0.0
          %1837 = vmatpush1.msra.mxu0 %v1667
          %1838 = vmatprep.subr.mxu0 0.0
          %1839 = vmatpush1.msra.mxu0 %v1666
          %1840 = vmatprep.subr.mxu0 0.0
          %1841 = vmatpush1.msra.mxu0 %v1665
          %1842 = vmatprep.subr.mxu0 0.0
          %1843 = vmatpush1.msra.mxu0 %v1664
          %1844 = vmatprep.subr.mxu0 0.0
          %1845 = vmatpush1.msra.mxu0 %v1663
          %1846 = vmatprep.subr.mxu0 0.0
          %1847 = vmatpush2.msra.mxu0 %v1694
          %1848 = vmatprep.subr.mxu0 0.0
          %1849 = vmatpush2.msra.mxu0 %v1693
          %1850 = vmatprep.subr.mxu0 0.0
          %1851 = vmatpush2.msra.mxu0 %v1692
          %1852 = vmatprep.subr.mxu0 0.0
          %1853 = vmatpush2.msra.mxu0 %v1691
          %1854 = vmatprep.subr.mxu0 0.0
          %1855 = vmatpush2.msra.mxu0 %v1690
          %1856 = vmatprep.subr.mxu0 0.0
          %1857 = vmatpush2.msra.mxu0 %v1689
          %1858 = vmatprep.subr.mxu0 0.0
          %1859 = vmatpush2.msra.mxu0 %v1688
          %1860 = vmatprep.subr.mxu0 0.0
          %1861 = vmatpush2.msra.mxu0 %v1687
          %1862 = vmatprep.subr.mxu0 0.0
          %1863 = vmatpush2.msra.mxu0 %v1686
          %1864 = vmatprep.subr.mxu0 0.0
          %1865 = vmatpush2.msra.mxu0 %v1685
          %1866 = vmatprep.subr.mxu0 0.0
          %1867 = vmatpush2.msra.mxu0 %v1684
          %1868 = vmatprep.subr.mxu0 0.0
          %1869 = vmatpush2.msra.mxu0 %v1683
          %1870 = vmatprep.subr.mxu0 0.0
          %1871 = vmatpush2.msra.mxu0 %v1682
          %1872 = vmatprep.subr.mxu0 0.0
          %1873 = vmatpush2.msra.mxu0 %v1681
          %1874 = vmatprep.subr.mxu0 0.0
          %1875 = vmatpush2.msra.mxu0 %v1680
          %1876 = vmatprep.subr.mxu0 0.0
          %1877 = vmatpush2.msra.mxu0 %v1679
          %1878 = vmatprep.mubr.f32.mxu0 %v1511
          %1879 = vmatmul.mubr.f32.gmra.mxu0 %v1510
          %v1880 = vpop.f32.mrf.mxu0
          %v1881 = vadd.f32 %v1812, %v1880
          %v1882 = vpop.f32.mrf.mxu0
          %1883 = vdwg.mxu0
          %1884 = vmatprep.subr.mxu0 0.0
          %1885 = vmatpush1.msra.mxu0 %v1710
          %1886 = vmatprep.subr.mxu0 0.0
          %1887 = vmatpush1.msra.mxu0 %v1709
          %1888 = vmatprep.subr.mxu0 0.0
          %1889 = vmatpush1.msra.mxu0 %v1708
          %1890 = vmatprep.subr.mxu0 0.0
          %1891 = vmatpush1.msra.mxu0 %v1707
          %1892 = vmatprep.subr.mxu0 0.0
          %1893 = vmatpush1.msra.mxu0 %v1706
          %1894 = vmatprep.subr.mxu0 0.0
          %1895 = vmatpush1.msra.mxu0 %v1705
          %1896 = vmatprep.subr.mxu0 0.0
          %1897 = vmatpush1.msra.mxu0 %v1704
          %1898 = vmatprep.subr.mxu0 0.0
          %1899 = vmatpush1.msra.mxu0 %v1703
          %1900 = vmatprep.subr.mxu0 0.0
          %1901 = vmatpush1.msra.mxu0 %v1702
          %1902 = vmatprep.subr.mxu0 0.0
          %1903 = vmatpush1.msra.mxu0 %v1701
          %1904 = vmatprep.subr.mxu0 0.0
          %1905 = vmatpush1.msra.mxu0 %v1700
          %1906 = vmatprep.subr.mxu0 0.0
          %1907 = vmatpush1.msra.mxu0 %v1699
          %1908 = vmatprep.subr.mxu0 0.0
          %1909 = vmatpush1.msra.mxu0 %v1698
          %1910 = vmatprep.subr.mxu0 0.0
          %1911 = vmatpush1.msra.mxu0 %v1697
          %1912 = vmatprep.subr.mxu0 0.0
          %1913 = vmatpush1.msra.mxu0 %v1696
          %1914 = vmatprep.subr.mxu0 0.0
          %1915 = vmatpush1.msra.mxu0 %v1695
          %1916 = vmatprep.subr.mxu0 0.0
          %1917 = vmatpush2.msra.mxu0 %v1726
          %1918 = vmatprep.subr.mxu0 0.0
          %1919 = vmatpush2.msra.mxu0 %v1725
          %1920 = vmatprep.subr.mxu0 0.0
          %1921 = vmatpush2.msra.mxu0 %v1724
          %1922 = vmatprep.subr.mxu0 0.0
          %1923 = vmatpush2.msra.mxu0 %v1723
          %1924 = vmatprep.subr.mxu0 0.0
          %1925 = vmatpush2.msra.mxu0 %v1722
          %1926 = vmatprep.subr.mxu0 0.0
          %1927 = vmatpush2.msra.mxu0 %v1721
          %1928 = vmatprep.subr.mxu0 0.0
          %1929 = vmatpush2.msra.mxu0 %v1720
          %1930 = vmatprep.subr.mxu0 0.0
          %1931 = vmatpush2.msra.mxu0 %v1719
          %1932 = vmatprep.subr.mxu0 0.0
          %1933 = vmatpush2.msra.mxu0 %v1718
          %1934 = vmatprep.subr.mxu0 0.0
          %1935 = vmatpush2.msra.mxu0 %v1717
          %1936 = vmatprep.subr.mxu0 0.0
          %1937 = vmatpush2.msra.mxu0 %v1716
          %1938 = vmatprep.subr.mxu0 0.0
          %1939 = vmatpush2.msra.mxu0 %v1715
          %1940 = vmatprep.subr.mxu0 0.0
          %1941 = vmatpush2.msra.mxu0 %v1714
          %1942 = vmatprep.subr.mxu0 0.0
          %1943 = vmatpush2.msra.mxu0 %v1713
          %1944 = vmatprep.subr.mxu0 0.0
          %1945 = vmatpush2.msra.mxu0 %v1712
          %1946 = vmatprep.subr.mxu0 0.0
          %1947 = vmatpush2.msra.mxu0 %v1711
          %1948 = vmatprep.mubr.f32.mxu0 %v1513
          %1949 = vmatmul.mubr.f32.gmra.mxu0 %v1512
          %v1950 = vpop.f32.mrf.mxu0
          %v1951 = vadd.f32 %v1881, %v1950
          %v1952 = vpop.f32.mrf.mxu0
          %1953 = vdwg.mxu0
          %1954 = vmatprep.subr.mxu0 0.0
          %1955 = vmatpush1.msra.mxu0 %v1742
          %1956 = vmatprep.subr.mxu0 0.0
          %1957 = vmatpush1.msra.mxu0 %v1741
          %1958 = vmatprep.subr.mxu0 0.0
          %1959 = vmatpush1.msra.mxu0 %v1740
          %1960 = vmatprep.subr.mxu0 0.0
          %1961 = vmatpush1.msra.mxu0 %v1739
          %1962 = vmatprep.subr.mxu0 0.0
          %1963 = vmatpush1.msra.mxu0 %v1738
          %1964 = vmatprep.subr.mxu0 0.0
          %1965 = vmatpush1.msra.mxu0 %v1737
          %1966 = vmatprep.subr.mxu0 0.0
          %1967 = vmatpush1.msra.mxu0 %v1736
          %1968 = vmatprep.subr.mxu0 0.0
          %1969 = vmatpush1.msra.mxu0 %v1735
          %1970 = vmatprep.subr.mxu0 0.0
          %1971 = vmatpush1.msra.mxu0 %v1734
          %1972 = vmatprep.subr.mxu0 0.0
          %1973 = vmatpush1.msra.mxu0 %v1733
          %1974 = vmatprep.subr.mxu0 0.0
          %1975 = vmatpush1.msra.mxu0 %v1732
          %1976 = vmatprep.subr.mxu0 0.0
          %1977 = vmatpush1.msra.mxu0 %v1731
          %1978 = vmatprep.subr.mxu0 0.0
          %1979 = vmatpush1.msra.mxu0 %v1730
          %1980 = vmatprep.subr.mxu0 0.0
          %1981 = vmatpush1.msra.mxu0 %v1729
          %1982 = vmatprep.subr.mxu0 0.0
          %1983 = vmatpush1.msra.mxu0 %v1728
          %1984 = vmatprep.subr.mxu0 0.0
          %1985 = vmatpush1.msra.mxu0 %v1727
          %1986 = vmatprep.subr.mxu0 0.0
          %1987 = vmatpush2.msra.mxu0 %v1758
          %1988 = vmatprep.subr.mxu0 0.0
          %1989 = vmatpush2.msra.mxu0 %v1757
          %1990 = vmatprep.subr.mxu0 0.0
          %1991 = vmatpush2.msra.mxu0 %v1756
          %1992 = vmatprep.subr.mxu0 0.0
          %1993 = vmatpush2.msra.mxu0 %v1755
          %1994 = vmatprep.subr.mxu0 0.0
          %1995 = vmatpush2.msra.mxu0 %v1754
          %1996 = vmatprep.subr.mxu0 0.0
          %1997 = vmatpush2.msra.mxu0 %v1753
          %1998 = vmatprep.subr.mxu0 0.0
          %1999 = vmatpush2.msra.mxu0 %v1752
          %2000 = vmatprep.subr.mxu0 0.0
          %2001 = vmatpush2.msra.mxu0 %v1751
          %2002 = vmatprep.subr.mxu0 0.0
          %2003 = vmatpush2.msra.mxu0 %v1750
          %2004 = vmatprep.subr.mxu0 0.0
          %2005 = vmatpush2.msra.mxu0 %v1749
          %2006 = vmatprep.subr.mxu0 0.0
          %2007 = vmatpush2.msra.mxu0 %v1748
          %2008 = vmatprep.subr.mxu0 0.0
          %2009 = vmatpush2.msra.mxu0 %v1747
          %2010 = vmatprep.subr.mxu0 0.0
          %2011 = vmatpush2.msra.mxu0 %v1746
          %2012 = vmatprep.subr.mxu0 0.0
          %2013 = vmatpush2.msra.mxu0 %v1745
          %2014 = vmatprep.subr.mxu0 0.0
          %2015 = vmatpush2.msra.mxu0 %v1744
          %2016 = vmatprep.subr.mxu0 0.0
          %2017 = vmatpush2.msra.mxu0 %v1743
          %2018 = vmatprep.mubr.f32.mxu0 %v1515
          %2019 = vmatmul.mubr.f32.gmra.mxu0 %v1514
          %v2020 = vpop.f32.mrf.mxu0
          %v2021 = vadd.f32 %v1951, %v2020
          %v2022 = vpop.f32.mrf.mxu0
          %2023 = vdwg.mxu0
          %2024 = vmatprep.subr.mxu0 0.0
          %2025 = vmatpush1.msra.mxu0 %v1774
          %2026 = vmatprep.subr.mxu0 0.0
          %2027 = vmatpush1.msra.mxu0 %v1773
          %2028 = vmatprep.subr.mxu0 0.0
          %2029 = vmatpush1.msra.mxu0 %v1772
          %2030 = vmatprep.subr.mxu0 0.0
          %2031 = vmatpush1.msra.mxu0 %v1771
          %2032 = vmatprep.subr.mxu0 0.0
          %2033 = vmatpush1.msra.mxu0 %v1770
          %2034 = vmatprep.subr.mxu0 0.0
          %2035 = vmatpush1.msra.mxu0 %v1769
          %2036 = vmatprep.subr.mxu0 0.0
          %2037 = vmatpush1.msra.mxu0 %v1768
          %2038 = vmatprep.subr.mxu0 0.0
          %2039 = vmatpush1.msra.mxu0 %v1767
          %2040 = vmatprep.subr.mxu0 0.0
          %2041 = vmatpush1.msra.mxu0 %v1766
          %2042 = vmatprep.subr.mxu0 0.0
          %2043 = vmatpush1.msra.mxu0 %v1765
          %2044 = vmatprep.subr.mxu0 0.0
          %2045 = vmatpush1.msra.mxu0 %v1764
          %2046 = vmatprep.subr.mxu0 0.0
          %2047 = vmatpush1.msra.mxu0 %v1763
          %2048 = vmatprep.subr.mxu0 0.0
          %2049 = vmatpush1.msra.mxu0 %v1762
          %2050 = vmatprep.subr.mxu0 0.0
          %2051 = vmatpush1.msra.mxu0 %v1761
          %2052 = vmatprep.subr.mxu0 0.0
          %2053 = vmatpush1.msra.mxu0 %v1760
          %2054 = vmatprep.subr.mxu0 0.0
          %2055 = vmatpush1.msra.mxu0 %v1759
          %2056 = vmatprep.subr.mxu0 0.0
          %2057 = vmatpush2.msra.mxu0 %v1790
          %2058 = vmatprep.subr.mxu0 0.0
          %2059 = vmatpush2.msra.mxu0 %v1789
          %2060 = vmatprep.subr.mxu0 0.0
          %2061 = vmatpush2.msra.mxu0 %v1788
          %2062 = vmatprep.subr.mxu0 0.0
          %2063 = vmatpush2.msra.mxu0 %v1787
          %2064 = vmatprep.subr.mxu0 0.0
          %2065 = vmatpush2.msra.mxu0 %v1786
          %2066 = vmatprep.subr.mxu0 0.0
          %2067 = vmatpush2.msra.mxu0 %v1785
          %2068 = vmatprep.subr.mxu0 0.0
          %2069 = vmatpush2.msra.mxu0 %v1784
          %2070 = vmatprep.subr.mxu0 0.0
          %2071 = vmatpush2.msra.mxu0 %v1783
          %2072 = vmatprep.subr.mxu0 0.0
          %2073 = vmatpush2.msra.mxu0 %v1782
          %2074 = vmatprep.subr.mxu0 0.0
          %2075 = vmatpush2.msra.mxu0 %v1781
          %2076 = vmatprep.subr.mxu0 0.0
          %2077 = vmatpush2.msra.mxu0 %v1780
          %2078 = vmatprep.subr.mxu0 0.0
          %2079 = vmatpush2.msra.mxu0 %v1779
          %2080 = vmatprep.subr.mxu0 0.0
          %2081 = vmatpush2.msra.mxu0 %v1778
          %2082 = vmatprep.subr.mxu0 0.0
          %2083 = vmatpush2.msra.mxu0 %v1777
          %2084 = vmatprep.subr.mxu0 0.0
          %2085 = vmatpush2.msra.mxu0 %v1776
          %2086 = vmatprep.subr.mxu0 0.0
          %2087 = vmatpush2.msra.mxu0 %v1775
          %2088 = vmatprep.mubr.f32.mxu0 %v1517
          %2089 = vmatmul.mubr.f32.gmra.mxu0 %v1516
          %v2090 = vpop.f32.mrf.mxu0
          %v2091 = vadd.f32 %v2021, %v2090
          %v2092 = vpop.f32.mrf.mxu0
          %2093 = vdwg.mxu0
          %2094 = vmatprep.subr.mxu0 0.0
          %2095 = vmatpush1.msra.mxu0 %v1806
          %2096 = vmatprep.subr.mxu0 0.0
          %2097 = vmatpush1.msra.mxu0 %v1805
          %2098 = vmatprep.subr.mxu0 0.0
          %2099 = vmatpush1.msra.mxu0 %v1804
          %2100 = vmatprep.subr.mxu0 0.0
          %2101 = vmatpush1.msra.mxu0 %v1803
          %2102 = vmatprep.subr.mxu0 0.0
          %2103 = vmatpush1.msra.mxu0 %v1802
          %2104 = vmatprep.subr.mxu0 0.0
          %2105 = vmatpush1.msra.mxu0 %v1801
          %2106 = vmatprep.subr.mxu0 0.0
          %2107 = vmatpush1.msra.mxu0 %v1800
          %2108 = vmatprep.subr.mxu0 0.0
          %2109 = vmatpush1.msra.mxu0 %v1799
          %2110 = vmatprep.subr.mxu0 0.0
          %2111 = vmatpush1.msra.mxu0 %v1798
          %2112 = vmatprep.subr.mxu0 0.0
          %2113 = vmatpush1.msra.mxu0 %v1797
          %2114 = vmatprep.subr.mxu0 0.0
          %2115 = vmatpush1.msra.mxu0 %v1796
          %2116 = vmatprep.subr.mxu0 0.0
          %2117 = vmatpush1.msra.mxu0 %v1795
          %2118 = vmatprep.subr.mxu0 0.0
          %2119 = vmatpush1.msra.mxu0 %v1794
          %2120 = vmatprep.subr.mxu0 0.0
          %2121 = vmatpush1.msra.mxu0 %v1793
          %2122 = vmatprep.subr.mxu0 0.0
          %2123 = vmatpush1.msra.mxu0 %v1792
          %2124 = vmatprep.subr.mxu0 0.0
          %2125 = vmatpush1.msra.mxu0 %v1791
          %2126 = vmatprep.subr.mxu0 0.0
          %2127 = vmatpush2.msra.mxu0 0.0
          %2128 = vmatprep.subr.mxu0 0.0
          %2129 = vmatpush2.msra.mxu0 0.0
          %2130 = vmatprep.subr.mxu0 0.0
          %2131 = vmatpush2.msra.mxu0 0.0
          %2132 = vmatprep.subr.mxu0 0.0
          %2133 = vmatpush2.msra.mxu0 0.0
          %2134 = vmatprep.subr.mxu0 0.0
          %2135 = vmatpush2.msra.mxu0 0.0
          %2136 = vmatprep.subr.mxu0 0.0
          %2137 = vmatpush2.msra.mxu0 0.0
          %2138 = vmatprep.subr.mxu0 0.0
          %2139 = vmatpush2.msra.mxu0 0.0
          %2140 = vmatprep.subr.mxu0 0.0
          %2141 = vmatpush2.msra.mxu0 0.0
          %2142 = vmatprep.subr.mxu0 0.0
          %2143 = vmatpush2.msra.mxu0 0.0
          %2144 = vmatprep.subr.mxu0 0.0
          %2145 = vmatpush2.msra.mxu0 0.0
          %2146 = vmatprep.subr.mxu0 0.0
          %2147 = vmatpush2.msra.mxu0 0.0
          %2148 = vmatprep.subr.mxu0 0.0
          %2149 = vmatpush2.msra.mxu0 0.0
          %2150 = vmatprep.subr.mxu0 0.0
          %2151 = vmatpush2.msra.mxu0 0.0
          %2152 = vmatprep.subr.mxu0 0.0
          %2153 = vmatpush2.msra.mxu0 0.0
          %2154 = vmatprep.subr.mxu0 0.0
          %2155 = vmatpush2.msra.mxu0 0.0
          %2156 = vmatprep.subr.mxu0 0.0
          %2157 = vmatpush2.msra.mxu0 0.0
          %2158 = vmatprep.mubr.f32.mxu0 0.0
          %2159 = vmatmul.mubr.f32.gmra.mxu0 %v1518
          %v2160 = vpop.f32.mrf.mxu0
          %v2161 = vadd.f32 %v2091, %v2160
          %v2162 = vpop.f32.mrf.mxu0
          %2163 = vdwg.mxu0
          %v2164 = vsub.f32 0.0, %v2161
          %v2165 = vmul.f32 %v2164, 1.442695
          %v2166 = vpow.pop %v2165
          %v2167 = vadd.f32 %v2166, 1.0
          %v2168 = vrcp.pop %v2167
          %v2169 = vmul.f32 1.0, %v2168
          %2170 = vst [vmem:[%s5] sm:$0xff] %v2169
        $region64: #{mlp_forward.1} parent=39 // pred_fallthru
          _
        // Predicated region
        $region65: #{mlp_forward.1} parent=39 // pred_check
          %p2171 = pneg %p149
        $region66: #{mlp_forward.1} parent=39 // pred_check_branch
          %2173 = sbr.rel (%p2171) target = $region68
        $region67: #{mlp_forward.1} parent=39 // pred_region
          _
        $region68: #{mlp_forward.1} parent=39 // pred_fallthru
          _
        // Predicated region
        $region69: #{mlp_forward.1} parent=39 // pred_check
          %p2174 = pneg %p149
        $region70: #{mlp_forward.1} parent=39 // pred_check_branch
          %2176 = sbr.rel (%p2174) target = $region72
        $region71: #{mlp_forward.1} parent=39 // pred_region
          _
        $region72: #{mlp_forward.1} parent=39 // pred_fallthru
          _
      $region40: #{mlp_forward.1} parent=5 // pred_fallthru
        _
      %p2177 = scmp.le.s32.totalorder 2, %s16
      // Predicated region
      $region73: #{mlp_forward.1} parent=5 // pred_check
        %p2178 = pneg %p2177
      $region74: #{mlp_forward.1} parent=5 // pred_check_branch
        %2180 = sbr.rel (%p2178) target = $region76
      $region75: #{mlp_forward.1} parent=5 // pred_region
        %s2181 = ssub.s32 %s16, 2
      $region76: #{mlp_forward.1} parent=5 // pred_fallthru
        _
    $region6: #{mlp_forward.1} parent=1 // loop_footer
      %s20 = sadd.s32 1, %s16
    $region7: #{mlp_forward.1} parent=1 // loop_footer_branch
      %15 = sbr.rel target = $region3
    $region8: #{mlp_forward.1} parent=1 // loop_exit
      _
    %2182 = vsyncpa [#allocation4], 1
    %s2183 = scalar_lea.sflag [#allocation4], 1
    %2184 = vsyncpa %s2183, 1
    %2185 = vsyncpa [#allocation6], 1
    %2186 = vsyncpa [#allocation9], 1

</llo_original>
